<compile_context>
chip_gen: v6e
topology: v6e:2x2x1
jax: 0.10.0
libtpu: 0.0.40
codegen_flags: <defaults>
</compile_context>

<pallas_src>
from functools import partial

import jax
import jax.numpy as jnp
from jax import lax
from jax.experimental import pallas as pl
from jax.experimental.pallas import tpu as pltpu

# ---- small config (consistent with transformerConfig, scaled down) ----------
NUM_LAYERS = 2
NUM_HEADS = 4
EMB = 128          # embedding_dim
FF = 256           # feed_forward_dim
MAX_SEQ = 64       # max_seq_len
VOCAB = 512        # vocab_size
LN_EPS = 1e-5
HEAD_DIM = EMB // NUM_HEADS
ATTN_INV_SCALE = 1.0 / (HEAD_DIM ** 0.5)


# ----------------------------- kernel helpers ---------------------------------
def _layernorm(x, g, b):
    mu = jnp.mean(x, axis=-1, keepdims=True)
    var = jnp.mean(jnp.square(x - mu), axis=-1, keepdims=True)
    return (x - mu) * lax.rsqrt(var + LN_EPS) * g + b


def _gelu_tanh(x):
    # tanh-approximate GELU: transcendental lands on the EUP slot.
    # TODO(synk): reference uses exact-erf GELU; tanh form differs at ~1e-3 level.
    return 0.5 * x * (1.0 + jnp.tanh(0.7978845608028654 * (x + 0.044715 * x * x * x)))


# ----------------------------- fused Pallas kernel ----------------------------
def _fused_forward_kernel(x_ref,
                          ln1g_ref, ln1b_ref, wqkv_ref, bqkv_ref, wo_ref, bo_ref,
                          ln2g_ref, ln2b_ref, w1_ref, b1_ref, w2_ref, b2_ref,
                          lnfg_ref, lnfb_ref, emb_ref, o_ref):
    """One sequence: [LN1 -> fused QKV -> causal MHA -> out-proj -> residual ->
    LN2 -> FF1 -> GELU -> FF2 -> residual] x NUM_LAYERS -> final LN -> tied LM head."""
    x = x_ref[0]                                           # (S, D) f32
    S, D = x.shape
    H, Dh = NUM_HEADS, HEAD_DIM

    row = lax.broadcasted_iota(jnp.int32, (S, S), 0)
    col = lax.broadcasted_iota(jnp.int32, (S, S), 1)
    causal = col <= row

    for l in range(NUM_LAYERS):                            # static unroll; weights VMEM-resident
        # ---- attention sub-block --------------------------------------------
        wqkv = wqkv_ref[l]                                 # (D, 3D) bf16
        wo = wo_ref[l]                                     # (D, D)  bf16
        h = _layernorm(x, ln1g_ref[l], ln1b_ref[l])
        qkv = jnp.dot(h.astype(jnp.bfloat16), wqkv,
                      preferred_element_type=jnp.float32) + bqkv_ref[l]   # (S, 3D) f32
        q = qkv[:, :D] * ATTN_INV_SCALE                    # 1/sqrt(Dh) folded into q
        k = qkv[:, D:2 * D]
        v = qkv[:, 2 * D:3 * D]

        attn = jnp.zeros((S, D), jnp.float32)              # lane-dense accumulator (no concat)
        for hh in range(H):                                # static unroll, H=4
            sl = slice(hh * Dh, (hh + 1) * Dh)
            qh = q[:, sl].astype(jnp.bfloat16)
            kh = k[:, sl].astype(jnp.bfloat16)
            vh = v[:, sl].astype(jnp.bfloat16)
            s = lax.dot_general(qh, kh, (((1,), (1,)), ((), ())),
                                preferred_element_type=jnp.float32)       # (S, S)
            # diagonal always unmasked -> no fully -inf row -> no NaN
            s = jnp.where(causal, s, -jnp.inf)
            m = jnp.max(s, axis=-1, keepdims=True)
            p = jnp.exp(s - m)
            # EUP reciprocal; loss-level parity with exact softmax (clamp+CE absorbs it).
            p = p * pl.reciprocal(jnp.sum(p, axis=-1, keepdims=True), approx=True)
            # TODO(synk): attention dropout is identity (eval-mode semantics).
            ctx = jnp.dot(p.astype(jnp.bfloat16), vh,
                          preferred_element_type=jnp.float32)             # (S, Dh)
            # per-head out-proj accumulate: sublane slice of wo, lane-dense result
            attn = attn + jnp.dot(ctx.astype(jnp.bfloat16), wo[sl, :],
                                  preferred_element_type=jnp.float32)     # (S, D)
        x = x + attn + bo_ref[l]                           # fused residual

        # ---- MLP sub-block ---------------------------------------------------
        h = _layernorm(x, ln2g_ref[l], ln2b_ref[l])
        hff = jnp.dot(h.astype(jnp.bfloat16), w1_ref[l],
                      preferred_element_type=jnp.float32) + b1_ref[l]     # (S, FF)
        hff = _gelu_tanh(hff)
        # TODO(synk): MLP dropout is identity (eval-mode semantics).
        x = x + jnp.dot(hff.astype(jnp.bfloat16), w2_ref[l],
                        preferred_element_type=jnp.float32) + b2_ref[l]   # residual

    # ---- final LN (once) + weight-tied LM head (emb untransposed, pre-cast bf16)
    h = _layernorm(x, lnfg_ref[...], lnfb_ref[...])
    logits = lax.dot_general(h.astype(jnp.bfloat16), emb_ref[...],
                             (((1,), (1,)), ((), ())),
                             preferred_element_type=jnp.float32)          # (S, V)
    o_ref[0] = logits.astype(o_ref.dtype)


# ------------------------------ Pallas wrapper ---------------------------------
def fused_transformer(x, params, emb_bf16):
    """x: (B, S, D) f32 -> logits (B, S, V) f32, whole forward in one pallas_call."""
    B, S, D = x.shape
    V = emb_bf16.shape[0]

    def full(arr):
        # full-array block, grid-invariant (stays VMEM-resident across grid steps)
        return pl.BlockSpec(arr.shape, lambda b, _nd=arr.ndim: (0,) * _nd)

    args = (x,
            params["ln1_g"], params["ln1_b"], params["wqkv"], params["bqkv"],
            params["wo"], params["bo"],
            params["ln2_g"], params["ln2_b"], params["w1"], params["b1"],
            params["w2"], params["b2"],
            params["lnf_g"], params["lnf_b"], emb_bf16)

    in_specs = [pl.BlockSpec((1, S, D), lambda b: (b, 0, 0))] + [full(a) for a in args[1:]]

    return pl.pallas_call(
        _fused_forward_kernel,
        out_shape=jax.ShapeDtypeStruct((B, S, V), jnp.float32),
        grid=(B,),
        in_specs=in_specs,
        out_specs=pl.BlockSpec((1, S, V), lambda b: (b, 0, 0)),
        compiler_params=pltpu.CompilerParams(
            dimension_semantics=("parallel",)),        # v7x: both TCs stay busy
    )(*args)


# ------------------------------ parameters -----------------------------------
def init_params(key):
    std = 0.02
    std_scaled = 0.02 * 2.0 * NUM_LAYERS ** (-0.5)   # SCALE'd linear2 of each MLP

    def normal(k, shape, s, dtype=jnp.float32):
        return (s * jax.random.normal(k, shape, dtype=jnp.float32)).astype(dtype)

    keys = jax.random.split(key, 2 + NUM_LAYERS)
    # tied: token embedding == output_layer weight (vocab, emb); f32 master copy
    emb = normal(keys[0], (VOCAB, EMB), std)
    pos = normal(keys[1], (MAX_SEQ, EMB), std)

    wqkv, wo, w1, w2 = [], [], [], []
    for li in range(NUM_LAYERS):
        lk = jax.random.split(keys[2 + li], 4)
        # fused QKV weight (EMB, 3*EMB); all matmul weights stored bf16
        wqkv.append(normal(lk[0], (EMB, 3 * EMB), std, jnp.bfloat16))
        wo.append(normal(lk[1], (EMB, EMB), std, jnp.bfloat16))
        w1.append(normal(lk[2], (EMB, FF), std, jnp.bfloat16))
        w2.append(normal(lk[3], (FF, EMB), std_scaled, jnp.bfloat16))

    L = NUM_LAYERS
    return {
        "emb": emb,
        "pos_emb": pos,
        # per-layer params stacked along a leading L axis (static unroll in-kernel)
        "ln1_g": jnp.ones((L, 1, EMB), jnp.float32),
        "ln1_b": jnp.zeros((L, 1, EMB), jnp.float32),
        "wqkv": jnp.stack(wqkv),
        "bqkv": jnp.zeros((L, 1, 3 * EMB), jnp.float32),
        "wo": jnp.stack(wo),
        "bo": jnp.zeros((L, 1, EMB), jnp.float32),
        "ln2_g": jnp.ones((L, 1, EMB), jnp.float32),
        "ln2_b": jnp.zeros((L, 1, EMB), jnp.float32),
        "w1": jnp.stack(w1),
        "b1": jnp.zeros((L, 1, FF), jnp.float32),
        "w2": jnp.stack(w2),
        "b2": jnp.zeros((L, 1, EMB), jnp.float32),
        "lnf_g": jnp.ones((1, EMB), jnp.float32),
        "lnf_b": jnp.zeros((1, EMB), jnp.float32),
    }


# ------------------------------- forward --------------------------------------
def transformer_forward(params, tokens, targets=None):
    B, S = tokens.shape
    assert S <= MAX_SEQ

    tok_emb = jnp.take(params["emb"], tokens, axis=0)      # (B, S, D) — glue gather
    x = tok_emb + params["pos_emb"][:S][None, :, :]        # (B, S, D) f32

    emb_bf16 = params["emb"].astype(jnp.bfloat16)          # pre-cast once for the LM head
    logits = fused_transformer(x, params, emb_bf16)        # (B, S, V) — single pallas_call

    loss = None
    if targets is not None:
        # matches the reference: torch.clamp(logits, -20, 20) before cross_entropy
        lg = jnp.clip(logits.reshape(-1, VOCAB), -20.0, 20.0)
        logp = jax.nn.log_softmax(lg, axis=-1)
        nll = -jnp.take_along_axis(logp, targets.reshape(-1, 1), axis=-1)[:, 0]
        loss = jnp.mean(nll)
    return logits, loss


# -------------------------------- main -----------------------------------------
if __name__ == "__main__":
    key = jax.random.PRNGKey(0)
    pkey, tkey, ykey = jax.random.split(key, 3)

    params = init_params(pkey)

    B, S = 2, 16
    tokens = jax.random.randint(tkey, (B, S), 0, VOCAB, dtype=jnp.int32)
    targets = jax.random.randint(ykey, (B, S), 0, VOCAB, dtype=jnp.int32)

    fwd = jax.jit(transformer_forward)
    logits, loss = fwd(params, tokens, targets)
    jax.block_until_ready(logits)
    jax.block_until_ready(loss)

    assert logits.shape == (B, S, VOCAB)
    assert bool(jnp.isfinite(loss))
    print("KERNEL_OK")
</pallas_src>

<mosaic_0001>
module attributes {stable_mosaic.version = 11 : i64} {
  func.func @_fused_forward_kernel(%arg0: i32, %arg1: memref<1x16x128xf32, #tpu.memory_space<vmem>>, %arg2: memref<2x1x128xf32, #tpu.memory_space<vmem>>, %arg3: memref<2x1x128xf32, #tpu.memory_space<vmem>>, %arg4: memref<2x128x384xbf16, #tpu.memory_space<vmem>>, %arg5: memref<2x1x384xf32, #tpu.memory_space<vmem>>, %arg6: memref<2x128x128xbf16, #tpu.memory_space<vmem>>, %arg7: memref<2x1x128xf32, #tpu.memory_space<vmem>>, %arg8: memref<2x1x128xf32, #tpu.memory_space<vmem>>, %arg9: memref<2x1x128xf32, #tpu.memory_space<vmem>>, %arg10: memref<2x128x256xbf16, #tpu.memory_space<vmem>>, %arg11: memref<2x1x256xf32, #tpu.memory_space<vmem>>, %arg12: memref<2x256x128xbf16, #tpu.memory_space<vmem>>, %arg13: memref<2x1x128xf32, #tpu.memory_space<vmem>>, %arg14: memref<1x128xf32, #tpu.memory_space<vmem>>, %arg15: memref<1x128xf32, #tpu.memory_space<vmem>>, %arg16: memref<512x128xbf16, #tpu.memory_space<vmem>>, %arg17: memref<1x16x512xf32, #tpu.memory_space<vmem>>) attributes {dimension_semantics = [#tpu.dimension_semantics<parallel>], iteration_bounds = array<i64: 2>, scalar_prefetch = 0 : i64, scratch_operands = 0 : i64, tpu.core_type = #tpu.core_type<tc>, window_params = [{transform_indices = @transform_0, window_bounds = array<i64: 1, 16, 128>}, {pipeline_mode = #tpu.pipeline_mode<synchronous>, transform_indices = @transform_1, window_bounds = array<i64: 2, 1, 128>}, {pipeline_mode = #tpu.pipeline_mode<synchronous>, transform_indices = @transform_2, window_bounds = array<i64: 2, 1, 128>}, {pipeline_mode = #tpu.pipeline_mode<synchronous>, transform_indices = @transform_3, window_bounds = array<i64: 2, 128, 384>}, {pipeline_mode = #tpu.pipeline_mode<synchronous>, transform_indices = @transform_4, window_bounds = array<i64: 2, 1, 384>}, {pipeline_mode = #tpu.pipeline_mode<synchronous>, transform_indices = @transform_5, window_bounds = array<i64: 2, 128, 128>}, {pipeline_mode = #tpu.pipeline_mode<synchronous>, transform_indices = @transform_6, window_bounds = array<i64: 2, 1, 128>}, {pipeline_mode = #tpu.pipeline_mode<synchronous>, transform_indices = @transform_7, window_bounds = array<i64: 2, 1, 128>}, {pipeline_mode = #tpu.pipeline_mode<synchronous>, transform_indices = @transform_8, window_bounds = array<i64: 2, 1, 128>}, {pipeline_mode = #tpu.pipeline_mode<synchronous>, transform_indices = @transform_9, window_bounds = array<i64: 2, 128, 256>}, {pipeline_mode = #tpu.pipeline_mode<synchronous>, transform_indices = @transform_10, window_bounds = array<i64: 2, 1, 256>}, {pipeline_mode = #tpu.pipeline_mode<synchronous>, transform_indices = @transform_11, window_bounds = array<i64: 2, 256, 128>}, {pipeline_mode = #tpu.pipeline_mode<synchronous>, transform_indices = @transform_12, window_bounds = array<i64: 2, 1, 128>}, {pipeline_mode = #tpu.pipeline_mode<synchronous>, transform_indices = @transform_13, window_bounds = array<i64: 1, 128>}, {pipeline_mode = #tpu.pipeline_mode<synchronous>, transform_indices = @transform_14, window_bounds = array<i64: 1, 128>}, {pipeline_mode = #tpu.pipeline_mode<synchronous>, transform_indices = @transform_15, window_bounds = array<i64: 512, 128>}, {transform_indices = @transform_16, window_bounds = array<i64: 1, 16, 512>}]} {
    %c0 = arith.constant 0 : index
    %c0_0 = arith.constant 0 : index
    %c0_1 = arith.constant 0 : index
    %0 = vector.load %arg1[%c0, %c0_0, %c0_1] : memref<1x16x128xf32, #tpu.memory_space<vmem>>, vector<1x16x128xf32>
    %1 = vector.shape_cast %0 : vector<1x16x128xf32> to vector<16x128xf32>
    %2 = tpu.iota {dimensions = array<i32: 0>} : vector<16x16xi32>
    %3 = tpu.iota {dimensions = array<i32: 1>} : vector<16x16xi32>
    %4 = arith.cmpi sle, %3, %2 : vector<16x16xi32>
    %c0_2 = arith.constant 0 : index
    %c0_3 = arith.constant 0 : index
    %c0_4 = arith.constant 0 : index
    %5 = vector.load %arg4[%c0_2, %c0_3, %c0_4] : memref<2x128x384xbf16, #tpu.memory_space<vmem>>, vector<1x128x384xbf16>
    %6 = vector.shape_cast %5 : vector<1x128x384xbf16> to vector<128x384xbf16>
    %c0_5 = arith.constant 0 : index
    %c0_6 = arith.constant 0 : index
    %c0_7 = arith.constant 0 : index
    %7 = vector.load %arg6[%c0_5, %c0_6, %c0_7] : memref<2x128x128xbf16, #tpu.memory_space<vmem>>, vector<1x128x128xbf16>
    %8 = vector.shape_cast %7 : vector<1x128x128xbf16> to vector<128x128xbf16>
    %c0_8 = arith.constant 0 : index
    %c0_9 = arith.constant 0 : index
    %c0_10 = arith.constant 0 : index
    %9 = vector.load %arg2[%c0_8, %c0_9, %c0_10] : memref<2x1x128xf32, #tpu.memory_space<vmem>>, vector<1x1x128xf32>
    %10 = vector.shape_cast %9 : vector<1x1x128xf32> to vector<1x128xf32>
    %c0_11 = arith.constant 0 : index
    %c0_12 = arith.constant 0 : index
    %c0_13 = arith.constant 0 : index
    %11 = vector.load %arg3[%c0_11, %c0_12, %c0_13] : memref<2x1x128xf32, #tpu.memory_space<vmem>>, vector<1x1x128xf32>
    %12 = vector.shape_cast %11 : vector<1x1x128xf32> to vector<1x128xf32>
    %cst = arith.constant dense<0.000000e+00> : vector<16xf32>
    %13 = vector.multi_reduction <add>, %1, %cst [1] : vector<16x128xf32> to vector<16xf32>
    %14 = vector.shape_cast %13 : vector<16xf32> to vector<16x1xf32>
    %cst_14 = arith.constant 1.280000e+02 : f32
    %15 = vector.broadcast %cst_14 : f32 to vector<16x1xf32>
    %16 = arith.divf %14, %15 : vector<16x1xf32>
    %17 = vector.broadcast %16 : vector<16x1xf32> to vector<16x128xf32>
    %18 = arith.subf %1, %17 : vector<16x128xf32>
    %19 = arith.mulf %18, %18 : vector<16x128xf32>
    %cst_15 = arith.constant dense<0.000000e+00> : vector<16xf32>
    %20 = vector.multi_reduction <add>, %19, %cst_15 [1] : vector<16x128xf32> to vector<16xf32>
    %21 = vector.shape_cast %20 : vector<16xf32> to vector<16x1xf32>
    %cst_16 = arith.constant 1.280000e+02 : f32
    %22 = vector.broadcast %cst_16 : f32 to vector<16x1xf32>
    %23 = arith.divf %21, %22 : vector<16x1xf32>
    %24 = vector.broadcast %16 : vector<16x1xf32> to vector<16x128xf32>
    %25 = arith.subf %1, %24 : vector<16x128xf32>
    %cst_17 = arith.constant 9.99999974E-6 : f32
    %26 = vector.broadcast %cst_17 : f32 to vector<16x1xf32>
    %27 = arith.addf %23, %26 : vector<16x1xf32>
    %28 = math.rsqrt %27 : vector<16x1xf32>
    %29 = vector.broadcast %28 : vector<16x1xf32> to vector<16x128xf32>
    %30 = arith.mulf %25, %29 : vector<16x128xf32>
    %31 = vector.broadcast %10 : vector<1x128xf32> to vector<16x128xf32>
    %32 = arith.mulf %30, %31 : vector<16x128xf32>
    %33 = vector.broadcast %12 : vector<1x128xf32> to vector<16x128xf32>
    %34 = arith.addf %32, %33 : vector<16x128xf32>
    %35 = arith.truncf %34 : vector<16x128xf32> to vector<16x128xbf16>
    %cst_18 = arith.constant dense<0.000000e+00> : vector<16x384xf32>
    %36 = tpu.matmul %35, %6, %cst_18 {dimension_numbers = #tpu.dot_dimension_numbers<[1], [0], [0], [1], [0, 0, 1, 1], [], []>} : vector<16x128xbf16>, vector<128x384xbf16>, vector<16x384xf32> -> vector<16x384xf32>
    %c0_19 = arith.constant 0 : index
    %c0_20 = arith.constant 0 : index
    %c0_21 = arith.constant 0 : index
    %37 = vector.load %arg5[%c0_19, %c0_20, %c0_21] : memref<2x1x384xf32, #tpu.memory_space<vmem>>, vector<1x1x384xf32>
    %38 = vector.shape_cast %37 : vector<1x1x384xf32> to vector<1x384xf32>
    %39 = vector.broadcast %38 : vector<1x384xf32> to vector<16x384xf32>
    %40 = arith.addf %36, %39 : vector<16x384xf32>
    %41 = vector.extract_strided_slice %40 {offsets = [0, 0], sizes = [16, 128], strides = [1, 1]} : vector<16x384xf32> to vector<16x128xf32>
    %cst_22 = arith.constant 0.176776692 : f32
    %42 = vector.broadcast %cst_22 : f32 to vector<16x128xf32>
    %43 = arith.mulf %41, %42 : vector<16x128xf32>
    %44 = vector.extract_strided_slice %40 {offsets = [0, 128], sizes = [16, 128], strides = [1, 1]} : vector<16x384xf32> to vector<16x128xf32>
    %45 = vector.extract_strided_slice %40 {offsets = [0, 256], sizes = [16, 128], strides = [1, 1]} : vector<16x384xf32> to vector<16x128xf32>
    %cst_23 = arith.constant 0.000000e+00 : f32
    %46 = vector.broadcast %cst_23 : f32 to vector<16x128xf32>
    %47 = vector.extract_strided_slice %43 {offsets = [0, 0], sizes = [16, 32], strides = [1, 1]} : vector<16x128xf32> to vector<16x32xf32>
    %48 = arith.truncf %47 : vector<16x32xf32> to vector<16x32xbf16>
    %49 = vector.extract_strided_slice %44 {offsets = [0, 0], sizes = [16, 32], strides = [1, 1]} : vector<16x128xf32> to vector<16x32xf32>
    %50 = arith.truncf %49 : vector<16x32xf32> to vector<16x32xbf16>
    %51 = vector.extract_strided_slice %45 {offsets = [0, 0], sizes = [16, 32], strides = [1, 1]} : vector<16x128xf32> to vector<16x32xf32>
    %52 = arith.truncf %51 : vector<16x32xf32> to vector<16x32xbf16>
    %cst_24 = arith.constant dense<0.000000e+00> : vector<16x16xf32>
    %53 = tpu.matmul %48, %50, %cst_24 {dimension_numbers = #tpu.dot_dimension_numbers<[1], [1], [0], [0], [0, 0, 1, 0], [], []>} : vector<16x32xbf16>, vector<16x32xbf16>, vector<16x16xf32> -> vector<16x16xf32>
    %cst_25 = arith.constant 0xFF800000 : f32
    %54 = vector.broadcast %cst_25 : f32 to vector<16x16xf32>
    %55 = arith.select %4, %53, %54 : vector<16x16xi1>, vector<16x16xf32>
    %cst_26 = arith.constant dense<0xFF800000> : vector<16xf32>
    %56 = vector.multi_reduction <maximumf>, %55, %cst_26 [1] : vector<16x16xf32> to vector<16xf32>
    %57 = vector.shape_cast %56 : vector<16xf32> to vector<16x1xf32>
    %58 = vector.broadcast %57 : vector<16x1xf32> to vector<16x16xf32>
    %59 = arith.subf %55, %58 : vector<16x16xf32>
    %60 = math.exp %59 : vector<16x16xf32>
    %cst_27 = arith.constant dense<0.000000e+00> : vector<16xf32>
    %61 = vector.multi_reduction <add>, %60, %cst_27 [1] : vector<16x16xf32> to vector<16xf32>
    %62 = vector.shape_cast %61 : vector<16xf32> to vector<16x1xf32>
    %63 = tpu.reciprocal %62 {approx = true} : vector<16x1xf32> -> vector<16x1xf32>
    %64 = vector.broadcast %63 : vector<16x1xf32> to vector<16x16xf32>
    %65 = arith.mulf %60, %64 : vector<16x16xf32>
    %66 = arith.truncf %65 : vector<16x16xf32> to vector<16x16xbf16>
    %cst_28 = arith.constant dense<0.000000e+00> : vector<16x32xf32>
    %67 = tpu.matmul %66, %52, %cst_28 {dimension_numbers = #tpu.dot_dimension_numbers<[1], [0], [0], [1], [0, 0, 1, 1], [], []>} : vector<16x16xbf16>, vector<16x32xbf16>, vector<16x32xf32> -> vector<16x32xf32>
    %68 = arith.truncf %67 : vector<16x32xf32> to vector<16x32xbf16>
    %69 = vector.extract_strided_slice %8 {offsets = [0, 0], sizes = [32, 128], strides = [1, 1]} : vector<128x128xbf16> to vector<32x128xbf16>
    %cst_29 = arith.constant dense<0.000000e+00> : vector<16x128xf32>
    %70 = tpu.matmul %68, %69, %cst_29 {dimension_numbers = #tpu.dot_dimension_numbers<[1], [0], [0], [1], [0, 0, 1, 1], [], []>} : vector<16x32xbf16>, vector<32x128xbf16>, vector<16x128xf32> -> vector<16x128xf32>
    %71 = arith.addf %46, %70 : vector<16x128xf32>
    %72 = vector.extract_strided_slice %43 {offsets = [0, 32], sizes = [16, 32], strides = [1, 1]} : vector<16x128xf32> to vector<16x32xf32>
    %73 = arith.truncf %72 : vector<16x32xf32> to vector<16x32xbf16>
    %74 = vector.extract_strided_slice %44 {offsets = [0, 32], sizes = [16, 32], strides = [1, 1]} : vector<16x128xf32> to vector<16x32xf32>
    %75 = arith.truncf %74 : vector<16x32xf32> to vector<16x32xbf16>
    %76 = vector.extract_strided_slice %45 {offsets = [0, 32], sizes = [16, 32], strides = [1, 1]} : vector<16x128xf32> to vector<16x32xf32>
    %77 = arith.truncf %76 : vector<16x32xf32> to vector<16x32xbf16>
    %cst_30 = arith.constant dense<0.000000e+00> : vector<16x16xf32>
    %78 = tpu.matmul %73, %75, %cst_30 {dimension_numbers = #tpu.dot_dimension_numbers<[1], [1], [0], [0], [0, 0, 1, 0], [], []>} : vector<16x32xbf16>, vector<16x32xbf16>, vector<16x16xf32> -> vector<16x16xf32>
    %cst_31 = arith.constant 0xFF800000 : f32
    %79 = vector.broadcast %cst_31 : f32 to vector<16x16xf32>
    %80 = arith.select %4, %78, %79 : vector<16x16xi1>, vector<16x16xf32>
    %cst_32 = arith.constant dense<0xFF800000> : vector<16xf32>
    %81 = vector.multi_reduction <maximumf>, %80, %cst_32 [1] : vector<16x16xf32> to vector<16xf32>
    %82 = vector.shape_cast %81 : vector<16xf32> to vector<16x1xf32>
    %83 = vector.broadcast %82 : vector<16x1xf32> to vector<16x16xf32>
    %84 = arith.subf %80, %83 : vector<16x16xf32>
    %85 = math.exp %84 : vector<16x16xf32>
    %cst_33 = arith.constant dense<0.000000e+00> : vector<16xf32>
    %86 = vector.multi_reduction <add>, %85, %cst_33 [1] : vector<16x16xf32> to vector<16xf32>
    %87 = vector.shape_cast %86 : vector<16xf32> to vector<16x1xf32>
    %88 = tpu.reciprocal %87 {approx = true} : vector<16x1xf32> -> vector<16x1xf32>
    %89 = vector.broadcast %88 : vector<16x1xf32> to vector<16x16xf32>
    %90 = arith.mulf %85, %89 : vector<16x16xf32>
    %91 = arith.truncf %90 : vector<16x16xf32> to vector<16x16xbf16>
    %cst_34 = arith.constant dense<0.000000e+00> : vector<16x32xf32>
    %92 = tpu.matmul %91, %77, %cst_34 {dimension_numbers = #tpu.dot_dimension_numbers<[1], [0], [0], [1], [0, 0, 1, 1], [], []>} : vector<16x16xbf16>, vector<16x32xbf16>, vector<16x32xf32> -> vector<16x32xf32>
    %93 = arith.truncf %92 : vector<16x32xf32> to vector<16x32xbf16>
    %94 = vector.extract_strided_slice %8 {offsets = [32, 0], sizes = [32, 128], strides = [1, 1]} : vector<128x128xbf16> to vector<32x128xbf16>
    %cst_35 = arith.constant dense<0.000000e+00> : vector<16x128xf32>
    %95 = tpu.matmul %93, %94, %cst_35 {dimension_numbers = #tpu.dot_dimension_numbers<[1], [0], [0], [1], [0, 0, 1, 1], [], []>} : vector<16x32xbf16>, vector<32x128xbf16>, vector<16x128xf32> -> vector<16x128xf32>
    %96 = arith.addf %71, %95 : vector<16x128xf32>
    %97 = vector.extract_strided_slice %43 {offsets = [0, 64], sizes = [16, 32], strides = [1, 1]} : vector<16x128xf32> to vector<16x32xf32>
    %98 = arith.truncf %97 : vector<16x32xf32> to vector<16x32xbf16>
    %99 = vector.extract_strided_slice %44 {offsets = [0, 64], sizes = [16, 32], strides = [1, 1]} : vector<16x128xf32> to vector<16x32xf32>
    %100 = arith.truncf %99 : vector<16x32xf32> to vector<16x32xbf16>
    %101 = vector.extract_strided_slice %45 {offsets = [0, 64], sizes = [16, 32], strides = [1, 1]} : vector<16x128xf32> to vector<16x32xf32>
    %102 = arith.truncf %101 : vector<16x32xf32> to vector<16x32xbf16>
    %cst_36 = arith.constant dense<0.000000e+00> : vector<16x16xf32>
    %103 = tpu.matmul %98, %100, %cst_36 {dimension_numbers = #tpu.dot_dimension_numbers<[1], [1], [0], [0], [0, 0, 1, 0], [], []>} : vector<16x32xbf16>, vector<16x32xbf16>, vector<16x16xf32> -> vector<16x16xf32>
    %cst_37 = arith.constant 0xFF800000 : f32
    %104 = vector.broadcast %cst_37 : f32 to vector<16x16xf32>
    %105 = arith.select %4, %103, %104 : vector<16x16xi1>, vector<16x16xf32>
    %cst_38 = arith.constant dense<0xFF800000> : vector<16xf32>
    %106 = vector.multi_reduction <maximumf>, %105, %cst_38 [1] : vector<16x16xf32> to vector<16xf32>
    %107 = vector.shape_cast %106 : vector<16xf32> to vector<16x1xf32>
    %108 = vector.broadcast %107 : vector<16x1xf32> to vector<16x16xf32>
    %109 = arith.subf %105, %108 : vector<16x16xf32>
    %110 = math.exp %109 : vector<16x16xf32>
    %cst_39 = arith.constant dense<0.000000e+00> : vector<16xf32>
    %111 = vector.multi_reduction <add>, %110, %cst_39 [1] : vector<16x16xf32> to vector<16xf32>
    %112 = vector.shape_cast %111 : vector<16xf32> to vector<16x1xf32>
    %113 = tpu.reciprocal %112 {approx = true} : vector<16x1xf32> -> vector<16x1xf32>
    %114 = vector.broadcast %113 : vector<16x1xf32> to vector<16x16xf32>
    %115 = arith.mulf %110, %114 : vector<16x16xf32>
    %116 = arith.truncf %115 : vector<16x16xf32> to vector<16x16xbf16>
    %cst_40 = arith.constant dense<0.000000e+00> : vector<16x32xf32>
    %117 = tpu.matmul %116, %102, %cst_40 {dimension_numbers = #tpu.dot_dimension_numbers<[1], [0], [0], [1], [0, 0, 1, 1], [], []>} : vector<16x16xbf16>, vector<16x32xbf16>, vector<16x32xf32> -> vector<16x32xf32>
    %118 = arith.truncf %117 : vector<16x32xf32> to vector<16x32xbf16>
    %119 = vector.extract_strided_slice %8 {offsets = [64, 0], sizes = [32, 128], strides = [1, 1]} : vector<128x128xbf16> to vector<32x128xbf16>
    %cst_41 = arith.constant dense<0.000000e+00> : vector<16x128xf32>
    %120 = tpu.matmul %118, %119, %cst_41 {dimension_numbers = #tpu.dot_dimension_numbers<[1], [0], [0], [1], [0, 0, 1, 1], [], []>} : vector<16x32xbf16>, vector<32x128xbf16>, vector<16x128xf32> -> vector<16x128xf32>
    %121 = arith.addf %96, %120 : vector<16x128xf32>
    %122 = vector.extract_strided_slice %43 {offsets = [0, 96], sizes = [16, 32], strides = [1, 1]} : vector<16x128xf32> to vector<16x32xf32>
    %123 = arith.truncf %122 : vector<16x32xf32> to vector<16x32xbf16>
    %124 = vector.extract_strided_slice %44 {offsets = [0, 96], sizes = [16, 32], strides = [1, 1]} : vector<16x128xf32> to vector<16x32xf32>
    %125 = arith.truncf %124 : vector<16x32xf32> to vector<16x32xbf16>
    %126 = vector.extract_strided_slice %45 {offsets = [0, 96], sizes = [16, 32], strides = [1, 1]} : vector<16x128xf32> to vector<16x32xf32>
    %127 = arith.truncf %126 : vector<16x32xf32> to vector<16x32xbf16>
    %cst_42 = arith.constant dense<0.000000e+00> : vector<16x16xf32>
    %128 = tpu.matmul %123, %125, %cst_42 {dimension_numbers = #tpu.dot_dimension_numbers<[1], [1], [0], [0], [0, 0, 1, 0], [], []>} : vector<16x32xbf16>, vector<16x32xbf16>, vector<16x16xf32> -> vector<16x16xf32>
    %cst_43 = arith.constant 0xFF800000 : f32
    %129 = vector.broadcast %cst_43 : f32 to vector<16x16xf32>
    %130 = arith.select %4, %128, %129 : vector<16x16xi1>, vector<16x16xf32>
    %cst_44 = arith.constant dense<0xFF800000> : vector<16xf32>
    %131 = vector.multi_reduction <maximumf>, %130, %cst_44 [1] : vector<16x16xf32> to vector<16xf32>
    %132 = vector.shape_cast %131 : vector<16xf32> to vector<16x1xf32>
    %133 = vector.broadcast %132 : vector<16x1xf32> to vector<16x16xf32>
    %134 = arith.subf %130, %133 : vector<16x16xf32>
    %135 = math.exp %134 : vector<16x16xf32>
    %cst_45 = arith.constant dense<0.000000e+00> : vector<16xf32>
    %136 = vector.multi_reduction <add>, %135, %cst_45 [1] : vector<16x16xf32> to vector<16xf32>
    %137 = vector.shape_cast %136 : vector<16xf32> to vector<16x1xf32>
    %138 = tpu.reciprocal %137 {approx = true} : vector<16x1xf32> -> vector<16x1xf32>
    %139 = vector.broadcast %138 : vector<16x1xf32> to vector<16x16xf32>
    %140 = arith.mulf %135, %139 : vector<16x16xf32>
    %141 = arith.truncf %140 : vector<16x16xf32> to vector<16x16xbf16>
    %cst_46 = arith.constant dense<0.000000e+00> : vector<16x32xf32>
    %142 = tpu.matmul %141, %127, %cst_46 {dimension_numbers = #tpu.dot_dimension_numbers<[1], [0], [0], [1], [0, 0, 1, 1], [], []>} : vector<16x16xbf16>, vector<16x32xbf16>, vector<16x32xf32> -> vector<16x32xf32>
    %143 = arith.truncf %142 : vector<16x32xf32> to vector<16x32xbf16>
    %144 = vector.extract_strided_slice %8 {offsets = [96, 0], sizes = [32, 128], strides = [1, 1]} : vector<128x128xbf16> to vector<32x128xbf16>
    %cst_47 = arith.constant dense<0.000000e+00> : vector<16x128xf32>
    %145 = tpu.matmul %143, %144, %cst_47 {dimension_numbers = #tpu.dot_dimension_numbers<[1], [0], [0], [1], [0, 0, 1, 1], [], []>} : vector<16x32xbf16>, vector<32x128xbf16>, vector<16x128xf32> -> vector<16x128xf32>
    %146 = arith.addf %121, %145 : vector<16x128xf32>
    %147 = arith.addf %1, %146 : vector<16x128xf32>
    %c0_48 = arith.constant 0 : index
    %c0_49 = arith.constant 0 : index
    %c0_50 = arith.constant 0 : index
    %148 = vector.load %arg7[%c0_48, %c0_49, %c0_50] : memref<2x1x128xf32, #tpu.memory_space<vmem>>, vector<1x1x128xf32>
    %149 = vector.shape_cast %148 : vector<1x1x128xf32> to vector<1x128xf32>
    %150 = vector.broadcast %149 : vector<1x128xf32> to vector<16x128xf32>
    %151 = arith.addf %147, %150 : vector<16x128xf32>
    %c0_51 = arith.constant 0 : index
    %c0_52 = arith.constant 0 : index
    %c0_53 = arith.constant 0 : index
    %152 = vector.load %arg8[%c0_51, %c0_52, %c0_53] : memref<2x1x128xf32, #tpu.memory_space<vmem>>, vector<1x1x128xf32>
    %153 = vector.shape_cast %152 : vector<1x1x128xf32> to vector<1x128xf32>
    %c0_54 = arith.constant 0 : index
    %c0_55 = arith.constant 0 : index
    %c0_56 = arith.constant 0 : index
    %154 = vector.load %arg9[%c0_54, %c0_55, %c0_56] : memref<2x1x128xf32, #tpu.memory_space<vmem>>, vector<1x1x128xf32>
    %155 = vector.shape_cast %154 : vector<1x1x128xf32> to vector<1x128xf32>
    %cst_57 = arith.constant dense<0.000000e+00> : vector<16xf32>
    %156 = vector.multi_reduction <add>, %151, %cst_57 [1] : vector<16x128xf32> to vector<16xf32>
    %157 = vector.shape_cast %156 : vector<16xf32> to vector<16x1xf32>
    %cst_58 = arith.constant 1.280000e+02 : f32
    %158 = vector.broadcast %cst_58 : f32 to vector<16x1xf32>
    %159 = arith.divf %157, %158 : vector<16x1xf32>
    %160 = vector.broadcast %159 : vector<16x1xf32> to vector<16x128xf32>
    %161 = arith.subf %151, %160 : vector<16x128xf32>
    %162 = arith.mulf %161, %161 : vector<16x128xf32>
    %cst_59 = arith.constant dense<0.000000e+00> : vector<16xf32>
    %163 = vector.multi_reduction <add>, %162, %cst_59 [1] : vector<16x128xf32> to vector<16xf32>
    %164 = vector.shape_cast %163 : vector<16xf32> to vector<16x1xf32>
    %cst_60 = arith.constant 1.280000e+02 : f32
    %165 = vector.broadcast %cst_60 : f32 to vector<16x1xf32>
    %166 = arith.divf %164, %165 : vector<16x1xf32>
    %167 = vector.broadcast %159 : vector<16x1xf32> to vector<16x128xf32>
    %168 = arith.subf %151, %167 : vector<16x128xf32>
    %cst_61 = arith.constant 9.99999974E-6 : f32
    %169 = vector.broadcast %cst_61 : f32 to vector<16x1xf32>
    %170 = arith.addf %166, %169 : vector<16x1xf32>
    %171 = math.rsqrt %170 : vector<16x1xf32>
    %172 = vector.broadcast %171 : vector<16x1xf32> to vector<16x128xf32>
    %173 = arith.mulf %168, %172 : vector<16x128xf32>
    %174 = vector.broadcast %153 : vector<1x128xf32> to vector<16x128xf32>
    %175 = arith.mulf %173, %174 : vector<16x128xf32>
    %176 = vector.broadcast %155 : vector<1x128xf32> to vector<16x128xf32>
    %177 = arith.addf %175, %176 : vector<16x128xf32>
    %178 = arith.truncf %177 : vector<16x128xf32> to vector<16x128xbf16>
    %c0_62 = arith.constant 0 : index
    %c0_63 = arith.constant 0 : index
    %c0_64 = arith.constant 0 : index
    %179 = vector.load %arg10[%c0_62, %c0_63, %c0_64] : memref<2x128x256xbf16, #tpu.memory_space<vmem>>, vector<1x128x256xbf16>
    %180 = vector.shape_cast %179 : vector<1x128x256xbf16> to vector<128x256xbf16>
    %cst_65 = arith.constant dense<0.000000e+00> : vector<16x256xf32>
    %181 = tpu.matmul %178, %180, %cst_65 {dimension_numbers = #tpu.dot_dimension_numbers<[1], [0], [0], [1], [0, 0, 1, 1], [], []>} : vector<16x128xbf16>, vector<128x256xbf16>, vector<16x256xf32> -> vector<16x256xf32>
    %c0_66 = arith.constant 0 : index
    %c0_67 = arith.constant 0 : index
    %c0_68 = arith.constant 0 : index
    %182 = vector.load %arg11[%c0_66, %c0_67, %c0_68] : memref<2x1x256xf32, #tpu.memory_space<vmem>>, vector<1x1x256xf32>
    %183 = vector.shape_cast %182 : vector<1x1x256xf32> to vector<1x256xf32>
    %184 = vector.broadcast %183 : vector<1x256xf32> to vector<16x256xf32>
    %185 = arith.addf %181, %184 : vector<16x256xf32>
    %cst_69 = arith.constant 5.000000e-01 : f32
    %186 = vector.broadcast %cst_69 : f32 to vector<16x256xf32>
    %187 = arith.mulf %186, %185 : vector<16x256xf32>
    %cst_70 = arith.constant 4.471500e-02 : f32
    %188 = vector.broadcast %cst_70 : f32 to vector<16x256xf32>
    %189 = arith.mulf %188, %185 : vector<16x256xf32>
    %190 = arith.mulf %189, %185 : vector<16x256xf32>
    %191 = arith.mulf %190, %185 : vector<16x256xf32>
    %192 = arith.addf %185, %191 : vector<16x256xf32>
    %cst_71 = arith.constant 0.797884583 : f32
    %193 = vector.broadcast %cst_71 : f32 to vector<16x256xf32>
    %194 = arith.mulf %193, %192 : vector<16x256xf32>
    %195 = math.tanh %194 : vector<16x256xf32>
    %cst_72 = arith.constant 1.000000e+00 : f32
    %196 = vector.broadcast %cst_72 : f32 to vector<16x256xf32>
    %197 = arith.addf %196, %195 : vector<16x256xf32>
    %198 = arith.mulf %187, %197 : vector<16x256xf32>
    %199 = arith.truncf %198 : vector<16x256xf32> to vector<16x256xbf16>
    %c0_73 = arith.constant 0 : index
    %c0_74 = arith.constant 0 : index
    %c0_75 = arith.constant 0 : index
    %200 = vector.load %arg12[%c0_73, %c0_74, %c0_75] : memref<2x256x128xbf16, #tpu.memory_space<vmem>>, vector<1x256x128xbf16>
    %201 = vector.shape_cast %200 : vector<1x256x128xbf16> to vector<256x128xbf16>
    %cst_76 = arith.constant dense<0.000000e+00> : vector<16x128xf32>
    %202 = tpu.matmul %199, %201, %cst_76 {dimension_numbers = #tpu.dot_dimension_numbers<[1], [0], [0], [1], [0, 0, 1, 1], [], []>} : vector<16x256xbf16>, vector<256x128xbf16>, vector<16x128xf32> -> vector<16x128xf32>
    %203 = arith.addf %151, %202 : vector<16x128xf32>
    %c0_77 = arith.constant 0 : index
    %c0_78 = arith.constant 0 : index
    %c0_79 = arith.constant 0 : index
    %204 = vector.load %arg13[%c0_77, %c0_78, %c0_79] : memref<2x1x128xf32, #tpu.memory_space<vmem>>, vector<1x1x128xf32>
    %205 = vector.shape_cast %204 : vector<1x1x128xf32> to vector<1x128xf32>
    %206 = vector.broadcast %205 : vector<1x128xf32> to vector<16x128xf32>
    %207 = arith.addf %203, %206 : vector<16x128xf32>
    %c1 = arith.constant 1 : index
    %c0_80 = arith.constant 0 : index
    %c0_81 = arith.constant 0 : index
    %208 = vector.load %arg4[%c1, %c0_80, %c0_81] : memref<2x128x384xbf16, #tpu.memory_space<vmem>>, vector<1x128x384xbf16>
    %209 = vector.shape_cast %208 : vector<1x128x384xbf16> to vector<128x384xbf16>
    %c1_82 = arith.constant 1 : index
    %c0_83 = arith.constant 0 : index
    %c0_84 = arith.constant 0 : index
    %210 = vector.load %arg6[%c1_82, %c0_83, %c0_84] : memref<2x128x128xbf16, #tpu.memory_space<vmem>>, vector<1x128x128xbf16>
    %211 = vector.shape_cast %210 : vector<1x128x128xbf16> to vector<128x128xbf16>
    %c1_85 = arith.constant 1 : index
    %c0_86 = arith.constant 0 : index
    %c0_87 = arith.constant 0 : index
    %212 = vector.load %arg2[%c1_85, %c0_86, %c0_87] : memref<2x1x128xf32, #tpu.memory_space<vmem>>, vector<1x1x128xf32>
    %213 = vector.shape_cast %212 : vector<1x1x128xf32> to vector<1x128xf32>
    %c1_88 = arith.constant 1 : index
    %c0_89 = arith.constant 0 : index
    %c0_90 = arith.constant 0 : index
    %214 = vector.load %arg3[%c1_88, %c0_89, %c0_90] : memref<2x1x128xf32, #tpu.memory_space<vmem>>, vector<1x1x128xf32>
    %215 = vector.shape_cast %214 : vector<1x1x128xf32> to vector<1x128xf32>
    %cst_91 = arith.constant dense<0.000000e+00> : vector<16xf32>
    %216 = vector.multi_reduction <add>, %207, %cst_91 [1] : vector<16x128xf32> to vector<16xf32>
    %217 = vector.shape_cast %216 : vector<16xf32> to vector<16x1xf32>
    %cst_92 = arith.constant 1.280000e+02 : f32
    %218 = vector.broadcast %cst_92 : f32 to vector<16x1xf32>
    %219 = arith.divf %217, %218 : vector<16x1xf32>
    %220 = vector.broadcast %219 : vector<16x1xf32> to vector<16x128xf32>
    %221 = arith.subf %207, %220 : vector<16x128xf32>
    %222 = arith.mulf %221, %221 : vector<16x128xf32>
    %cst_93 = arith.constant dense<0.000000e+00> : vector<16xf32>
    %223 = vector.multi_reduction <add>, %222, %cst_93 [1] : vector<16x128xf32> to vector<16xf32>
    %224 = vector.shape_cast %223 : vector<16xf32> to vector<16x1xf32>
    %cst_94 = arith.constant 1.280000e+02 : f32
    %225 = vector.broadcast %cst_94 : f32 to vector<16x1xf32>
    %226 = arith.divf %224, %225 : vector<16x1xf32>
    %227 = vector.broadcast %219 : vector<16x1xf32> to vector<16x128xf32>
    %228 = arith.subf %207, %227 : vector<16x128xf32>
    %cst_95 = arith.constant 9.99999974E-6 : f32
    %229 = vector.broadcast %cst_95 : f32 to vector<16x1xf32>
    %230 = arith.addf %226, %229 : vector<16x1xf32>
    %231 = math.rsqrt %230 : vector<16x1xf32>
    %232 = vector.broadcast %231 : vector<16x1xf32> to vector<16x128xf32>
    %233 = arith.mulf %228, %232 : vector<16x128xf32>
    %234 = vector.broadcast %213 : vector<1x128xf32> to vector<16x128xf32>
    %235 = arith.mulf %233, %234 : vector<16x128xf32>
    %236 = vector.broadcast %215 : vector<1x128xf32> to vector<16x128xf32>
    %237 = arith.addf %235, %236 : vector<16x128xf32>
    %238 = arith.truncf %237 : vector<16x128xf32> to vector<16x128xbf16>
    %cst_96 = arith.constant dense<0.000000e+00> : vector<16x384xf32>
    %239 = tpu.matmul %238, %209, %cst_96 {dimension_numbers = #tpu.dot_dimension_numbers<[1], [0], [0], [1], [0, 0, 1, 1], [], []>} : vector<16x128xbf16>, vector<128x384xbf16>, vector<16x384xf32> -> vector<16x384xf32>
    %c1_97 = arith.constant 1 : index
    %c0_98 = arith.constant 0 : index
    %c0_99 = arith.constant 0 : index
    %240 = vector.load %arg5[%c1_97, %c0_98, %c0_99] : memref<2x1x384xf32, #tpu.memory_space<vmem>>, vector<1x1x384xf32>
    %241 = vector.shape_cast %240 : vector<1x1x384xf32> to vector<1x384xf32>
    %242 = vector.broadcast %241 : vector<1x384xf32> to vector<16x384xf32>
    %243 = arith.addf %239, %242 : vector<16x384xf32>
    %244 = vector.extract_strided_slice %243 {offsets = [0, 0], sizes = [16, 128], strides = [1, 1]} : vector<16x384xf32> to vector<16x128xf32>
    %cst_100 = arith.constant 0.176776692 : f32
    %245 = vector.broadcast %cst_100 : f32 to vector<16x128xf32>
    %246 = arith.mulf %244, %245 : vector<16x128xf32>
    %247 = vector.extract_strided_slice %243 {offsets = [0, 128], sizes = [16, 128], strides = [1, 1]} : vector<16x384xf32> to vector<16x128xf32>
    %248 = vector.extract_strided_slice %243 {offsets = [0, 256], sizes = [16, 128], strides = [1, 1]} : vector<16x384xf32> to vector<16x128xf32>
    %cst_101 = arith.constant 0.000000e+00 : f32
    %249 = vector.broadcast %cst_101 : f32 to vector<16x128xf32>
    %250 = vector.extract_strided_slice %246 {offsets = [0, 0], sizes = [16, 32], strides = [1, 1]} : vector<16x128xf32> to vector<16x32xf32>
    %251 = arith.truncf %250 : vector<16x32xf32> to vector<16x32xbf16>
    %252 = vector.extract_strided_slice %247 {offsets = [0, 0], sizes = [16, 32], strides = [1, 1]} : vector<16x128xf32> to vector<16x32xf32>
    %253 = arith.truncf %252 : vector<16x32xf32> to vector<16x32xbf16>
    %254 = vector.extract_strided_slice %248 {offsets = [0, 0], sizes = [16, 32], strides = [1, 1]} : vector<16x128xf32> to vector<16x32xf32>
    %255 = arith.truncf %254 : vector<16x32xf32> to vector<16x32xbf16>
    %cst_102 = arith.constant dense<0.000000e+00> : vector<16x16xf32>
    %256 = tpu.matmul %251, %253, %cst_102 {dimension_numbers = #tpu.dot_dimension_numbers<[1], [1], [0], [0], [0, 0, 1, 0], [], []>} : vector<16x32xbf16>, vector<16x32xbf16>, vector<16x16xf32> -> vector<16x16xf32>
    %cst_103 = arith.constant 0xFF800000 : f32
    %257 = vector.broadcast %cst_103 : f32 to vector<16x16xf32>
    %258 = arith.select %4, %256, %257 : vector<16x16xi1>, vector<16x16xf32>
    %cst_104 = arith.constant dense<0xFF800000> : vector<16xf32>
    %259 = vector.multi_reduction <maximumf>, %258, %cst_104 [1] : vector<16x16xf32> to vector<16xf32>
    %260 = vector.shape_cast %259 : vector<16xf32> to vector<16x1xf32>
    %261 = vector.broadcast %260 : vector<16x1xf32> to vector<16x16xf32>
    %262 = arith.subf %258, %261 : vector<16x16xf32>
    %263 = math.exp %262 : vector<16x16xf32>
    %cst_105 = arith.constant dense<0.000000e+00> : vector<16xf32>
    %264 = vector.multi_reduction <add>, %263, %cst_105 [1] : vector<16x16xf32> to vector<16xf32>
    %265 = vector.shape_cast %264 : vector<16xf32> to vector<16x1xf32>
    %266 = tpu.reciprocal %265 {approx = true} : vector<16x1xf32> -> vector<16x1xf32>
    %267 = vector.broadcast %266 : vector<16x1xf32> to vector<16x16xf32>
    %268 = arith.mulf %263, %267 : vector<16x16xf32>
    %269 = arith.truncf %268 : vector<16x16xf32> to vector<16x16xbf16>
    %cst_106 = arith.constant dense<0.000000e+00> : vector<16x32xf32>
    %270 = tpu.matmul %269, %255, %cst_106 {dimension_numbers = #tpu.dot_dimension_numbers<[1], [0], [0], [1], [0, 0, 1, 1], [], []>} : vector<16x16xbf16>, vector<16x32xbf16>, vector<16x32xf32> -> vector<16x32xf32>
    %271 = arith.truncf %270 : vector<16x32xf32> to vector<16x32xbf16>
    %272 = vector.extract_strided_slice %211 {offsets = [0, 0], sizes = [32, 128], strides = [1, 1]} : vector<128x128xbf16> to vector<32x128xbf16>
    %cst_107 = arith.constant dense<0.000000e+00> : vector<16x128xf32>
    %273 = tpu.matmul %271, %272, %cst_107 {dimension_numbers = #tpu.dot_dimension_numbers<[1], [0], [0], [1], [0, 0, 1, 1], [], []>} : vector<16x32xbf16>, vector<32x128xbf16>, vector<16x128xf32> -> vector<16x128xf32>
    %274 = arith.addf %249, %273 : vector<16x128xf32>
    %275 = vector.extract_strided_slice %246 {offsets = [0, 32], sizes = [16, 32], strides = [1, 1]} : vector<16x128xf32> to vector<16x32xf32>
    %276 = arith.truncf %275 : vector<16x32xf32> to vector<16x32xbf16>
    %277 = vector.extract_strided_slice %247 {offsets = [0, 32], sizes = [16, 32], strides = [1, 1]} : vector<16x128xf32> to vector<16x32xf32>
    %278 = arith.truncf %277 : vector<16x32xf32> to vector<16x32xbf16>
    %279 = vector.extract_strided_slice %248 {offsets = [0, 32], sizes = [16, 32], strides = [1, 1]} : vector<16x128xf32> to vector<16x32xf32>
    %280 = arith.truncf %279 : vector<16x32xf32> to vector<16x32xbf16>
    %cst_108 = arith.constant dense<0.000000e+00> : vector<16x16xf32>
    %281 = tpu.matmul %276, %278, %cst_108 {dimension_numbers = #tpu.dot_dimension_numbers<[1], [1], [0], [0], [0, 0, 1, 0], [], []>} : vector<16x32xbf16>, vector<16x32xbf16>, vector<16x16xf32> -> vector<16x16xf32>
    %cst_109 = arith.constant 0xFF800000 : f32
    %282 = vector.broadcast %cst_109 : f32 to vector<16x16xf32>
    %283 = arith.select %4, %281, %282 : vector<16x16xi1>, vector<16x16xf32>
    %cst_110 = arith.constant dense<0xFF800000> : vector<16xf32>
    %284 = vector.multi_reduction <maximumf>, %283, %cst_110 [1] : vector<16x16xf32> to vector<16xf32>
    %285 = vector.shape_cast %284 : vector<16xf32> to vector<16x1xf32>
    %286 = vector.broadcast %285 : vector<16x1xf32> to vector<16x16xf32>
    %287 = arith.subf %283, %286 : vector<16x16xf32>
    %288 = math.exp %287 : vector<16x16xf32>
    %cst_111 = arith.constant dense<0.000000e+00> : vector<16xf32>
    %289 = vector.multi_reduction <add>, %288, %cst_111 [1] : vector<16x16xf32> to vector<16xf32>
    %290 = vector.shape_cast %289 : vector<16xf32> to vector<16x1xf32>
    %291 = tpu.reciprocal %290 {approx = true} : vector<16x1xf32> -> vector<16x1xf32>
    %292 = vector.broadcast %291 : vector<16x1xf32> to vector<16x16xf32>
    %293 = arith.mulf %288, %292 : vector<16x16xf32>
    %294 = arith.truncf %293 : vector<16x16xf32> to vector<16x16xbf16>
    %cst_112 = arith.constant dense<0.000000e+00> : vector<16x32xf32>
    %295 = tpu.matmul %294, %280, %cst_112 {dimension_numbers = #tpu.dot_dimension_numbers<[1], [0], [0], [1], [0, 0, 1, 1], [], []>} : vector<16x16xbf16>, vector<16x32xbf16>, vector<16x32xf32> -> vector<16x32xf32>
    %296 = arith.truncf %295 : vector<16x32xf32> to vector<16x32xbf16>
    %297 = vector.extract_strided_slice %211 {offsets = [32, 0], sizes = [32, 128], strides = [1, 1]} : vector<128x128xbf16> to vector<32x128xbf16>
    %cst_113 = arith.constant dense<0.000000e+00> : vector<16x128xf32>
    %298 = tpu.matmul %296, %297, %cst_113 {dimension_numbers = #tpu.dot_dimension_numbers<[1], [0], [0], [1], [0, 0, 1, 1], [], []>} : vector<16x32xbf16>, vector<32x128xbf16>, vector<16x128xf32> -> vector<16x128xf32>
    %299 = arith.addf %274, %298 : vector<16x128xf32>
    %300 = vector.extract_strided_slice %246 {offsets = [0, 64], sizes = [16, 32], strides = [1, 1]} : vector<16x128xf32> to vector<16x32xf32>
    %301 = arith.truncf %300 : vector<16x32xf32> to vector<16x32xbf16>
    %302 = vector.extract_strided_slice %247 {offsets = [0, 64], sizes = [16, 32], strides = [1, 1]} : vector<16x128xf32> to vector<16x32xf32>
    %303 = arith.truncf %302 : vector<16x32xf32> to vector<16x32xbf16>
    %304 = vector.extract_strided_slice %248 {offsets = [0, 64], sizes = [16, 32], strides = [1, 1]} : vector<16x128xf32> to vector<16x32xf32>
    %305 = arith.truncf %304 : vector<16x32xf32> to vector<16x32xbf16>
    %cst_114 = arith.constant dense<0.000000e+00> : vector<16x16xf32>
    %306 = tpu.matmul %301, %303, %cst_114 {dimension_numbers = #tpu.dot_dimension_numbers<[1], [1], [0], [0], [0, 0, 1, 0], [], []>} : vector<16x32xbf16>, vector<16x32xbf16>, vector<16x16xf32> -> vector<16x16xf32>
    %cst_115 = arith.constant 0xFF800000 : f32
    %307 = vector.broadcast %cst_115 : f32 to vector<16x16xf32>
    %308 = arith.select %4, %306, %307 : vector<16x16xi1>, vector<16x16xf32>
    %cst_116 = arith.constant dense<0xFF800000> : vector<16xf32>
    %309 = vector.multi_reduction <maximumf>, %308, %cst_116 [1] : vector<16x16xf32> to vector<16xf32>
    %310 = vector.shape_cast %309 : vector<16xf32> to vector<16x1xf32>
    %311 = vector.broadcast %310 : vector<16x1xf32> to vector<16x16xf32>
    %312 = arith.subf %308, %311 : vector<16x16xf32>
    %313 = math.exp %312 : vector<16x16xf32>
    %cst_117 = arith.constant dense<0.000000e+00> : vector<16xf32>
    %314 = vector.multi_reduction <add>, %313, %cst_117 [1] : vector<16x16xf32> to vector<16xf32>
    %315 = vector.shape_cast %314 : vector<16xf32> to vector<16x1xf32>
    %316 = tpu.reciprocal %315 {approx = true} : vector<16x1xf32> -> vector<16x1xf32>
    %317 = vector.broadcast %316 : vector<16x1xf32> to vector<16x16xf32>
    %318 = arith.mulf %313, %317 : vector<16x16xf32>
    %319 = arith.truncf %318 : vector<16x16xf32> to vector<16x16xbf16>
    %cst_118 = arith.constant dense<0.000000e+00> : vector<16x32xf32>
    %320 = tpu.matmul %319, %305, %cst_118 {dimension_numbers = #tpu.dot_dimension_numbers<[1], [0], [0], [1], [0, 0, 1, 1], [], []>} : vector<16x16xbf16>, vector<16x32xbf16>, vector<16x32xf32> -> vector<16x32xf32>
    %321 = arith.truncf %320 : vector<16x32xf32> to vector<16x32xbf16>
    %322 = vector.extract_strided_slice %211 {offsets = [64, 0], sizes = [32, 128], strides = [1, 1]} : vector<128x128xbf16> to vector<32x128xbf16>
    %cst_119 = arith.constant dense<0.000000e+00> : vector<16x128xf32>
    %323 = tpu.matmul %321, %322, %cst_119 {dimension_numbers = #tpu.dot_dimension_numbers<[1], [0], [0], [1], [0, 0, 1, 1], [], []>} : vector<16x32xbf16>, vector<32x128xbf16>, vector<16x128xf32> -> vector<16x128xf32>
    %324 = arith.addf %299, %323 : vector<16x128xf32>
    %325 = vector.extract_strided_slice %246 {offsets = [0, 96], sizes = [16, 32], strides = [1, 1]} : vector<16x128xf32> to vector<16x32xf32>
    %326 = arith.truncf %325 : vector<16x32xf32> to vector<16x32xbf16>
    %327 = vector.extract_strided_slice %247 {offsets = [0, 96], sizes = [16, 32], strides = [1, 1]} : vector<16x128xf32> to vector<16x32xf32>
    %328 = arith.truncf %327 : vector<16x32xf32> to vector<16x32xbf16>
    %329 = vector.extract_strided_slice %248 {offsets = [0, 96], sizes = [16, 32], strides = [1, 1]} : vector<16x128xf32> to vector<16x32xf32>
    %330 = arith.truncf %329 : vector<16x32xf32> to vector<16x32xbf16>
    %cst_120 = arith.constant dense<0.000000e+00> : vector<16x16xf32>
    %331 = tpu.matmul %326, %328, %cst_120 {dimension_numbers = #tpu.dot_dimension_numbers<[1], [1], [0], [0], [0, 0, 1, 0], [], []>} : vector<16x32xbf16>, vector<16x32xbf16>, vector<16x16xf32> -> vector<16x16xf32>
    %cst_121 = arith.constant 0xFF800000 : f32
    %332 = vector.broadcast %cst_121 : f32 to vector<16x16xf32>
    %333 = arith.select %4, %331, %332 : vector<16x16xi1>, vector<16x16xf32>
    %cst_122 = arith.constant dense<0xFF800000> : vector<16xf32>
    %334 = vector.multi_reduction <maximumf>, %333, %cst_122 [1] : vector<16x16xf32> to vector<16xf32>
    %335 = vector.shape_cast %334 : vector<16xf32> to vector<16x1xf32>
    %336 = vector.broadcast %335 : vector<16x1xf32> to vector<16x16xf32>
    %337 = arith.subf %333, %336 : vector<16x16xf32>
    %338 = math.exp %337 : vector<16x16xf32>
    %cst_123 = arith.constant dense<0.000000e+00> : vector<16xf32>
    %339 = vector.multi_reduction <add>, %338, %cst_123 [1] : vector<16x16xf32> to vector<16xf32>
    %340 = vector.shape_cast %339 : vector<16xf32> to vector<16x1xf32>
    %341 = tpu.reciprocal %340 {approx = true} : vector<16x1xf32> -> vector<16x1xf32>
    %342 = vector.broadcast %341 : vector<16x1xf32> to vector<16x16xf32>
    %343 = arith.mulf %338, %342 : vector<16x16xf32>
    %344 = arith.truncf %343 : vector<16x16xf32> to vector<16x16xbf16>
    %cst_124 = arith.constant dense<0.000000e+00> : vector<16x32xf32>
    %345 = tpu.matmul %344, %330, %cst_124 {dimension_numbers = #tpu.dot_dimension_numbers<[1], [0], [0], [1], [0, 0, 1, 1], [], []>} : vector<16x16xbf16>, vector<16x32xbf16>, vector<16x32xf32> -> vector<16x32xf32>
    %346 = arith.truncf %345 : vector<16x32xf32> to vector<16x32xbf16>
    %347 = vector.extract_strided_slice %211 {offsets = [96, 0], sizes = [32, 128], strides = [1, 1]} : vector<128x128xbf16> to vector<32x128xbf16>
    %cst_125 = arith.constant dense<0.000000e+00> : vector<16x128xf32>
    %348 = tpu.matmul %346, %347, %cst_125 {dimension_numbers = #tpu.dot_dimension_numbers<[1], [0], [0], [1], [0, 0, 1, 1], [], []>} : vector<16x32xbf16>, vector<32x128xbf16>, vector<16x128xf32> -> vector<16x128xf32>
    %349 = arith.addf %324, %348 : vector<16x128xf32>
    %350 = arith.addf %207, %349 : vector<16x128xf32>
    %c1_126 = arith.constant 1 : index
    %c0_127 = arith.constant 0 : index
    %c0_128 = arith.constant 0 : index
    %351 = vector.load %arg7[%c1_126, %c0_127, %c0_128] : memref<2x1x128xf32, #tpu.memory_space<vmem>>, vector<1x1x128xf32>
    %352 = vector.shape_cast %351 : vector<1x1x128xf32> to vector<1x128xf32>
    %353 = vector.broadcast %352 : vector<1x128xf32> to vector<16x128xf32>
    %354 = arith.addf %350, %353 : vector<16x128xf32>
    %c1_129 = arith.constant 1 : index
    %c0_130 = arith.constant 0 : index
    %c0_131 = arith.constant 0 : index
    %355 = vector.load %arg8[%c1_129, %c0_130, %c0_131] : memref<2x1x128xf32, #tpu.memory_space<vmem>>, vector<1x1x128xf32>
    %356 = vector.shape_cast %355 : vector<1x1x128xf32> to vector<1x128xf32>
    %c1_132 = arith.constant 1 : index
    %c0_133 = arith.constant 0 : index
    %c0_134 = arith.constant 0 : index
    %357 = vector.load %arg9[%c1_132, %c0_133, %c0_134] : memref<2x1x128xf32, #tpu.memory_space<vmem>>, vector<1x1x128xf32>
    %358 = vector.shape_cast %357 : vector<1x1x128xf32> to vector<1x128xf32>
    %cst_135 = arith.constant dense<0.000000e+00> : vector<16xf32>
    %359 = vector.multi_reduction <add>, %354, %cst_135 [1] : vector<16x128xf32> to vector<16xf32>
    %360 = vector.shape_cast %359 : vector<16xf32> to vector<16x1xf32>
    %cst_136 = arith.constant 1.280000e+02 : f32
    %361 = vector.broadcast %cst_136 : f32 to vector<16x1xf32>
    %362 = arith.divf %360, %361 : vector<16x1xf32>
    %363 = vector.broadcast %362 : vector<16x1xf32> to vector<16x128xf32>
    %364 = arith.subf %354, %363 : vector<16x128xf32>
    %365 = arith.mulf %364, %364 : vector<16x128xf32>
    %cst_137 = arith.constant dense<0.000000e+00> : vector<16xf32>
    %366 = vector.multi_reduction <add>, %365, %cst_137 [1] : vector<16x128xf32> to vector<16xf32>
    %367 = vector.shape_cast %366 : vector<16xf32> to vector<16x1xf32>
    %cst_138 = arith.constant 1.280000e+02 : f32
    %368 = vector.broadcast %cst_138 : f32 to vector<16x1xf32>
    %369 = arith.divf %367, %368 : vector<16x1xf32>
    %370 = vector.broadcast %362 : vector<16x1xf32> to vector<16x128xf32>
    %371 = arith.subf %354, %370 : vector<16x128xf32>
    %cst_139 = arith.constant 9.99999974E-6 : f32
    %372 = vector.broadcast %cst_139 : f32 to vector<16x1xf32>
    %373 = arith.addf %369, %372 : vector<16x1xf32>
    %374 = math.rsqrt %373 : vector<16x1xf32>
    %375 = vector.broadcast %374 : vector<16x1xf32> to vector<16x128xf32>
    %376 = arith.mulf %371, %375 : vector<16x128xf32>
    %377 = vector.broadcast %356 : vector<1x128xf32> to vector<16x128xf32>
    %378 = arith.mulf %376, %377 : vector<16x128xf32>
    %379 = vector.broadcast %358 : vector<1x128xf32> to vector<16x128xf32>
    %380 = arith.addf %378, %379 : vector<16x128xf32>
    %381 = arith.truncf %380 : vector<16x128xf32> to vector<16x128xbf16>
    %c1_140 = arith.constant 1 : index
    %c0_141 = arith.constant 0 : index
    %c0_142 = arith.constant 0 : index
    %382 = vector.load %arg10[%c1_140, %c0_141, %c0_142] : memref<2x128x256xbf16, #tpu.memory_space<vmem>>, vector<1x128x256xbf16>
    %383 = vector.shape_cast %382 : vector<1x128x256xbf16> to vector<128x256xbf16>
    %cst_143 = arith.constant dense<0.000000e+00> : vector<16x256xf32>
    %384 = tpu.matmul %381, %383, %cst_143 {dimension_numbers = #tpu.dot_dimension_numbers<[1], [0], [0], [1], [0, 0, 1, 1], [], []>} : vector<16x128xbf16>, vector<128x256xbf16>, vector<16x256xf32> -> vector<16x256xf32>
    %c1_144 = arith.constant 1 : index
    %c0_145 = arith.constant 0 : index
    %c0_146 = arith.constant 0 : index
    %385 = vector.load %arg11[%c1_144, %c0_145, %c0_146] : memref<2x1x256xf32, #tpu.memory_space<vmem>>, vector<1x1x256xf32>
    %386 = vector.shape_cast %385 : vector<1x1x256xf32> to vector<1x256xf32>
    %387 = vector.broadcast %386 : vector<1x256xf32> to vector<16x256xf32>
    %388 = arith.addf %384, %387 : vector<16x256xf32>
    %cst_147 = arith.constant 5.000000e-01 : f32
    %389 = vector.broadcast %cst_147 : f32 to vector<16x256xf32>
    %390 = arith.mulf %389, %388 : vector<16x256xf32>
    %cst_148 = arith.constant 4.471500e-02 : f32
    %391 = vector.broadcast %cst_148 : f32 to vector<16x256xf32>
    %392 = arith.mulf %391, %388 : vector<16x256xf32>
    %393 = arith.mulf %392, %388 : vector<16x256xf32>
    %394 = arith.mulf %393, %388 : vector<16x256xf32>
    %395 = arith.addf %388, %394 : vector<16x256xf32>
    %cst_149 = arith.constant 0.797884583 : f32
    %396 = vector.broadcast %cst_149 : f32 to vector<16x256xf32>
    %397 = arith.mulf %396, %395 : vector<16x256xf32>
    %398 = math.tanh %397 : vector<16x256xf32>
    %cst_150 = arith.constant 1.000000e+00 : f32
    %399 = vector.broadcast %cst_150 : f32 to vector<16x256xf32>
    %400 = arith.addf %399, %398 : vector<16x256xf32>
    %401 = arith.mulf %390, %400 : vector<16x256xf32>
    %402 = arith.truncf %401 : vector<16x256xf32> to vector<16x256xbf16>
    %c1_151 = arith.constant 1 : index
    %c0_152 = arith.constant 0 : index
    %c0_153 = arith.constant 0 : index
    %403 = vector.load %arg12[%c1_151, %c0_152, %c0_153] : memref<2x256x128xbf16, #tpu.memory_space<vmem>>, vector<1x256x128xbf16>
    %404 = vector.shape_cast %403 : vector<1x256x128xbf16> to vector<256x128xbf16>
    %cst_154 = arith.constant dense<0.000000e+00> : vector<16x128xf32>
    %405 = tpu.matmul %402, %404, %cst_154 {dimension_numbers = #tpu.dot_dimension_numbers<[1], [0], [0], [1], [0, 0, 1, 1], [], []>} : vector<16x256xbf16>, vector<256x128xbf16>, vector<16x128xf32> -> vector<16x128xf32>
    %406 = arith.addf %354, %405 : vector<16x128xf32>
    %c1_155 = arith.constant 1 : index
    %c0_156 = arith.constant 0 : index
    %c0_157 = arith.constant 0 : index
    %407 = vector.load %arg13[%c1_155, %c0_156, %c0_157] : memref<2x1x128xf32, #tpu.memory_space<vmem>>, vector<1x1x128xf32>
    %408 = vector.shape_cast %407 : vector<1x1x128xf32> to vector<1x128xf32>
    %409 = vector.broadcast %408 : vector<1x128xf32> to vector<16x128xf32>
    %410 = arith.addf %406, %409 : vector<16x128xf32>
    %c0_158 = arith.constant 0 : index
    %c0_159 = arith.constant 0 : index
    %411 = vector.load %arg14[%c0_158, %c0_159] : memref<1x128xf32, #tpu.memory_space<vmem>>, vector<1x128xf32>
    %c0_160 = arith.constant 0 : index
    %c0_161 = arith.constant 0 : index
    %412 = vector.load %arg15[%c0_160, %c0_161] : memref<1x128xf32, #tpu.memory_space<vmem>>, vector<1x128xf32>
    %cst_162 = arith.constant dense<0.000000e+00> : vector<16xf32>
    %413 = vector.multi_reduction <add>, %410, %cst_162 [1] : vector<16x128xf32> to vector<16xf32>
    %414 = vector.shape_cast %413 : vector<16xf32> to vector<16x1xf32>
    %cst_163 = arith.constant 1.280000e+02 : f32
    %415 = vector.broadcast %cst_163 : f32 to vector<16x1xf32>
    %416 = arith.divf %414, %415 : vector<16x1xf32>
    %417 = vector.broadcast %416 : vector<16x1xf32> to vector<16x128xf32>
    %418 = arith.subf %410, %417 : vector<16x128xf32>
    %419 = arith.mulf %418, %418 : vector<16x128xf32>
    %cst_164 = arith.constant dense<0.000000e+00> : vector<16xf32>
    %420 = vector.multi_reduction <add>, %419, %cst_164 [1] : vector<16x128xf32> to vector<16xf32>
    %421 = vector.shape_cast %420 : vector<16xf32> to vector<16x1xf32>
    %cst_165 = arith.constant 1.280000e+02 : f32
    %422 = vector.broadcast %cst_165 : f32 to vector<16x1xf32>
    %423 = arith.divf %421, %422 : vector<16x1xf32>
    %424 = vector.broadcast %416 : vector<16x1xf32> to vector<16x128xf32>
    %425 = arith.subf %410, %424 : vector<16x128xf32>
    %cst_166 = arith.constant 9.99999974E-6 : f32
    %426 = vector.broadcast %cst_166 : f32 to vector<16x1xf32>
    %427 = arith.addf %423, %426 : vector<16x1xf32>
    %428 = math.rsqrt %427 : vector<16x1xf32>
    %429 = vector.broadcast %428 : vector<16x1xf32> to vector<16x128xf32>
    %430 = arith.mulf %425, %429 : vector<16x128xf32>
    %431 = vector.broadcast %411 : vector<1x128xf32> to vector<16x128xf32>
    %432 = arith.mulf %430, %431 : vector<16x128xf32>
    %433 = vector.broadcast %412 : vector<1x128xf32> to vector<16x128xf32>
    %434 = arith.addf %432, %433 : vector<16x128xf32>
    %435 = arith.truncf %434 : vector<16x128xf32> to vector<16x128xbf16>
    %c0_167 = arith.constant 0 : index
    %c0_168 = arith.constant 0 : index
    %436 = vector.load %arg16[%c0_167, %c0_168] : memref<512x128xbf16, #tpu.memory_space<vmem>>, vector<512x128xbf16>
    %cst_169 = arith.constant dense<0.000000e+00> : vector<16x512xf32>
    %437 = tpu.matmul %435, %436, %cst_169 {dimension_numbers = #tpu.dot_dimension_numbers<[1], [1], [0], [0], [0, 0, 1, 0], [], []>} : vector<16x128xbf16>, vector<512x128xbf16>, vector<16x512xf32> -> vector<16x512xf32>
    %c0_170 = arith.constant 0 : index
    %c0_171 = arith.constant 0 : index
    %c0_172 = arith.constant 0 : index
    %438 = vector.load %arg17[%c0_170, %c0_171, %c0_172] : memref<1x16x512xf32, #tpu.memory_space<vmem>>, vector<1x16x512xf32>
    %439 = vector.shape_cast %438 : vector<1x16x512xf32> to vector<16x512xf32>
    %440 = vector.shape_cast %437 : vector<16x512xf32> to vector<1x16x512xf32>
    tpu.vector_store %arg17[%c0_170, %c0_171, %c0_172], %440 {strides = array<i32>} : memref<1x16x512xf32, #tpu.memory_space<vmem>>, vector<1x16x512xf32>,
    return
  }
  func.func @transform_0(%arg0: i32) -> (i32, i32, i32) {
    %c0_i32 = arith.constant 0 : i32
    %c0_i32_0 = arith.constant 0 : i32
    %c0_i32_1 = arith.constant 0 : i32
    return %arg0, %c0_i32, %c0_i32_0 : i32, i32, i32
  }
  func.func @transform_1(%arg0: i32) -> (i32, i32, i32) {
    %c0_i32 = arith.constant 0 : i32
    %c0_i32_0 = arith.constant 0 : i32
    %c0_i32_1 = arith.constant 0 : i32
    %c0_i32_2 = arith.constant 0 : i32
    return %c0_i32, %c0_i32_0, %c0_i32_1 : i32, i32, i32
  }
  func.func @transform_2(%arg0: i32) -> (i32, i32, i32) {
    %c0_i32 = arith.constant 0 : i32
    %c0_i32_0 = arith.constant 0 : i32
    %c0_i32_1 = arith.constant 0 : i32
    %c0_i32_2 = arith.constant 0 : i32
    return %c0_i32, %c0_i32_0, %c0_i32_1 : i32, i32, i32
  }
  func.func @transform_3(%arg0: i32) -> (i32, i32, i32) {
    %c0_i32 = arith.constant 0 : i32
    %c0_i32_0 = arith.constant 0 : i32
    %c0_i32_1 = arith.constant 0 : i32
    %c0_i32_2 = arith.constant 0 : i32
    return %c0_i32, %c0_i32_0, %c0_i32_1 : i32, i32, i32
  }
  func.func @transform_4(%arg0: i32) -> (i32, i32, i32) {
    %c0_i32 = arith.constant 0 : i32
    %c0_i32_0 = arith.constant 0 : i32
    %c0_i32_1 = arith.constant 0 : i32
    %c0_i32_2 = arith.constant 0 : i32
    return %c0_i32, %c0_i32_0, %c0_i32_1 : i32, i32, i32
  }
  func.func @transform_5(%arg0: i32) -> (i32, i32, i32) {
    %c0_i32 = arith.constant 0 : i32
    %c0_i32_0 = arith.constant 0 : i32
    %c0_i32_1 = arith.constant 0 : i32
    %c0_i32_2 = arith.constant 0 : i32
    return %c0_i32, %c0_i32_0, %c0_i32_1 : i32, i32, i32
  }
  func.func @transform_6(%arg0: i32) -> (i32, i32, i32) {
    %c0_i32 = arith.constant 0 : i32
    %c0_i32_0 = arith.constant 0 : i32
    %c0_i32_1 = arith.constant 0 : i32
    %c0_i32_2 = arith.constant 0 : i32
    return %c0_i32, %c0_i32_0, %c0_i32_1 : i32, i32, i32
  }
  func.func @transform_7(%arg0: i32) -> (i32, i32, i32) {
    %c0_i32 = arith.constant 0 : i32
    %c0_i32_0 = arith.constant 0 : i32
    %c0_i32_1 = arith.constant 0 : i32
    %c0_i32_2 = arith.constant 0 : i32
    return %c0_i32, %c0_i32_0, %c0_i32_1 : i32, i32, i32
  }
  func.func @transform_8(%arg0: i32) -> (i32, i32, i32) {
    %c0_i32 = arith.constant 0 : i32
    %c0_i32_0 = arith.constant 0 : i32
    %c0_i32_1 = arith.constant 0 : i32
    %c0_i32_2 = arith.constant 0 : i32
    return %c0_i32, %c0_i32_0, %c0_i32_1 : i32, i32, i32
  }
  func.func @transform_9(%arg0: i32) -> (i32, i32, i32) {
    %c0_i32 = arith.constant 0 : i32
    %c0_i32_0 = arith.constant 0 : i32
    %c0_i32_1 = arith.constant 0 : i32
    %c0_i32_2 = arith.constant 0 : i32
    return %c0_i32, %c0_i32_0, %c0_i32_1 : i32, i32, i32
  }
  func.func @transform_10(%arg0: i32) -> (i32, i32, i32) {
    %c0_i32 = arith.constant 0 : i32
    %c0_i32_0 = arith.constant 0 : i32
    %c0_i32_1 = arith.constant 0 : i32
    %c0_i32_2 = arith.constant 0 : i32
    return %c0_i32, %c0_i32_0, %c0_i32_1 : i32, i32, i32
  }
  func.func @transform_11(%arg0: i32) -> (i32, i32, i32) {
    %c0_i32 = arith.constant 0 : i32
    %c0_i32_0 = arith.constant 0 : i32
    %c0_i32_1 = arith.constant 0 : i32
    %c0_i32_2 = arith.constant 0 : i32
    return %c0_i32, %c0_i32_0, %c0_i32_1 : i32, i32, i32
  }
  func.func @transform_12(%arg0: i32) -> (i32, i32, i32) {
    %c0_i32 = arith.constant 0 : i32
    %c0_i32_0 = arith.constant 0 : i32
    %c0_i32_1 = arith.constant 0 : i32
    %c0_i32_2 = arith.constant 0 : i32
    return %c0_i32, %c0_i32_0, %c0_i32_1 : i32, i32, i32
  }
  func.func @transform_13(%arg0: i32) -> (i32, i32) {
    %c0_i32 = arith.constant 0 : i32
    %c0_i32_0 = arith.constant 0 : i32
    %c0_i32_1 = arith.constant 0 : i32
    return %c0_i32, %c0_i32_0 : i32, i32
  }
  func.func @transform_14(%arg0: i32) -> (i32, i32) {
    %c0_i32 = arith.constant 0 : i32
    %c0_i32_0 = arith.constant 0 : i32
    %c0_i32_1 = arith.constant 0 : i32
    return %c0_i32, %c0_i32_0 : i32, i32
  }
  func.func @transform_15(%arg0: i32) -> (i32, i32) {
    %c0_i32 = arith.constant 0 : i32
    %c0_i32_0 = arith.constant 0 : i32
    %c0_i32_1 = arith.constant 0 : i32
    return %c0_i32, %c0_i32_0 : i32, i32
  }
  func.func @transform_16(%arg0: i32) -> (i32, i32, i32) {
    %c0_i32 = arith.constant 0 : i32
    %c0_i32_0 = arith.constant 0 : i32
    %c0_i32_1 = arith.constant 0 : i32
    return %arg0, %c0_i32, %c0_i32_0 : i32, i32, i32
  }
}

</mosaic_0001>

<llo_original>
// kernel: transformer_forward.1
$region0: #{transformer_forward.1}
  #allocation0 [shape = 'u32[]', space=smem, size = 0x4, offset = 0x4, fixed_abs, tag = 'smem constant byte address 0x4 - core index']
  #allocation1 [shape = 'u32[144,128]{1,0:T(1,128)}', space=vmem, size = 0x12000, scoped, tag = 'internal scratch']
  %s0 = inlined_call_operand.vmem [shape: f32[2,16,128], index: 0, kind: input, shape index: {}]
  %s1 = inlined_call_operand.vmem [shape: f32[2,1,128], index: 1, kind: input, shape index: {}]
  %s2 = inlined_call_operand.vmem [shape: f32[2,1,128], index: 2, kind: input, shape index: {}]
  %s3 = inlined_call_operand.vmem [shape: bf16[2,128,384], index: 3, kind: input, shape index: {}]
  %s4 = inlined_call_operand.vmem [shape: f32[2,1,384], index: 4, kind: input, shape index: {}]
  %s5 = inlined_call_operand.hbm [shape: bf16[2,128,128], index: 5, kind: input, shape index: {}]
  %s6 = inlined_call_operand.vmem [shape: f32[2,1,128], index: 6, kind: input, shape index: {}]
  %s7 = inlined_call_operand.vmem [shape: f32[2,1,128], index: 7, kind: input, shape index: {}]
  %s8 = inlined_call_operand.vmem [shape: f32[2,1,128], index: 8, kind: input, shape index: {}]
  %s9 = inlined_call_operand.vmem [shape: bf16[2,128,256], index: 9, kind: input, shape index: {}]
  %s10 = inlined_call_operand.vmem [shape: f32[2,1,256], index: 10, kind: input, shape index: {}]
  %s11 = inlined_call_operand.hbm [shape: bf16[2,256,128], index: 11, kind: input, shape index: {}]
  %s12 = inlined_call_operand.vmem [shape: f32[2,1,128], index: 12, kind: input, shape index: {}]
  %s13 = inlined_call_operand.vmem [shape: f32[1,128], index: 13, kind: input, shape index: {}]
  %s14 = inlined_call_operand.vmem [shape: f32[1,128], index: 14, kind: input, shape index: {}]
  %s15 = inlined_call_operand.vmem [shape: bf16[512,128], index: 15, kind: input, shape index: {}]
  %s16 = inlined_call_operand.vmem [shape: f32[2,16,512], index: 16, kind: output, shape index: {}]
  %s17 = sld [smem:[#allocation0]]
  $region105: #{transformer_forward.1} parent=0
    _
  %s19 = ssub.s32 1, %s17
  %s20 = scalar_select 0, %s19, %s17
  $region1: #{transformer_forward.1} parent=0
    #allocation2 [shape = 'u8[65536]{0}', space=vmem, size = 0x10000, scoped, tag = 'input window, operand 5, single buffered']
    #allocation3 [shape = 's32[2]{0}', space=sflag, size = 0x8, scoped, tag = 'scoped memory for transformer_forward.1']
    #allocation4 [shape = 'u8[131072]{0}', space=vmem, size = 0x20000, scoped, tag = 'input window, operand 11, single buffered']
    #allocation5 [shape = 's32[1]{0}', space=sflag, size = 0x4, scoped, tag = 'scoped memory for transformer_forward.1']
    %21 = vsyncpa [#allocation3], 0
    %22 = vsyncpa [#allocation5], 0
    loop: start=0, step=1, limit=4
    $region2: #{transformer_forward.1} parent=1 // loop_pre_header
      _
    $region3: #{transformer_forward.1} parent=1 // loop_header
      %s24 = sphi 0, %s28
      %p25 = scmp.ge.s32.totalorder %s24, 4
      %s34 = sphi 0, %s36
      %s37 = sphi 0, %s34
      %s38 = sphi 0, %s37
      %s54 = sphi 0, %s38
      %s58 = sphi 0, %s58
      %s60 = sphi 0, %s58
      %s61 = sphi 0, %s60
      %s75 = sphi 0, %s61
      %s79 = sphi 0, %s79
      %s81 = sphi 0, %s79
      %s82 = sphi 0, %s81
      %s96 = sphi 0, %s82
      %s100 = sphi 0, %s100
      %s102 = sphi 0, %s100
      %s103 = sphi 0, %s102
      %s117 = sphi 0, %s103
      %s121 = sphi 0, %s121
      %s123 = sphi 0, %s121
      %s124 = sphi 0, %s123
      %s138 = sphi 0, %s124
      %s142 = sphi 0, %s142
      %s144 = sphi 0, %s142
      %s145 = sphi 0, %s144
      %s159 = sphi 0, %s145
      %s163 = sphi 0, %s163
      %s165 = sphi 0, %s163
      %s166 = sphi 0, %s165
      %s180 = sphi 0, %s166
      %s184 = sphi 0, %s184
      %s186 = sphi 0, %s184
      %s187 = sphi 0, %s186
      %s201 = sphi 0, %s187
      %s205 = sphi 0, %s205
      %s207 = sphi 0, %s205
      %s208 = sphi 0, %s207
      %s222 = sphi 0, %s208
      %s226 = sphi 0, %s226
      %s228 = sphi 0, %s226
      %s229 = sphi 0, %s228
      %s243 = sphi 0, %s229
      %s247 = sphi 0, %s247
      %s249 = sphi 0, %s247
      %s250 = sphi 0, %s249
      %s264 = sphi 0, %s250
      %s268 = sphi 0, %s268
      %s270 = sphi 0, %s268
      %s271 = sphi 0, %s270
      %s285 = sphi 0, %s271
      %s289 = sphi 0, %s289
      %s291 = sphi 0, %s289
      %s292 = sphi 0, %s291
      %s306 = sphi 0, %s292
      %s310 = sphi 0, %s310
      %s312 = sphi 0, %s310
      %s313 = sphi 0, %s312
      %s327 = sphi 0, %s313
      %s331 = sphi 0, %s331
      %s333 = sphi 0, %s331
      %s334 = sphi 0, %s333
      %s348 = sphi 0, %s334
      %s352 = sphi 0, %s352
      %s354 = sphi 0, %s352
      %s355 = sphi 0, %s354
      %s369 = sphi 0, %s355
      %s375 = sphi 0, %s377
      %s378 = sphi 0, %s375
      %s379 = sphi 0, %s378
      %s395 = sphi 0, %s379
    $region4: #{transformer_forward.1} parent=1 // loop_header_branch
      %27 = sbr.rel (%p25) target = $region8
    $region5: #{transformer_forward.1} parent=1 // loop_body
      %s29 = ssub.s32 %s24, 1
      %s30 = ssub.s32 %s24, 2
      %s31 = sadd.s32 %s24, 1
      %s32 = ssub.s32 %s24, %s31
      %p33 = scmp.eq.s32.totalorder %s32, 0
      %s35 = sadd.s32 %s34, 1
      %s36 = scalar_select %p33, %s34, %s35
      %p39 = pneg %p33
      %p40 = scmp.eq.s32.totalorder %s24, 1
      %p41 = por %p39, %p40
      %p42 = scmp.ne.s32.totalorder %s34, %s37
      %p43 = scmp.eq.s32.totalorder %s24, 0
      %p44 = por %p42, %p43
      %p45 = scmp.ne.s32.totalorder %s34, %s37
      %p46 = scmp.eq.s32.totalorder %s29, 1
      %p47 = por %p45, %p46
      %p48 = scmp.ne.s32.totalorder %s37, %s38
      %p49 = scmp.eq.s32.totalorder %s29, 0
      %p50 = por %p48, %p49
      %p51 = scmp.ne.s32.totalorder %s37, %s38
      %p52 = scmp.eq.s32.totalorder %s30, 1
      %p53 = por %p51, %p52
      %p55 = scmp.ne.s32.totalorder %s38, %s54
      %p56 = scmp.eq.s32.totalorder %s30, 0
      %p57 = por %p55, %p56
      %s59 = sadd.s32 %s58, 1
      %p62 = scmp.eq.s32.totalorder %s24, 1
      %p63 = scmp.ne.s32.totalorder %s58, %s60
      %p64 = scmp.eq.s32.totalorder %s24, 0
      %p65 = por %p63, %p64
      %p66 = scmp.ne.s32.totalorder %s58, %s60
      %p67 = scmp.eq.s32.totalorder %s29, 1
      %p68 = por %p66, %p67
      %p69 = scmp.ne.s32.totalorder %s60, %s61
      %p70 = scmp.eq.s32.totalorder %s29, 0
      %p71 = por %p69, %p70
      %p72 = scmp.ne.s32.totalorder %s60, %s61
      %p73 = scmp.eq.s32.totalorder %s30, 1
      %p74 = por %p72, %p73
      %p76 = scmp.ne.s32.totalorder %s61, %s75
      %p77 = scmp.eq.s32.totalorder %s30, 0
      %p78 = por %p76, %p77
      %s80 = sadd.s32 %s79, 1
      %p83 = scmp.eq.s32.totalorder %s24, 1
      %p84 = scmp.ne.s32.totalorder %s79, %s81
      %p85 = scmp.eq.s32.totalorder %s24, 0
      %p86 = por %p84, %p85
      %p87 = scmp.ne.s32.totalorder %s79, %s81
      %p88 = scmp.eq.s32.totalorder %s29, 1
      %p89 = por %p87, %p88
      %p90 = scmp.ne.s32.totalorder %s81, %s82
      %p91 = scmp.eq.s32.totalorder %s29, 0
      %p92 = por %p90, %p91
      %p93 = scmp.ne.s32.totalorder %s81, %s82
      %p94 = scmp.eq.s32.totalorder %s30, 1
      %p95 = por %p93, %p94
      %p97 = scmp.ne.s32.totalorder %s82, %s96
      %p98 = scmp.eq.s32.totalorder %s30, 0
      %p99 = por %p97, %p98
      %s101 = sadd.s32 %s100, 1
      %p104 = scmp.eq.s32.totalorder %s24, 1
      %p105 = scmp.ne.s32.totalorder %s100, %s102
      %p106 = scmp.eq.s32.totalorder %s24, 0
      %p107 = por %p105, %p106
      %p108 = scmp.ne.s32.totalorder %s100, %s102
      %p109 = scmp.eq.s32.totalorder %s29, 1
      %p110 = por %p108, %p109
      %p111 = scmp.ne.s32.totalorder %s102, %s103
      %p112 = scmp.eq.s32.totalorder %s29, 0
      %p113 = por %p111, %p112
      %p114 = scmp.ne.s32.totalorder %s102, %s103
      %p115 = scmp.eq.s32.totalorder %s30, 1
      %p116 = por %p114, %p115
      %p118 = scmp.ne.s32.totalorder %s103, %s117
      %p119 = scmp.eq.s32.totalorder %s30, 0
      %p120 = por %p118, %p119
      %s122 = sadd.s32 %s121, 1
      %p125 = scmp.eq.s32.totalorder %s24, 1
      %p126 = scmp.ne.s32.totalorder %s121, %s123
      %p127 = scmp.eq.s32.totalorder %s24, 0
      %p128 = por %p126, %p127
      %p129 = scmp.ne.s32.totalorder %s121, %s123
      %p130 = scmp.eq.s32.totalorder %s29, 1
      %p131 = por %p129, %p130
      %p132 = scmp.ne.s32.totalorder %s123, %s124
      %p133 = scmp.eq.s32.totalorder %s29, 0
      %p134 = por %p132, %p133
      %p135 = scmp.ne.s32.totalorder %s123, %s124
      %p136 = scmp.eq.s32.totalorder %s30, 1
      %p137 = por %p135, %p136
      %p139 = scmp.ne.s32.totalorder %s124, %s138
      %p140 = scmp.eq.s32.totalorder %s30, 0
      %p141 = por %p139, %p140
      %s143 = sadd.s32 %s142, 1
      %p146 = scmp.eq.s32.totalorder %s24, 1
      %p147 = scmp.ne.s32.totalorder %s142, %s144
      %p148 = scmp.eq.s32.totalorder %s24, 0
      %p149 = por %p147, %p148
      %p150 = scmp.ne.s32.totalorder %s142, %s144
      %p151 = scmp.eq.s32.totalorder %s29, 1
      %p152 = por %p150, %p151
      %p153 = scmp.ne.s32.totalorder %s144, %s145
      %p154 = scmp.eq.s32.totalorder %s29, 0
      %p155 = por %p153, %p154
      %p156 = scmp.ne.s32.totalorder %s144, %s145
      %p157 = scmp.eq.s32.totalorder %s30, 1
      %p158 = por %p156, %p157
      %p160 = scmp.ne.s32.totalorder %s145, %s159
      %p161 = scmp.eq.s32.totalorder %s30, 0
      %p162 = por %p160, %p161
      %s164 = sadd.s32 %s163, 1
      %p167 = scmp.eq.s32.totalorder %s24, 1
      %p168 = scmp.ne.s32.totalorder %s163, %s165
      %p169 = scmp.eq.s32.totalorder %s24, 0
      %p170 = por %p168, %p169
      %p171 = scmp.ne.s32.totalorder %s163, %s165
      %p172 = scmp.eq.s32.totalorder %s29, 1
      %p173 = por %p171, %p172
      %p174 = scmp.ne.s32.totalorder %s165, %s166
      %p175 = scmp.eq.s32.totalorder %s29, 0
      %p176 = por %p174, %p175
      %p177 = scmp.ne.s32.totalorder %s165, %s166
      %p178 = scmp.eq.s32.totalorder %s30, 1
      %p179 = por %p177, %p178
      %p181 = scmp.ne.s32.totalorder %s166, %s180
      %p182 = scmp.eq.s32.totalorder %s30, 0
      %p183 = por %p181, %p182
      %s185 = sadd.s32 %s184, 1
      %p188 = scmp.eq.s32.totalorder %s24, 1
      %p189 = scmp.ne.s32.totalorder %s184, %s186
      %p190 = scmp.eq.s32.totalorder %s24, 0
      %p191 = por %p189, %p190
      %p192 = scmp.ne.s32.totalorder %s184, %s186
      %p193 = scmp.eq.s32.totalorder %s29, 1
      %p194 = por %p192, %p193
      %p195 = scmp.ne.s32.totalorder %s186, %s187
      %p196 = scmp.eq.s32.totalorder %s29, 0
      %p197 = por %p195, %p196
      %p198 = scmp.ne.s32.totalorder %s186, %s187
      %p199 = scmp.eq.s32.totalorder %s30, 1
      %p200 = por %p198, %p199
      %p202 = scmp.ne.s32.totalorder %s187, %s201
      %p203 = scmp.eq.s32.totalorder %s30, 0
      %p204 = por %p202, %p203
      %s206 = sadd.s32 %s205, 1
      %p209 = scmp.eq.s32.totalorder %s24, 1
      %p210 = scmp.ne.s32.totalorder %s205, %s207
      %p211 = scmp.eq.s32.totalorder %s24, 0
      %p212 = por %p210, %p211
      %p213 = scmp.ne.s32.totalorder %s205, %s207
      %p214 = scmp.eq.s32.totalorder %s29, 1
      %p215 = por %p213, %p214
      %p216 = scmp.ne.s32.totalorder %s207, %s208
      %p217 = scmp.eq.s32.totalorder %s29, 0
      %p218 = por %p216, %p217
      %p219 = scmp.ne.s32.totalorder %s207, %s208
      %p220 = scmp.eq.s32.totalorder %s30, 1
      %p221 = por %p219, %p220
      %p223 = scmp.ne.s32.totalorder %s208, %s222
      %p224 = scmp.eq.s32.totalorder %s30, 0
      %p225 = por %p223, %p224
      %s227 = sadd.s32 %s226, 1
      %p230 = scmp.eq.s32.totalorder %s24, 1
      %p231 = scmp.ne.s32.totalorder %s226, %s228
      %p232 = scmp.eq.s32.totalorder %s24, 0
      %p233 = por %p231, %p232
      %p234 = scmp.ne.s32.totalorder %s226, %s228
      %p235 = scmp.eq.s32.totalorder %s29, 1
      %p236 = por %p234, %p235
      %p237 = scmp.ne.s32.totalorder %s228, %s229
      %p238 = scmp.eq.s32.totalorder %s29, 0
      %p239 = por %p237, %p238
      %p240 = scmp.ne.s32.totalorder %s228, %s229
      %p241 = scmp.eq.s32.totalorder %s30, 1
      %p242 = por %p240, %p241
      %p244 = scmp.ne.s32.totalorder %s229, %s243
      %p245 = scmp.eq.s32.totalorder %s30, 0
      %p246 = por %p244, %p245
      %s248 = sadd.s32 %s247, 1
      %p251 = scmp.eq.s32.totalorder %s24, 1
      %p252 = scmp.ne.s32.totalorder %s247, %s249
      %p253 = scmp.eq.s32.totalorder %s24, 0
      %p254 = por %p252, %p253
      %p255 = scmp.ne.s32.totalorder %s247, %s249
      %p256 = scmp.eq.s32.totalorder %s29, 1
      %p257 = por %p255, %p256
      %p258 = scmp.ne.s32.totalorder %s249, %s250
      %p259 = scmp.eq.s32.totalorder %s29, 0
      %p260 = por %p258, %p259
      %p261 = scmp.ne.s32.totalorder %s249, %s250
      %p262 = scmp.eq.s32.totalorder %s30, 1
      %p263 = por %p261, %p262
      %p265 = scmp.ne.s32.totalorder %s250, %s264
      %p266 = scmp.eq.s32.totalorder %s30, 0
      %p267 = por %p265, %p266
      %s269 = sadd.s32 %s268, 1
      %p272 = scmp.eq.s32.totalorder %s24, 1
      %p273 = scmp.ne.s32.totalorder %s268, %s270
      %p274 = scmp.eq.s32.totalorder %s24, 0
      %p275 = por %p273, %p274
      %p276 = scmp.ne.s32.totalorder %s268, %s270
      %p277 = scmp.eq.s32.totalorder %s29, 1
      %p278 = por %p276, %p277
      %p279 = scmp.ne.s32.totalorder %s270, %s271
      %p280 = scmp.eq.s32.totalorder %s29, 0
      %p281 = por %p279, %p280
      %p282 = scmp.ne.s32.totalorder %s270, %s271
      %p283 = scmp.eq.s32.totalorder %s30, 1
      %p284 = por %p282, %p283
      %p286 = scmp.ne.s32.totalorder %s271, %s285
      %p287 = scmp.eq.s32.totalorder %s30, 0
      %p288 = por %p286, %p287
      %s290 = sadd.s32 %s289, 1
      %p293 = scmp.eq.s32.totalorder %s24, 1
      %p294 = scmp.ne.s32.totalorder %s289, %s291
      %p295 = scmp.eq.s32.totalorder %s24, 0
      %p296 = por %p294, %p295
      %p297 = scmp.ne.s32.totalorder %s289, %s291
      %p298 = scmp.eq.s32.totalorder %s29, 1
      %p299 = por %p297, %p298
      %p300 = scmp.ne.s32.totalorder %s291, %s292
      %p301 = scmp.eq.s32.totalorder %s29, 0
      %p302 = por %p300, %p301
      %p303 = scmp.ne.s32.totalorder %s291, %s292
      %p304 = scmp.eq.s32.totalorder %s30, 1
      %p305 = por %p303, %p304
      %p307 = scmp.ne.s32.totalorder %s292, %s306
      %p308 = scmp.eq.s32.totalorder %s30, 0
      %p309 = por %p307, %p308
      %s311 = sadd.s32 %s310, 1
      %p314 = scmp.eq.s32.totalorder %s24, 1
      %p315 = scmp.ne.s32.totalorder %s310, %s312
      %p316 = scmp.eq.s32.totalorder %s24, 0
      %p317 = por %p315, %p316
      %p318 = scmp.ne.s32.totalorder %s310, %s312
      %p319 = scmp.eq.s32.totalorder %s29, 1
      %p320 = por %p318, %p319
      %p321 = scmp.ne.s32.totalorder %s312, %s313
      %p322 = scmp.eq.s32.totalorder %s29, 0
      %p323 = por %p321, %p322
      %p324 = scmp.ne.s32.totalorder %s312, %s313
      %p325 = scmp.eq.s32.totalorder %s30, 1
      %p326 = por %p324, %p325
      %p328 = scmp.ne.s32.totalorder %s313, %s327
      %p329 = scmp.eq.s32.totalorder %s30, 0
      %p330 = por %p328, %p329
      %s332 = sadd.s32 %s331, 1
      %p335 = scmp.eq.s32.totalorder %s24, 1
      %p336 = scmp.ne.s32.totalorder %s331, %s333
      %p337 = scmp.eq.s32.totalorder %s24, 0
      %p338 = por %p336, %p337
      %p339 = scmp.ne.s32.totalorder %s331, %s333
      %p340 = scmp.eq.s32.totalorder %s29, 1
      %p341 = por %p339, %p340
      %p342 = scmp.ne.s32.totalorder %s333, %s334
      %p343 = scmp.eq.s32.totalorder %s29, 0
      %p344 = por %p342, %p343
      %p345 = scmp.ne.s32.totalorder %s333, %s334
      %p346 = scmp.eq.s32.totalorder %s30, 1
      %p347 = por %p345, %p346
      %p349 = scmp.ne.s32.totalorder %s334, %s348
      %p350 = scmp.eq.s32.totalorder %s30, 0
      %p351 = por %p349, %p350
      %s353 = sadd.s32 %s352, 1
      %p356 = scmp.eq.s32.totalorder %s24, 1
      %p357 = scmp.ne.s32.totalorder %s352, %s354
      %p358 = scmp.eq.s32.totalorder %s24, 0
      %p359 = por %p357, %p358
      %p360 = scmp.ne.s32.totalorder %s352, %s354
      %p361 = scmp.eq.s32.totalorder %s29, 1
      %p362 = por %p360, %p361
      %p363 = scmp.ne.s32.totalorder %s354, %s355
      %p364 = scmp.eq.s32.totalorder %s29, 0
      %p365 = por %p363, %p364
      %p366 = scmp.ne.s32.totalorder %s354, %s355
      %p367 = scmp.eq.s32.totalorder %s30, 1
      %p368 = por %p366, %p367
      %p370 = scmp.ne.s32.totalorder %s355, %s369
      %p371 = scmp.eq.s32.totalorder %s30, 0
      %p372 = por %p370, %p371
      %s373 = ssub.s32 %s24, %s31
      %p374 = scmp.eq.s32.totalorder %s373, 0
      %s376 = sadd.s32 %s375, 1
      %s377 = scalar_select %p374, %s375, %s376
      %p380 = pneg %p374
      %p381 = scmp.eq.s32.totalorder %s24, 1
      %p382 = por %p380, %p381
      %p383 = scmp.ne.s32.totalorder %s375, %s378
      %p384 = scmp.eq.s32.totalorder %s24, 0
      %p385 = por %p383, %p384
      %p386 = scmp.ne.s32.totalorder %s375, %s378
      %p387 = scmp.eq.s32.totalorder %s29, 1
      %p388 = por %p386, %p387
      %p389 = scmp.ne.s32.totalorder %s378, %s379
      %p390 = scmp.eq.s32.totalorder %s29, 0
      %p391 = por %p389, %p390
      %p392 = scmp.ne.s32.totalorder %s378, %s379
      %p393 = scmp.eq.s32.totalorder %s30, 1
      %p394 = por %p392, %p393
      %p396 = scmp.ne.s32.totalorder %s379, %s395
      %p397 = scmp.eq.s32.totalorder %s30, 0
      %p398 = por %p396, %p397
      %p399 = scmp.le.s32.totalorder 1, %s24
      %p400 = scmp.lt.s32.totalorder %s24, 3
      %p401 = pnand %p399, %p400
      %p402 = pneg %p401
      // Predicated region
      $region9: #{transformer_forward.1} parent=5 // pred_check
        _
      $region10: #{transformer_forward.1} parent=5 // pred_check_branch
        %404 = sbr.rel (%p401) target = $region12
      $region11: #{transformer_forward.1} parent=5 // pred_region
        %s405 = ssub.s32 %s24, 1
        // Predicated region
        $region13: #{transformer_forward.1} parent=11 // pred_check
          %p406 = pneg %p71
        $region14: #{transformer_forward.1} parent=11 // pred_check_branch
          %408 = sbr.rel (%p406) target = $region16
        $region15: #{transformer_forward.1} parent=11 // pred_region
          _
        $region16: #{transformer_forward.1} parent=11 // pred_fallthru
          _
        // Predicated region
        $region17: #{transformer_forward.1} parent=11 // pred_check
          %p409 = pneg %p92
        $region18: #{transformer_forward.1} parent=11 // pred_check_branch
          %411 = sbr.rel (%p409) target = $region20
        $region19: #{transformer_forward.1} parent=11 // pred_region
          _
        $region20: #{transformer_forward.1} parent=11 // pred_fallthru
          _
        // Predicated region
        $region21: #{transformer_forward.1} parent=11 // pred_check
          %p412 = pneg %p113
        $region22: #{transformer_forward.1} parent=11 // pred_check_branch
          %414 = sbr.rel (%p412) target = $region24
        $region23: #{transformer_forward.1} parent=11 // pred_region
          _
        $region24: #{transformer_forward.1} parent=11 // pred_fallthru
          _
        // Predicated region
        $region25: #{transformer_forward.1} parent=11 // pred_check
          %p415 = pneg %p134
        $region26: #{transformer_forward.1} parent=11 // pred_check_branch
          %417 = sbr.rel (%p415) target = $region28
        $region27: #{transformer_forward.1} parent=11 // pred_region
          _
        $region28: #{transformer_forward.1} parent=11 // pred_fallthru
          _
        // Predicated region
        $region29: #{transformer_forward.1} parent=11 // pred_check
          %p418 = pneg %p155
        $region30: #{transformer_forward.1} parent=11 // pred_check_branch
          %420 = sbr.rel (%p418) target = $region32
        $region31: #{transformer_forward.1} parent=11 // pred_region
          %s422 = ssub.s32 2048, 2048
          %423 = vsyncadd [#allocation3], %s422
          %s424 = sshll.u32 [#allocation2], 4
          %s425 = int_to_ptr.vmem [resolvable:$true] %s424
          %430 = dma.hbm_to_vmem [thread:$0]  %s5, 2048, %s425, [#allocation3], 64, 64, 4
        $region32: #{transformer_forward.1} parent=11 // pred_fallthru
          _
        // Predicated region
        $region33: #{transformer_forward.1} parent=11 // pred_check
          %p431 = pneg %p176
        $region34: #{transformer_forward.1} parent=11 // pred_check_branch
          %433 = sbr.rel (%p431) target = $region36
        $region35: #{transformer_forward.1} parent=11 // pred_region
          _
        $region36: #{transformer_forward.1} parent=11 // pred_fallthru
          _
        // Predicated region
        $region37: #{transformer_forward.1} parent=11 // pred_check
          %p434 = pneg %p197
        $region38: #{transformer_forward.1} parent=11 // pred_check_branch
          %436 = sbr.rel (%p434) target = $region40
        $region39: #{transformer_forward.1} parent=11 // pred_region
          _
        $region40: #{transformer_forward.1} parent=11 // pred_fallthru
          _
        // Predicated region
        $region41: #{transformer_forward.1} parent=11 // pred_check
          %p437 = pneg %p218
        $region42: #{transformer_forward.1} parent=11 // pred_check_branch
          %439 = sbr.rel (%p437) target = $region44
        $region43: #{transformer_forward.1} parent=11 // pred_region
          _
        $region44: #{transformer_forward.1} parent=11 // pred_fallthru
          _
        // Predicated region
        $region45: #{transformer_forward.1} parent=11 // pred_check
          %p440 = pneg %p239
        $region46: #{transformer_forward.1} parent=11 // pred_check_branch
          %442 = sbr.rel (%p440) target = $region48
        $region47: #{transformer_forward.1} parent=11 // pred_region
          _
        $region48: #{transformer_forward.1} parent=11 // pred_fallthru
          _
        // Predicated region
        $region49: #{transformer_forward.1} parent=11 // pred_check
          %p443 = pneg %p260
        $region50: #{transformer_forward.1} parent=11 // pred_check_branch
          %445 = sbr.rel (%p443) target = $region52
        $region51: #{transformer_forward.1} parent=11 // pred_region
          _
        $region52: #{transformer_forward.1} parent=11 // pred_fallthru
          _
        // Predicated region
        $region53: #{transformer_forward.1} parent=11 // pred_check
          %p446 = pneg %p281
        $region54: #{transformer_forward.1} parent=11 // pred_check_branch
          %448 = sbr.rel (%p446) target = $region56
        $region55: #{transformer_forward.1} parent=11 // pred_region
          %s450 = ssub.s32 4096, 4096
          %451 = vsyncadd [#allocation5], %s450
          %s452 = sshll.u32 [#allocation4], 4
          %s453 = int_to_ptr.vmem [resolvable:$true] %s452
          %458 = dma.hbm_to_vmem [thread:$0]  %s11, 4096, %s453, [#allocation5], 64, 64, 4
        $region56: #{transformer_forward.1} parent=11 // pred_fallthru
          _
        // Predicated region
        $region57: #{transformer_forward.1} parent=11 // pred_check
          %p459 = pneg %p302
        $region58: #{transformer_forward.1} parent=11 // pred_check_branch
          %461 = sbr.rel (%p459) target = $region60
        $region59: #{transformer_forward.1} parent=11 // pred_region
          _
        $region60: #{transformer_forward.1} parent=11 // pred_fallthru
          _
        // Predicated region
        $region61: #{transformer_forward.1} parent=11 // pred_check
          %p462 = pneg %p323
        $region62: #{transformer_forward.1} parent=11 // pred_check_branch
          %464 = sbr.rel (%p462) target = $region64
        $region63: #{transformer_forward.1} parent=11 // pred_region
          _
        $region64: #{transformer_forward.1} parent=11 // pred_fallthru
          _
        // Predicated region
        $region65: #{transformer_forward.1} parent=11 // pred_check
          %p465 = pneg %p344
        $region66: #{transformer_forward.1} parent=11 // pred_check_branch
          %467 = sbr.rel (%p465) target = $region68
        $region67: #{transformer_forward.1} parent=11 // pred_region
          _
        $region68: #{transformer_forward.1} parent=11 // pred_fallthru
          _
        // Predicated region
        $region69: #{transformer_forward.1} parent=11 // pred_check
          %p468 = pneg %p365
        $region70: #{transformer_forward.1} parent=11 // pred_check_branch
          %470 = sbr.rel (%p468) target = $region72
        $region71: #{transformer_forward.1} parent=11 // pred_region
          _
        $region72: #{transformer_forward.1} parent=11 // pred_fallthru
          _
      $region12: #{transformer_forward.1} parent=5 // pred_fallthru
        _
      %p471 = scmp.lt.s32.totalorder %s24, 2
      // Predicated region
      $region73: #{transformer_forward.1} parent=5 // pred_check
        %p472 = pneg %p471
      $region74: #{transformer_forward.1} parent=5 // pred_check_branch
        %474 = sbr.rel (%p472) target = $region76
      $region75: #{transformer_forward.1} parent=5 // pred_region
        // Predicated region
        $region77: #{transformer_forward.1} parent=75 // pred_check
          %p475 = pneg %p44
        $region78: #{transformer_forward.1} parent=75 // pred_check_branch
          %477 = sbr.rel (%p475) target = $region80
        $region79: #{transformer_forward.1} parent=75 // pred_region
          %p478 = scmp.lt.s32.totalorder %s24, 1
          %s479 = scalar_select %p478, %s24, 1
          %s480 = smul.addr %s479, 2
          %s481 = smul.addr %s480, 8
          %s482 = scalar_lea.vmem %s0, %s481
        $region80: #{transformer_forward.1} parent=75 // pred_fallthru
          _
      $region76: #{transformer_forward.1} parent=5 // pred_fallthru
        _
      %p483 = scmp.le.s32.totalorder 1, %s24
      %p484 = scmp.lt.s32.totalorder %s24, 3
      %p485 = pnand %p483, %p484
      %p486 = pneg %p485
      // Predicated region
      $region81: #{transformer_forward.1} parent=5 // pred_check
        _
      $region82: #{transformer_forward.1} parent=5 // pred_check_branch
        %488 = sbr.rel (%p485) target = $region84
      $region83: #{transformer_forward.1} parent=5 // pred_region
        %s489 = ssub.s32 %s24, 1
        // Predicated region
        $region85: #{transformer_forward.1} parent=83 // pred_check
          %p490 = pneg %p155
        $region86: #{transformer_forward.1} parent=83 // pred_check_branch
          %492 = sbr.rel (%p490) target = $region88
        $region87: #{transformer_forward.1} parent=83 // pred_region
          %493 = dma.done [#allocation3], 2048
        $region88: #{transformer_forward.1} parent=83 // pred_fallthru
          _
        // Predicated region
        $region89: #{transformer_forward.1} parent=83 // pred_check
          %p494 = pneg %p281
        $region90: #{transformer_forward.1} parent=83 // pred_check_branch
          %496 = sbr.rel (%p494) target = $region92
        $region91: #{transformer_forward.1} parent=83 // pred_region
          %497 = dma.done [#allocation5], 4096
        $region92: #{transformer_forward.1} parent=83 // pred_fallthru
          _
        %p498 = scmp.lt.s32.totalorder %s29, 1
        %s499 = scalar_select %p498, %s29, 1
        %s500 = smul.addr %s499, 2
        %s501 = smul.addr %s500, 8
        %s502 = scalar_lea.vmem %s0, %s501
        %p503 = pneg %p50
        %p504 = pneg %p47
        %p505 = pneg %p71
        %p506 = pneg %p68
        %p507 = pneg %p92
        %p508 = pneg %p89
        %p509 = pneg %p113
        %p510 = pneg %p110
        %p511 = pneg %p134
        %p512 = pneg %p131
        %p513 = pneg %p155
        %p514 = pneg %p152
        %p515 = pneg %p176
        %p516 = pneg %p173
        %p517 = pneg %p197
        %p518 = pneg %p194
        %p519 = pneg %p218
        %p520 = pneg %p215
        %p521 = pneg %p239
        %p522 = pneg %p236
        %p523 = pneg %p260
        %p524 = pneg %p257
        %p525 = pneg %p281
        %p526 = pneg %p278
        %p527 = pneg %p302
        %p528 = pneg %p299
        %p529 = pneg %p323
        %p530 = pneg %p320
        %p531 = pneg %p344
        %p532 = pneg %p341
        %p533 = pneg %p365
        %p534 = pneg %p362
        %p535 = pneg %p391
        %p536 = pneg %p388
        %p537 = scmp.lt.s32.totalorder %s29, 1
        %s538 = scalar_select %p537, %s29, 1
        %s539 = smul.addr %s538, 8
        %s540 = smul.addr %s539, 8
        %s541 = scalar_lea.vmem %s16, %s540
        %p542 = scmp.lt.s32.totalorder %s29, 1
        %s543 = scalar_select %p542, %s29, 1
        %s544 = smul.addr %s543, 2
        %s545 = smul.addr %s544, 8
        %s546 = scalar_lea.vmem %s0, %s545
        %p547 = scmp.lt.s32.totalorder %s29, 1
        %s548 = scalar_select %p547, %s29, 1
        %s549 = smul.addr %s548, 8
        %s550 = smul.addr %s549, 8
        %s551 = scalar_lea.vmem %s16, %s550
        %v553 = vld [vmem:[%s546] sm:$0xff]
        %v554 = vld [vmem:[%s546 + $0x8] sm:$0xff]
        %v555 = vlaneseq
        %v556 = vshrl.u32 %v555, 7
        %v557 = vadd.s32 %v556, 8
        %v558 = vlaneseq
        %v559 = vand.u32 %v558, 127
        %vm560 = vcmp.le.s32.totalorder %v559, %v556
        %vm561 = vcmp.le.s32.totalorder %v559, %v557
        %v562 = vld [vmem:[%s3] sm:$0xff]
        %v563 = vld [vmem:[%s3 + $0x8] sm:$0xf]
        %v564 = vld [vmem:[%s3 + $0xc] sm:$0xff]
        %v565 = vld [vmem:[%s3 + $0x14] sm:$0xf]
        %v566 = vld [vmem:[%s3 + $0x18] sm:$0xff]
        %v567 = vld [vmem:[%s3 + $0x20] sm:$0xf]
        %v568 = vld [vmem:[%s3 + $0x24] sm:$0xff]
        %v569 = vld [vmem:[%s3 + $0x2c] sm:$0xf]
        %v570 = vld [vmem:[%s3 + $0x30] sm:$0xff]
        %v571 = vld [vmem:[%s3 + $0x38] sm:$0xf]
        %v572 = vld [vmem:[%s3 + $0x3c] sm:$0xff]
        %v573 = vld [vmem:[%s3 + $0x44] sm:$0xf]
        %v574 = vld [vmem:[%s3 + $0x48] sm:$0xff]
        %v575 = vld [vmem:[%s3 + $0x50] sm:$0xf]
        %v576 = vld [vmem:[%s3 + $0x54] sm:$0xff]
        %v577 = vld [vmem:[%s3 + $0x5c] sm:$0xf]
        %v578 = vld [vmem:[%s3 + $0x60] sm:$0xff]
        %v579 = vld [vmem:[%s3 + $0x68] sm:$0xf]
        %v580 = vld [vmem:[%s3 + $0x6c] sm:$0xff]
        %v581 = vld [vmem:[%s3 + $0x74] sm:$0xf]
        %v582 = vld [vmem:[%s3 + $0x78] sm:$0xff]
        %v583 = vld [vmem:[%s3 + $0x80] sm:$0xf]
        %v584 = vld [vmem:[%s3 + $0x84] sm:$0xff]
        %v585 = vld [vmem:[%s3 + $0x8c] sm:$0xf]
        %v586 = vld [vmem:[%s3 + $0x90] sm:$0xff]
        %v587 = vld [vmem:[%s3 + $0x98] sm:$0xf]
        %v588 = vld [vmem:[%s3 + $0x9c] sm:$0xff]
        %v589 = vld [vmem:[%s3 + $0xa4] sm:$0xf]
        %v590 = vld [vmem:[%s3 + $0xa8] sm:$0xff]
        %v591 = vld [vmem:[%s3 + $0xb0] sm:$0xf]
        %v592 = vld [vmem:[%s3 + $0xb4] sm:$0xff]
        %v593 = vld [vmem:[%s3 + $0xbc] sm:$0xf]
        %v594 = vld [vmem:[#allocation2] sm:$0xf]
        %v595 = vld [vmem:[#allocation2 + $0x4] sm:$0xf]
        %v596 = vld [vmem:[#allocation2 + $0x8] sm:$0xf]
        %v597 = vld [vmem:[#allocation2 + $0xc] sm:$0xf]
        %v598 = vld [vmem:[#allocation2 + $0x10] sm:$0xf]
        %v599 = vld [vmem:[#allocation2 + $0x14] sm:$0xf]
        %v600 = vld [vmem:[#allocation2 + $0x18] sm:$0xf]
        %v601 = vld [vmem:[#allocation2 + $0x1c] sm:$0xf]
        %v602 = vld [vmem:[#allocation2 + $0x20] sm:$0xf]
        %v603 = vld [vmem:[#allocation2 + $0x24] sm:$0xf]
        %v604 = vld [vmem:[#allocation2 + $0x28] sm:$0xf]
        %v605 = vld [vmem:[#allocation2 + $0x2c] sm:$0xf]
        %v606 = vld [vmem:[#allocation2 + $0x30] sm:$0xf]
        %v607 = vld [vmem:[#allocation2 + $0x34] sm:$0xf]
        %v608 = vld [vmem:[#allocation2 + $0x38] sm:$0xf]
        %v609 = vld [vmem:[#allocation2 + $0x3c] sm:$0xf]
        %v610 = vld [vmem:[%s1] sm:$0x1]
        %v611 = vld [vmem:[%s2] sm:$0x1]
        %612 = vadd.xlane.f32.xlu0 %v553
        %v613 = vpop.xlane.xlu0 %612
        %614 = vadd.xlane.f32.xlu0 %v554
        %v615 = vpop.xlane.xlu0 %614
        %v616 = vrcp.pop 128.0
        %v617 = vmul.f32 %v613, %v616
        %v618 = vmul.f32 %v615, %v616
        %v619 = vsub.f32 %v553, %v617
        %v620 = vsub.f32 %v554, %v618
        %v621 = vmul.f32 %v619, %v619
        %v622 = vmul.f32 %v620, %v620
        %623 = vadd.xlane.f32.xlu0 %v621
        %v624 = vpop.xlane.xlu0 %623
        %625 = vadd.xlane.f32.xlu0 %v622
        %v626 = vpop.xlane.xlu0 %625
        %v627 = vmul.f32 %v624, %v616
        %v628 = vmul.f32 %v626, %v616
        %v629 = vadd.f32 %v627, 1e-05
        %v630 = vadd.f32 %v628, 1e-05
        %v631 = vrsqrt.pop %v629
        %v632 = vrsqrt.pop %v630
        %v633 = vmul.f32 %v619, %v631
        %v634 = vmul.f32 %v620, %v632
        %v636 = vlaneseq
        %v637 = vshrl.u32 %v636, 7
        %v638 = vsub.s32 0, %v637
        %v639 = vrot.slane %v610, %v638
        %v641 = vmul.f32 %v633, %v639
        %v642 = vmul.f32 %v634, %v639
        %v644 = vlaneseq
        %v645 = vshrl.u32 %v644, 7
        %v646 = vsub.s32 0, %v645
        %v647 = vrot.slane %v611, %v646
        %v649 = vadd.f32 %v641, %v647
        %v650 = vadd.f32 %v642, %v647
        %v651 = vpack.c.bf16 %v650, %v649
        %v652 = vld [vmem:[%s4] sm:$0x7]
        %v654 = vlaneseq
        %v655 = vshrl.u32 %v654, 7
        %v656 = vsub.s32 0, %v655
        %v657 = vrot.slane %v652, %v656
        %v658 = vlaneseq
        %v659 = vshrl.u32 %v658, 7
        %v660 = vsub.s32 1, %v659
        %v661 = vrot.slane %v652, %v660
        %v662 = vlaneseq
        %v663 = vshrl.u32 %v662, 7
        %v664 = vsub.s32 2, %v663
        %v665 = vrot.slane %v652, %v664
        %v701 = vunpack.c.l.b16 %v562
        %v702 = vunpack.c.h.b16 %v562
        %v703 = vunpack.c.l.b16 %v563
        %v704 = vunpack.c.l.b16 %v564
        %v705 = vunpack.c.h.b16 %v564
        %v706 = vunpack.c.l.b16 %v565
        %v707 = vunpack.c.l.b16 %v566
        %v708 = vunpack.c.h.b16 %v566
        %v709 = vunpack.c.l.b16 %v567
        %v710 = vunpack.c.l.b16 %v568
        %v711 = vunpack.c.h.b16 %v568
        %v712 = vunpack.c.l.b16 %v569
        %v713 = vunpack.c.l.b16 %v570
        %v714 = vunpack.c.h.b16 %v570
        %v715 = vunpack.c.l.b16 %v571
        %v716 = vunpack.c.l.b16 %v572
        %v717 = vunpack.c.h.b16 %v572
        %v718 = vunpack.c.l.b16 %v573
        %v719 = vunpack.c.l.b16 %v574
        %v720 = vunpack.c.h.b16 %v574
        %v721 = vunpack.c.l.b16 %v575
        %v722 = vunpack.c.l.b16 %v576
        %v723 = vunpack.c.h.b16 %v576
        %v724 = vunpack.c.l.b16 %v577
        %v725 = vunpack.c.l.b16 %v578
        %v726 = vunpack.c.h.b16 %v578
        %v727 = vunpack.c.l.b16 %v579
        %v728 = vunpack.c.l.b16 %v580
        %v729 = vunpack.c.h.b16 %v580
        %v730 = vunpack.c.l.b16 %v581
        %v731 = vunpack.c.l.b16 %v582
        %v732 = vunpack.c.h.b16 %v582
        %v733 = vunpack.c.l.b16 %v583
        %v734 = vunpack.c.l.b16 %v584
        %v735 = vunpack.c.h.b16 %v584
        %v736 = vunpack.c.l.b16 %v585
        %v737 = vunpack.c.l.b16 %v586
        %v738 = vunpack.c.h.b16 %v586
        %v739 = vunpack.c.l.b16 %v587
        %v740 = vunpack.c.l.b16 %v588
        %v741 = vunpack.c.h.b16 %v588
        %v742 = vunpack.c.l.b16 %v589
        %v743 = vunpack.c.l.b16 %v590
        %v744 = vunpack.c.h.b16 %v590
        %v745 = vunpack.c.l.b16 %v591
        %v746 = vunpack.c.l.b16 %v592
        %v747 = vunpack.c.h.b16 %v592
        %v748 = vunpack.c.l.b16 %v593
        %v749 = vpack.c.b16 %v704, %v701
        %v750 = vpack.c.b16 %v705, %v702
        %v751 = vpack.c.b16 %v706, %v703
        %v752 = vpack.c.b16 %v710, %v707
        %v753 = vpack.c.b16 %v711, %v708
        %v754 = vpack.c.b16 %v712, %v709
        %v755 = vpack.c.b16 %v716, %v713
        %v756 = vpack.c.b16 %v717, %v714
        %v757 = vpack.c.b16 %v718, %v715
        %v758 = vpack.c.b16 %v722, %v719
        %v759 = vpack.c.b16 %v723, %v720
        %v760 = vpack.c.b16 %v724, %v721
        %v761 = vpack.c.b16 %v728, %v725
        %v762 = vpack.c.b16 %v729, %v726
        %v763 = vpack.c.b16 %v730, %v727
        %v764 = vpack.c.b16 %v734, %v731
        %v765 = vpack.c.b16 %v735, %v732
        %v766 = vpack.c.b16 %v736, %v733
        %v767 = vpack.c.b16 %v740, %v737
        %v768 = vpack.c.b16 %v741, %v738
        %v769 = vpack.c.b16 %v742, %v739
        %v770 = vpack.c.b16 %v746, %v743
        %v771 = vpack.c.b16 %v747, %v744
        %v772 = vpack.c.b16 %v748, %v745
        %797 = vmatprep.subr.bf16.mxu0 %v771
        %798 = vmatpush1.bf16.msra.mxu0 %v770
        %799 = vmatprep.subr.bf16.mxu0 %v768
        %800 = vmatpush1.bf16.msra.mxu0 %v767
        %801 = vmatprep.subr.bf16.mxu0 %v765
        %802 = vmatpush1.bf16.msra.mxu0 %v764
        %803 = vmatprep.subr.bf16.mxu0 %v762
        %804 = vmatpush1.bf16.msra.mxu0 %v761
        %805 = vmatprep.subr.bf16.mxu0 %v759
        %806 = vmatpush1.bf16.msra.mxu0 %v758
        %807 = vmatprep.subr.bf16.mxu0 %v756
        %808 = vmatpush1.bf16.msra.mxu0 %v755
        %809 = vmatprep.subr.bf16.mxu0 %v753
        %810 = vmatpush1.bf16.msra.mxu0 %v752
        %811 = vmatprep.subr.bf16.mxu0 %v750
        %812 = vmatpush1.bf16.msra.mxu0 %v749
        %813 = vmatprep.subr.bf16.mxu0 0
        %814 = vmatpush2.bf16.msra.mxu0 0
        %815 = vmatprep.subr.bf16.mxu0 0
        %816 = vmatpush2.bf16.msra.mxu0 0
        %817 = vmatprep.subr.bf16.mxu0 0
        %818 = vmatpush2.bf16.msra.mxu0 0
        %819 = vmatprep.subr.bf16.mxu0 0
        %820 = vmatpush2.bf16.msra.mxu0 0
        %821 = vmatprep.subr.bf16.mxu0 0
        %822 = vmatpush2.bf16.msra.mxu0 0
        %823 = vmatprep.subr.bf16.mxu0 0
        %824 = vmatpush2.bf16.msra.mxu0 0
        %825 = vmatprep.subr.bf16.mxu0 0
        %826 = vmatpush2.bf16.msra.mxu0 0
        %827 = vmatprep.subr.bf16.mxu0 0
        %828 = vmatpush2.bf16.msra.mxu0 0
        %829 = vmatprep.mubr.bf16.mxu0 0
        %830 = vmatmul.mubr.bf16.gmra.mxu0 %v651
        %v831 = vpop.f32.mrf.mxu0
        %v832 = vadd.f32 %v657, %v831
        %v833 = vpop.f32.mrf.mxu0
        %v834 = vadd.f32 %v661, %v833
        %v835 = vpop.f32.mrf.mxu0
        %v836 = vadd.f32 %v657, %v835
        %v837 = vpop.f32.mrf.mxu0
        %v838 = vadd.f32 %v661, %v837
        %839 = vdwg.mxu0
        %840 = vmatprep.subr.bf16.mxu0 0
        %841 = vmatpush1.bf16.msra.mxu0 %v772
        %842 = vmatprep.subr.bf16.mxu0 0
        %843 = vmatpush1.bf16.msra.mxu0 %v769
        %844 = vmatprep.subr.bf16.mxu0 0
        %845 = vmatpush1.bf16.msra.mxu0 %v766
        %846 = vmatprep.subr.bf16.mxu0 0
        %847 = vmatpush1.bf16.msra.mxu0 %v763
        %848 = vmatprep.subr.bf16.mxu0 0
        %849 = vmatpush1.bf16.msra.mxu0 %v760
        %850 = vmatprep.subr.bf16.mxu0 0
        %851 = vmatpush1.bf16.msra.mxu0 %v757
        %852 = vmatprep.subr.bf16.mxu0 0
        %853 = vmatpush1.bf16.msra.mxu0 %v754
        %854 = vmatprep.subr.bf16.mxu0 0
        %855 = vmatpush1.bf16.msra.mxu0 %v751
        %856 = vmatprep.subr.bf16.mxu0 0
        %857 = vmatpush2.bf16.msra.mxu0 0
        %858 = vmatprep.subr.bf16.mxu0 0
        %859 = vmatpush2.bf16.msra.mxu0 0
        %860 = vmatprep.subr.bf16.mxu0 0
        %861 = vmatpush2.bf16.msra.mxu0 0
        %862 = vmatprep.subr.bf16.mxu0 0
        %863 = vmatpush2.bf16.msra.mxu0 0
        %864 = vmatprep.subr.bf16.mxu0 0
        %865 = vmatpush2.bf16.msra.mxu0 0
        %866 = vmatprep.subr.bf16.mxu0 0
        %867 = vmatpush2.bf16.msra.mxu0 0
        %868 = vmatprep.subr.bf16.mxu0 0
        %869 = vmatpush2.bf16.msra.mxu0 0
        %870 = vmatprep.subr.bf16.mxu0 0
        %871 = vmatpush2.bf16.msra.mxu0 0
        %872 = vmatprep.mubr.bf16.mxu0 0
        %873 = vmatmul.mubr.bf16.gmra.mxu0 %v651
        %v874 = vpop.f32.mrf.mxu0
        %v875 = vadd.f32 %v665, %v874
        %v876 = vpop.f32.mrf.mxu0
        %v877 = vpop.f32.mrf.mxu0
        %v878 = vadd.f32 %v665, %v877
        %v879 = vpop.f32.mrf.mxu0
        %880 = vdwg.mxu0
        %v881 = vmul.f32 %v832, 0.17677669
        %v882 = vmul.f32 %v836, 0.17677669
        %v883 = vpack.c.bf16 %v882, %v881
        %v884 = vpack.c.bf16 %v838, %v834
        %v885 = vpack.c.bf16 %v878, %v875
        %vm886 = vcmask 261120
        %v888 = vsel %vm886, %v883, 0
        %v891 = vsel %vm886, %v884, 0
        %893 = vmatprep.subr.bf16.mxu0 0
        %894 = vmatpush1.bf16.xpose.msra.mxu0 0
        %895 = vmatprep.subr.bf16.mxu0 0
        %896 = vmatpush1.bf16.xpose.msra.mxu0 0
        %897 = vmatprep.subr.bf16.mxu0 0
        %898 = vmatpush1.bf16.xpose.msra.mxu0 0
        %899 = vmatprep.subr.bf16.mxu0 0
        %900 = vmatpush1.bf16.xpose.msra.mxu0 0
        %901 = vmatprep.subr.bf16.mxu0 0
        %902 = vmatpush1.bf16.xpose.msra.mxu0 0
        %903 = vmatprep.subr.bf16.mxu0 0
        %904 = vmatpush1.bf16.xpose.msra.mxu0 0
        %905 = vmatprep.subr.bf16.mxu0 0
        %906 = vmatpush1.bf16.xpose.msra.mxu0 0
        %907 = vmatprep.subr.bf16.mxu0 0
        %908 = vmatpush1.bf16.xpose.msra.mxu0 %v891
        %909 = vmatprep.subr.bf16.mxu0 0
        %910 = vmatpush2.bf16.xpose.msra.mxu0 0
        %911 = vmatprep.subr.bf16.mxu0 0
        %912 = vmatpush2.bf16.xpose.msra.mxu0 0
        %913 = vmatprep.subr.bf16.mxu0 0
        %914 = vmatpush2.bf16.xpose.msra.mxu0 0
        %915 = vmatprep.subr.bf16.mxu0 0
        %916 = vmatpush2.bf16.xpose.msra.mxu0 0
        %917 = vmatprep.subr.bf16.mxu0 0
        %918 = vmatpush2.bf16.xpose.msra.mxu0 0
        %919 = vmatprep.subr.bf16.mxu0 0
        %920 = vmatpush2.bf16.xpose.msra.mxu0 0
        %921 = vmatprep.subr.bf16.mxu0 0
        %922 = vmatpush2.bf16.xpose.msra.mxu0 0
        %923 = vmatprep.subr.bf16.mxu0 0
        %924 = vmatpush2.bf16.xpose.msra.mxu0 0
        %925 = vmatprep.mubr.bf16.mxu0 0
        %926 = vmatmul.mubr.bf16.gmra.mxu0 %v888
        %v927 = vpop.f32.mrf.mxu0
        %v928 = vadd.f32 0.0, %v927
        %v929 = vpop.f32.mrf.mxu0
        %v930 = vpop.f32.mrf.mxu0
        %v931 = vadd.f32 0.0, %v930
        %v932 = vpop.f32.mrf.mxu0
        %933 = vdwg.mxu0
        %v934 = vsel %vm560, %v928, -inf
        %v935 = vsel %vm561, %v931, -inf
        %vm936 = vcmask 130048
        %v937 = vsel %vm936, %v934, -inf
        %938 = vmax.xlane.f32.xlu0 %v937
        %v939 = vpop.xlane.xlu0 %938
        %v940 = vsel %vm936, %v935, -inf
        %941 = vmax.xlane.f32.xlu0 %v940
        %v942 = vpop.xlane.xlu0 %941
        %v943 = vsub.f32 %v934, %v939
        %v944 = vsub.f32 %v935, %v942
        %v945 = vmul.f32 %v943, 1.442695
        %v946 = vpow.pop %v945
        %v947 = vmul.f32 %v944, 1.442695
        %v948 = vpow.pop %v947
        %v949 = vsel %vm936, %v946, 0.0
        %950 = vadd.xlane.f32.xlu0 %v949
        %v951 = vpop.xlane.xlu0 %950
        %v952 = vsel %vm936, %v948, 0.0
        %953 = vadd.xlane.f32.xlu0 %v952
        %v954 = vpop.xlane.xlu0 %953
        %v955 = vrcp.pop %v951
        %v956 = vrcp.pop %v954
        %v957 = vmul.f32 %v946, %v955
        %v958 = vmul.f32 %v948, %v956
        %v959 = vpack.c.bf16 %v958, %v957
        %v961 = vsel %vm936, %v959, 0
        %963 = vmatprep.subr.bf16.mxu0 0
        %964 = vmatpush1.bf16.msra.mxu0 0
        %965 = vmatprep.subr.bf16.mxu0 0
        %966 = vmatpush1.bf16.msra.mxu0 0
        %967 = vmatprep.subr.bf16.mxu0 0
        %968 = vmatpush1.bf16.msra.mxu0 0
        %969 = vmatprep.subr.bf16.mxu0 0
        %970 = vmatpush1.bf16.msra.mxu0 0
        %971 = vmatprep.subr.bf16.mxu0 0
        %972 = vmatpush1.bf16.msra.mxu0 0
        %973 = vmatprep.subr.bf16.mxu0 0
        %974 = vmatpush1.bf16.msra.mxu0 0
        %975 = vmatprep.subr.bf16.mxu0 0
        %976 = vmatpush1.bf16.msra.mxu0 0
        %977 = vmatprep.subr.bf16.mxu0 0
        %978 = vmatpush1.bf16.msra.mxu0 %v885
        %979 = vmatprep.subr.bf16.mxu0 0
        %980 = vmatpush2.bf16.msra.mxu0 0
        %981 = vmatprep.subr.bf16.mxu0 0
        %982 = vmatpush2.bf16.msra.mxu0 0
        %983 = vmatprep.subr.bf16.mxu0 0
        %984 = vmatpush2.bf16.msra.mxu0 0
        %985 = vmatprep.subr.bf16.mxu0 0
        %986 = vmatpush2.bf16.msra.mxu0 0
        %987 = vmatprep.subr.bf16.mxu0 0
        %988 = vmatpush2.bf16.msra.mxu0 0
        %989 = vmatprep.subr.bf16.mxu0 0
        %990 = vmatpush2.bf16.msra.mxu0 0
        %991 = vmatprep.subr.bf16.mxu0 0
        %992 = vmatpush2.bf16.msra.mxu0 0
        %993 = vmatprep.subr.bf16.mxu0 0
        %994 = vmatpush2.bf16.msra.mxu0 0
        %995 = vmatprep.mubr.bf16.mxu0 0
        %996 = vmatmul.mubr.bf16.gmra.mxu0 %v961
        %v997 = vpop.f32.mrf.mxu0
        %v998 = vadd.f32 0.0, %v997
        %v999 = vpop.f32.mrf.mxu0
        %v1000 = vpop.f32.mrf.mxu0
        %v1001 = vadd.f32 0.0, %v1000
        %v1002 = vpop.f32.mrf.mxu0
        %1003 = vdwg.mxu0
        %v1004 = vpack.c.bf16 %v1001, %v998
        %1006 = vrot.lane.b32.xlu0 %v883, 96
        %v1007 = vpop.permute.xlu0 %1006
        %1009 = vrot.lane.b32.xlu0 %v884, 96
        %v1010 = vpop.permute.xlu0 %1009
        %v1012 = vsel %vm886, %v1007, 0
        %v1015 = vsel %vm886, %v1010, 0
        %1017 = vmatprep.subr.bf16.mxu0 0
        %1018 = vmatpush1.bf16.xpose.msra.mxu0 0
        %1019 = vmatprep.subr.bf16.mxu0 0
        %1020 = vmatpush1.bf16.xpose.msra.mxu0 0
        %1021 = vmatprep.subr.bf16.mxu0 0
        %1022 = vmatpush1.bf16.xpose.msra.mxu0 0
        %1023 = vmatprep.subr.bf16.mxu0 0
        %1024 = vmatpush1.bf16.xpose.msra.mxu0 0
        %1025 = vmatprep.subr.bf16.mxu0 0
        %1026 = vmatpush1.bf16.xpose.msra.mxu0 0
        %1027 = vmatprep.subr.bf16.mxu0 0
        %1028 = vmatpush1.bf16.xpose.msra.mxu0 0
        %1029 = vmatprep.subr.bf16.mxu0 0
        %1030 = vmatpush1.bf16.xpose.msra.mxu0 0
        %1031 = vmatprep.subr.bf16.mxu0 0
        %1032 = vmatpush1.bf16.xpose.msra.mxu0 %v1015
        %1033 = vmatprep.subr.bf16.mxu0 0
        %1034 = vmatpush2.bf16.xpose.msra.mxu0 0
        %1035 = vmatprep.subr.bf16.mxu0 0
        %1036 = vmatpush2.bf16.xpose.msra.mxu0 0
        %1037 = vmatprep.subr.bf16.mxu0 0
        %1038 = vmatpush2.bf16.xpose.msra.mxu0 0
        %1039 = vmatprep.subr.bf16.mxu0 0
        %1040 = vmatpush2.bf16.xpose.msra.mxu0 0
        %1041 = vmatprep.subr.bf16.mxu0 0
        %1042 = vmatpush2.bf16.xpose.msra.mxu0 0
        %1043 = vmatprep.subr.bf16.mxu0 0
        %1044 = vmatpush2.bf16.xpose.msra.mxu0 0
        %1045 = vmatprep.subr.bf16.mxu0 0
        %1046 = vmatpush2.bf16.xpose.msra.mxu0 0
        %1047 = vmatprep.subr.bf16.mxu0 0
        %1048 = vmatpush2.bf16.xpose.msra.mxu0 0
        %1049 = vmatprep.mubr.bf16.mxu0 0
        %1050 = vmatmul.mubr.bf16.gmra.mxu0 %v1012
        %v1051 = vpop.f32.mrf.mxu0
        %v1052 = vadd.f32 0.0, %v1051
        %v1053 = vpop.f32.mrf.mxu0
        %v1054 = vpop.f32.mrf.mxu0
        %v1055 = vadd.f32 0.0, %v1054
        %v1056 = vpop.f32.mrf.mxu0
        %1057 = vdwg.mxu0
        %v1058 = vsel %vm560, %v1052, -inf
        %v1059 = vsel %vm561, %v1055, -inf
        %v1060 = vsel %vm936, %v1058, -inf
        %1061 = vmax.xlane.f32.xlu0 %v1060
        %v1062 = vpop.xlane.xlu0 %1061
        %v1063 = vsel %vm936, %v1059, -inf
        %1064 = vmax.xlane.f32.xlu0 %v1063
        %v1065 = vpop.xlane.xlu0 %1064
        %v1066 = vsub.f32 %v1058, %v1062
        %v1067 = vsub.f32 %v1059, %v1065
        %v1068 = vmul.f32 %v1066, 1.442695
        %v1069 = vpow.pop %v1068
        %v1070 = vmul.f32 %v1067, 1.442695
        %v1071 = vpow.pop %v1070
        %v1072 = vsel %vm936, %v1069, 0.0
        %1073 = vadd.xlane.f32.xlu0 %v1072
        %v1074 = vpop.xlane.xlu0 %1073
        %v1075 = vsel %vm936, %v1071, 0.0
        %1076 = vadd.xlane.f32.xlu0 %v1075
        %v1077 = vpop.xlane.xlu0 %1076
        %v1078 = vrcp.pop %v1074
        %v1079 = vrcp.pop %v1077
        %v1080 = vmul.f32 %v1069, %v1078
        %v1081 = vmul.f32 %v1071, %v1079
        %v1082 = vpack.c.bf16 %v1081, %v1080
        %1084 = vrot.lane.b32.xlu0 %v885, 96
        %v1085 = vpop.permute.xlu0 %1084
        %v1088 = vsel %vm936, %v1082, 0
        %1090 = vmatprep.subr.bf16.mxu0 0
        %1091 = vmatpush1.bf16.msra.mxu0 0
        %1092 = vmatprep.subr.bf16.mxu0 0
        %1093 = vmatpush1.bf16.msra.mxu0 0
        %1094 = vmatprep.subr.bf16.mxu0 0
        %1095 = vmatpush1.bf16.msra.mxu0 0
        %1096 = vmatprep.subr.bf16.mxu0 0
        %1097 = vmatpush1.bf16.msra.mxu0 0
        %1098 = vmatprep.subr.bf16.mxu0 0
        %1099 = vmatpush1.bf16.msra.mxu0 0
        %1100 = vmatprep.subr.bf16.mxu0 0
        %1101 = vmatpush1.bf16.msra.mxu0 0
        %1102 = vmatprep.subr.bf16.mxu0 0
        %1103 = vmatpush1.bf16.msra.mxu0 0
        %1104 = vmatprep.subr.bf16.mxu0 0
        %1105 = vmatpush1.bf16.msra.mxu0 %v1085
        %1106 = vmatprep.subr.bf16.mxu0 0
        %1107 = vmatpush2.bf16.msra.mxu0 0
        %1108 = vmatprep.subr.bf16.mxu0 0
        %1109 = vmatpush2.bf16.msra.mxu0 0
        %1110 = vmatprep.subr.bf16.mxu0 0
        %1111 = vmatpush2.bf16.msra.mxu0 0
        %1112 = vmatprep.subr.bf16.mxu0 0
        %1113 = vmatpush2.bf16.msra.mxu0 0
        %1114 = vmatprep.subr.bf16.mxu0 0
        %1115 = vmatpush2.bf16.msra.mxu0 0
        %1116 = vmatprep.subr.bf16.mxu0 0
        %1117 = vmatpush2.bf16.msra.mxu0 0
        %1118 = vmatprep.subr.bf16.mxu0 0
        %1119 = vmatpush2.bf16.msra.mxu0 0
        %1120 = vmatprep.subr.bf16.mxu0 0
        %1121 = vmatpush2.bf16.msra.mxu0 0
        %1122 = vmatprep.mubr.bf16.mxu0 0
        %1123 = vmatmul.mubr.bf16.gmra.mxu0 %v1088
        %v1124 = vpop.f32.mrf.mxu0
        %v1125 = vadd.f32 0.0, %v1124
        %v1126 = vpop.f32.mrf.mxu0
        %v1127 = vpop.f32.mrf.mxu0
        %v1128 = vadd.f32 0.0, %v1127
        %v1129 = vpop.f32.mrf.mxu0
        %1130 = vdwg.mxu0
        %v1131 = vpack.c.bf16 %v1128, %v1125
        %v1136 = vunpack.c.l.b16 %v598
        %v1137 = vunpack.c.l.b16 %v599
        %v1138 = vunpack.c.l.b16 %v600
        %v1139 = vunpack.c.l.b16 %v601
        %v1140 = vpack.c.b16 %v1137, %v1136
        %v1141 = vpack.c.b16 %v1139, %v1138
        %v1145 = vsel %vm886, %v1131, 0
        %1147 = vmatprep.subr.bf16.mxu0 0
        %1148 = vmatpush1.bf16.msra.mxu0 0
        %1149 = vmatprep.subr.bf16.mxu0 0
        %1150 = vmatpush1.bf16.msra.mxu0 0
        %1151 = vmatprep.subr.bf16.mxu0 0
        %1152 = vmatpush1.bf16.msra.mxu0 0
        %1153 = vmatprep.subr.bf16.mxu0 0
        %1154 = vmatpush1.bf16.msra.mxu0 0
        %1155 = vmatprep.subr.bf16.mxu0 0
        %1156 = vmatpush1.bf16.msra.mxu0 0
        %1157 = vmatprep.subr.bf16.mxu0 0
        %1158 = vmatpush1.bf16.msra.mxu0 0
        %1159 = vmatprep.subr.bf16.mxu0 0
        %1160 = vmatpush1.bf16.msra.mxu0 %v1141
        %1161 = vmatprep.subr.bf16.mxu0 0
        %1162 = vmatpush1.bf16.msra.mxu0 %v1140
        %1163 = vmatprep.subr.bf16.mxu0 0
        %1164 = vmatpush2.bf16.msra.mxu0 0
        %1165 = vmatprep.subr.bf16.mxu0 0
        %1166 = vmatpush2.bf16.msra.mxu0 0
        %1167 = vmatprep.subr.bf16.mxu0 0
        %1168 = vmatpush2.bf16.msra.mxu0 0
        %1169 = vmatprep.subr.bf16.mxu0 0
        %1170 = vmatpush2.bf16.msra.mxu0 0
        %1171 = vmatprep.subr.bf16.mxu0 0
        %1172 = vmatpush2.bf16.msra.mxu0 0
        %1173 = vmatprep.subr.bf16.mxu0 0
        %1174 = vmatpush2.bf16.msra.mxu0 0
        %1175 = vmatprep.subr.bf16.mxu0 0
        %1176 = vmatpush2.bf16.msra.mxu0 0
        %1177 = vmatprep.subr.bf16.mxu0 0
        %1178 = vmatpush2.bf16.msra.mxu0 0
        %1179 = vmatprep.mubr.bf16.mxu0 0
        %1180 = vmatmul.mubr.bf16.gmra.mxu0 %v1145
        %v1181 = vpop.f32.mrf.mxu0
        %v1182 = vadd.f32 0.0, %v1181
        %v1183 = vpop.f32.mrf.mxu0
        %v1184 = vpop.f32.mrf.mxu0
        %v1185 = vadd.f32 0.0, %v1184
        %v1186 = vpop.f32.mrf.mxu0
        %1187 = vdwg.mxu0
        %v1192 = vunpack.c.l.b16 %v594
        %v1193 = vunpack.c.l.b16 %v595
        %v1194 = vunpack.c.l.b16 %v596
        %v1195 = vunpack.c.l.b16 %v597
        %v1196 = vpack.c.b16 %v1193, %v1192
        %v1197 = vpack.c.b16 %v1195, %v1194
        %v1201 = vsel %vm886, %v1004, 0
        %1203 = vmatprep.subr.bf16.mxu0 0
        %1204 = vmatpush1.bf16.msra.mxu0 0
        %1205 = vmatprep.subr.bf16.mxu0 0
        %1206 = vmatpush1.bf16.msra.mxu0 0
        %1207 = vmatprep.subr.bf16.mxu0 0
        %1208 = vmatpush1.bf16.msra.mxu0 0
        %1209 = vmatprep.subr.bf16.mxu0 0
        %1210 = vmatpush1.bf16.msra.mxu0 0
        %1211 = vmatprep.subr.bf16.mxu0 0
        %1212 = vmatpush1.bf16.msra.mxu0 0
        %1213 = vmatprep.subr.bf16.mxu0 0
        %1214 = vmatpush1.bf16.msra.mxu0 0
        %1215 = vmatprep.subr.bf16.mxu0 0
        %1216 = vmatpush1.bf16.msra.mxu0 %v1197
        %1217 = vmatprep.subr.bf16.mxu0 0
        %1218 = vmatpush1.bf16.msra.mxu0 %v1196
        %1219 = vmatprep.subr.bf16.mxu0 0
        %1220 = vmatpush2.bf16.msra.mxu0 0
        %1221 = vmatprep.subr.bf16.mxu0 0
        %1222 = vmatpush2.bf16.msra.mxu0 0
        %1223 = vmatprep.subr.bf16.mxu0 0
        %1224 = vmatpush2.bf16.msra.mxu0 0
        %1225 = vmatprep.subr.bf16.mxu0 0
        %1226 = vmatpush2.bf16.msra.mxu0 0
        %1227 = vmatprep.subr.bf16.mxu0 0
        %1228 = vmatpush2.bf16.msra.mxu0 0
        %1229 = vmatprep.subr.bf16.mxu0 0
        %1230 = vmatpush2.bf16.msra.mxu0 0
        %1231 = vmatprep.subr.bf16.mxu0 0
        %1232 = vmatpush2.bf16.msra.mxu0 0
        %1233 = vmatprep.subr.bf16.mxu0 0
        %1234 = vmatpush2.bf16.msra.mxu0 0
        %1235 = vmatprep.mubr.bf16.mxu0 0
        %1236 = vmatmul.mubr.bf16.gmra.mxu0 %v1201
        %v1237 = vpop.f32.mrf.mxu0
        %v1238 = vadd.f32 %v1182, %v1237
        %v1239 = vpop.f32.mrf.mxu0
        %v1240 = vpop.f32.mrf.mxu0
        %v1241 = vadd.f32 %v1185, %v1240
        %v1242 = vpop.f32.mrf.mxu0
        %1243 = vdwg.mxu0
        %1244 = vrot.lane.b32.xlu0 %v883, 64
        %v1245 = vpop.permute.xlu0 %1244
        %1246 = vrot.lane.b32.xlu0 %v884, 64
        %v1247 = vpop.permute.xlu0 %1246
        %v1249 = vsel %vm886, %v1245, 0
        %v1252 = vsel %vm886, %v1247, 0
        %1254 = vmatprep.subr.bf16.mxu0 0
        %1255 = vmatpush1.bf16.xpose.msra.mxu0 0
        %1256 = vmatprep.subr.bf16.mxu0 0
        %1257 = vmatpush1.bf16.xpose.msra.mxu0 0
        %1258 = vmatprep.subr.bf16.mxu0 0
        %1259 = vmatpush1.bf16.xpose.msra.mxu0 0
        %1260 = vmatprep.subr.bf16.mxu0 0
        %1261 = vmatpush1.bf16.xpose.msra.mxu0 0
        %1262 = vmatprep.subr.bf16.mxu0 0
        %1263 = vmatpush1.bf16.xpose.msra.mxu0 0
        %1264 = vmatprep.subr.bf16.mxu0 0
        %1265 = vmatpush1.bf16.xpose.msra.mxu0 0
        %1266 = vmatprep.subr.bf16.mxu0 0
        %1267 = vmatpush1.bf16.xpose.msra.mxu0 0
        %1268 = vmatprep.subr.bf16.mxu0 0
        %1269 = vmatpush1.bf16.xpose.msra.mxu0 %v1252
        %1270 = vmatprep.subr.bf16.mxu0 0
        %1271 = vmatpush2.bf16.xpose.msra.mxu0 0
        %1272 = vmatprep.subr.bf16.mxu0 0
        %1273 = vmatpush2.bf16.xpose.msra.mxu0 0
        %1274 = vmatprep.subr.bf16.mxu0 0
        %1275 = vmatpush2.bf16.xpose.msra.mxu0 0
        %1276 = vmatprep.subr.bf16.mxu0 0
        %1277 = vmatpush2.bf16.xpose.msra.mxu0 0
        %1278 = vmatprep.subr.bf16.mxu0 0
        %1279 = vmatpush2.bf16.xpose.msra.mxu0 0
        %1280 = vmatprep.subr.bf16.mxu0 0
        %1281 = vmatpush2.bf16.xpose.msra.mxu0 0
        %1282 = vmatprep.subr.bf16.mxu0 0
        %1283 = vmatpush2.bf16.xpose.msra.mxu0 0
        %1284 = vmatprep.subr.bf16.mxu0 0
        %1285 = vmatpush2.bf16.xpose.msra.mxu0 0
        %1286 = vmatprep.mubr.bf16.mxu0 0
        %1287 = vmatmul.mubr.bf16.gmra.mxu0 %v1249
        %v1288 = vpop.f32.mrf.mxu0
        %v1289 = vadd.f32 0.0, %v1288
        %v1290 = vpop.f32.mrf.mxu0
        %v1291 = vpop.f32.mrf.mxu0
        %v1292 = vadd.f32 0.0, %v1291
        %v1293 = vpop.f32.mrf.mxu0
        %1294 = vdwg.mxu0
        %v1295 = vsel %vm560, %v1289, -inf
        %v1296 = vsel %vm561, %v1292, -inf
        %v1297 = vsel %vm936, %v1295, -inf
        %1298 = vmax.xlane.f32.xlu0 %v1297
        %v1299 = vpop.xlane.xlu0 %1298
        %v1300 = vsel %vm936, %v1296, -inf
        %1301 = vmax.xlane.f32.xlu0 %v1300
        %v1302 = vpop.xlane.xlu0 %1301
        %v1303 = vsub.f32 %v1295, %v1299
        %v1304 = vsub.f32 %v1296, %v1302
        %v1305 = vmul.f32 %v1303, 1.442695
        %v1306 = vpow.pop %v1305
        %v1307 = vmul.f32 %v1304, 1.442695
        %v1308 = vpow.pop %v1307
        %v1309 = vsel %vm936, %v1306, 0.0
        %1310 = vadd.xlane.f32.xlu0 %v1309
        %v1311 = vpop.xlane.xlu0 %1310
        %v1312 = vsel %vm936, %v1308, 0.0
        %1313 = vadd.xlane.f32.xlu0 %v1312
        %v1314 = vpop.xlane.xlu0 %1313
        %v1315 = vrcp.pop %v1311
        %v1316 = vrcp.pop %v1314
        %v1317 = vmul.f32 %v1306, %v1315
        %v1318 = vmul.f32 %v1308, %v1316
        %v1319 = vpack.c.bf16 %v1318, %v1317
        %1320 = vrot.lane.b32.xlu0 %v885, 64
        %v1321 = vpop.permute.xlu0 %1320
        %v1324 = vsel %vm936, %v1319, 0
        %1326 = vmatprep.subr.bf16.mxu0 0
        %1327 = vmatpush1.bf16.msra.mxu0 0
        %1328 = vmatprep.subr.bf16.mxu0 0
        %1329 = vmatpush1.bf16.msra.mxu0 0
        %1330 = vmatprep.subr.bf16.mxu0 0
        %1331 = vmatpush1.bf16.msra.mxu0 0
        %1332 = vmatprep.subr.bf16.mxu0 0
        %1333 = vmatpush1.bf16.msra.mxu0 0
        %1334 = vmatprep.subr.bf16.mxu0 0
        %1335 = vmatpush1.bf16.msra.mxu0 0
        %1336 = vmatprep.subr.bf16.mxu0 0
        %1337 = vmatpush1.bf16.msra.mxu0 0
        %1338 = vmatprep.subr.bf16.mxu0 0
        %1339 = vmatpush1.bf16.msra.mxu0 0
        %1340 = vmatprep.subr.bf16.mxu0 0
        %1341 = vmatpush1.bf16.msra.mxu0 %v1321
        %1342 = vmatprep.subr.bf16.mxu0 0
        %1343 = vmatpush2.bf16.msra.mxu0 0
        %1344 = vmatprep.subr.bf16.mxu0 0
        %1345 = vmatpush2.bf16.msra.mxu0 0
        %1346 = vmatprep.subr.bf16.mxu0 0
        %1347 = vmatpush2.bf16.msra.mxu0 0
        %1348 = vmatprep.subr.bf16.mxu0 0
        %1349 = vmatpush2.bf16.msra.mxu0 0
        %1350 = vmatprep.subr.bf16.mxu0 0
        %1351 = vmatpush2.bf16.msra.mxu0 0
        %1352 = vmatprep.subr.bf16.mxu0 0
        %1353 = vmatpush2.bf16.msra.mxu0 0
        %1354 = vmatprep.subr.bf16.mxu0 0
        %1355 = vmatpush2.bf16.msra.mxu0 0
        %1356 = vmatprep.subr.bf16.mxu0 0
        %1357 = vmatpush2.bf16.msra.mxu0 0
        %1358 = vmatprep.mubr.bf16.mxu0 0
        %1359 = vmatmul.mubr.bf16.gmra.mxu0 %v1324
        %v1360 = vpop.f32.mrf.mxu0
        %v1361 = vadd.f32 0.0, %v1360
        %v1362 = vpop.f32.mrf.mxu0
        %v1363 = vpop.f32.mrf.mxu0
        %v1364 = vadd.f32 0.0, %v1363
        %v1365 = vpop.f32.mrf.mxu0
        %1366 = vdwg.mxu0
        %v1367 = vpack.c.bf16 %v1364, %v1361
        %v1372 = vunpack.c.l.b16 %v602
        %v1373 = vunpack.c.l.b16 %v603
        %v1374 = vunpack.c.l.b16 %v604
        %v1375 = vunpack.c.l.b16 %v605
        %v1376 = vpack.c.b16 %v1373, %v1372
        %v1377 = vpack.c.b16 %v1375, %v1374
        %v1381 = vsel %vm886, %v1367, 0
        %1383 = vmatprep.subr.bf16.mxu0 0
        %1384 = vmatpush1.bf16.msra.mxu0 0
        %1385 = vmatprep.subr.bf16.mxu0 0
        %1386 = vmatpush1.bf16.msra.mxu0 0
        %1387 = vmatprep.subr.bf16.mxu0 0
        %1388 = vmatpush1.bf16.msra.mxu0 0
        %1389 = vmatprep.subr.bf16.mxu0 0
        %1390 = vmatpush1.bf16.msra.mxu0 0
        %1391 = vmatprep.subr.bf16.mxu0 0
        %1392 = vmatpush1.bf16.msra.mxu0 0
        %1393 = vmatprep.subr.bf16.mxu0 0
        %1394 = vmatpush1.bf16.msra.mxu0 0
        %1395 = vmatprep.subr.bf16.mxu0 0
        %1396 = vmatpush1.bf16.msra.mxu0 %v1377
        %1397 = vmatprep.subr.bf16.mxu0 0
        %1398 = vmatpush1.bf16.msra.mxu0 %v1376
        %1399 = vmatprep.subr.bf16.mxu0 0
        %1400 = vmatpush2.bf16.msra.mxu0 0
        %1401 = vmatprep.subr.bf16.mxu0 0
        %1402 = vmatpush2.bf16.msra.mxu0 0
        %1403 = vmatprep.subr.bf16.mxu0 0
        %1404 = vmatpush2.bf16.msra.mxu0 0
        %1405 = vmatprep.subr.bf16.mxu0 0
        %1406 = vmatpush2.bf16.msra.mxu0 0
        %1407 = vmatprep.subr.bf16.mxu0 0
        %1408 = vmatpush2.bf16.msra.mxu0 0
        %1409 = vmatprep.subr.bf16.mxu0 0
        %1410 = vmatpush2.bf16.msra.mxu0 0
        %1411 = vmatprep.subr.bf16.mxu0 0
        %1412 = vmatpush2.bf16.msra.mxu0 0
        %1413 = vmatprep.subr.bf16.mxu0 0
        %1414 = vmatpush2.bf16.msra.mxu0 0
        %1415 = vmatprep.mubr.bf16.mxu0 0
        %1416 = vmatmul.mubr.bf16.gmra.mxu0 %v1381
        %v1417 = vpop.f32.mrf.mxu0
        %v1418 = vadd.f32 0.0, %v1417
        %v1419 = vpop.f32.mrf.mxu0
        %v1420 = vpop.f32.mrf.mxu0
        %v1421 = vadd.f32 0.0, %v1420
        %v1422 = vpop.f32.mrf.mxu0
        %1423 = vdwg.mxu0
        %v1424 = vadd.f32 %v1238, %v1418
        %v1425 = vadd.f32 %v1241, %v1421
        %1426 = vrot.lane.b32.xlu0 %v883, 32
        %v1427 = vpop.permute.xlu0 %1426
        %1428 = vrot.lane.b32.xlu0 %v884, 32
        %v1429 = vpop.permute.xlu0 %1428
        %v1431 = vsel %vm886, %v1427, 0
        %v1434 = vsel %vm886, %v1429, 0
        %1436 = vmatprep.subr.bf16.mxu0 0
        %1437 = vmatpush1.bf16.xpose.msra.mxu0 0
        %1438 = vmatprep.subr.bf16.mxu0 0
        %1439 = vmatpush1.bf16.xpose.msra.mxu0 0
        %1440 = vmatprep.subr.bf16.mxu0 0
        %1441 = vmatpush1.bf16.xpose.msra.mxu0 0
        %1442 = vmatprep.subr.bf16.mxu0 0
        %1443 = vmatpush1.bf16.xpose.msra.mxu0 0
        %1444 = vmatprep.subr.bf16.mxu0 0
        %1445 = vmatpush1.bf16.xpose.msra.mxu0 0
        %1446 = vmatprep.subr.bf16.mxu0 0
        %1447 = vmatpush1.bf16.xpose.msra.mxu0 0
        %1448 = vmatprep.subr.bf16.mxu0 0
        %1449 = vmatpush1.bf16.xpose.msra.mxu0 0
        %1450 = vmatprep.subr.bf16.mxu0 0
        %1451 = vmatpush1.bf16.xpose.msra.mxu0 %v1434
        %1452 = vmatprep.subr.bf16.mxu0 0
        %1453 = vmatpush2.bf16.xpose.msra.mxu0 0
        %1454 = vmatprep.subr.bf16.mxu0 0
        %1455 = vmatpush2.bf16.xpose.msra.mxu0 0
        %1456 = vmatprep.subr.bf16.mxu0 0
        %1457 = vmatpush2.bf16.xpose.msra.mxu0 0
        %1458 = vmatprep.subr.bf16.mxu0 0
        %1459 = vmatpush2.bf16.xpose.msra.mxu0 0
        %1460 = vmatprep.subr.bf16.mxu0 0
        %1461 = vmatpush2.bf16.xpose.msra.mxu0 0
        %1462 = vmatprep.subr.bf16.mxu0 0
        %1463 = vmatpush2.bf16.xpose.msra.mxu0 0
        %1464 = vmatprep.subr.bf16.mxu0 0
        %1465 = vmatpush2.bf16.xpose.msra.mxu0 0
        %1466 = vmatprep.subr.bf16.mxu0 0
        %1467 = vmatpush2.bf16.xpose.msra.mxu0 0
        %1468 = vmatprep.mubr.bf16.mxu0 0
        %1469 = vmatmul.mubr.bf16.gmra.mxu0 %v1431
        %v1470 = vpop.f32.mrf.mxu0
        %v1471 = vadd.f32 0.0, %v1470
        %v1472 = vpop.f32.mrf.mxu0
        %v1473 = vpop.f32.mrf.mxu0
        %v1474 = vadd.f32 0.0, %v1473
        %v1475 = vpop.f32.mrf.mxu0
        %1476 = vdwg.mxu0
        %v1477 = vsel %vm560, %v1471, -inf
        %v1478 = vsel %vm561, %v1474, -inf
        %v1479 = vsel %vm936, %v1477, -inf
        %1480 = vmax.xlane.f32.xlu0 %v1479
        %v1481 = vpop.xlane.xlu0 %1480
        %v1482 = vsel %vm936, %v1478, -inf
        %1483 = vmax.xlane.f32.xlu0 %v1482
        %v1484 = vpop.xlane.xlu0 %1483
        %v1485 = vsub.f32 %v1477, %v1481
        %v1486 = vsub.f32 %v1478, %v1484
        %v1487 = vmul.f32 %v1485, 1.442695
        %v1488 = vpow.pop %v1487
        %v1489 = vmul.f32 %v1486, 1.442695
        %v1490 = vpow.pop %v1489
        %v1491 = vsel %vm936, %v1488, 0.0
        %1492 = vadd.xlane.f32.xlu0 %v1491
        %v1493 = vpop.xlane.xlu0 %1492
        %v1494 = vsel %vm936, %v1490, 0.0
        %1495 = vadd.xlane.f32.xlu0 %v1494
        %v1496 = vpop.xlane.xlu0 %1495
        %v1497 = vrcp.pop %v1493
        %v1498 = vrcp.pop %v1496
        %v1499 = vmul.f32 %v1488, %v1497
        %v1500 = vmul.f32 %v1490, %v1498
        %v1501 = vpack.c.bf16 %v1500, %v1499
        %1502 = vrot.lane.b32.xlu0 %v885, 32
        %v1503 = vpop.permute.xlu0 %1502
        %v1506 = vsel %vm936, %v1501, 0
        %1508 = vmatprep.subr.bf16.mxu0 0
        %1509 = vmatpush1.bf16.msra.mxu0 0
        %1510 = vmatprep.subr.bf16.mxu0 0
        %1511 = vmatpush1.bf16.msra.mxu0 0
        %1512 = vmatprep.subr.bf16.mxu0 0
        %1513 = vmatpush1.bf16.msra.mxu0 0
        %1514 = vmatprep.subr.bf16.mxu0 0
        %1515 = vmatpush1.bf16.msra.mxu0 0
        %1516 = vmatprep.subr.bf16.mxu0 0
        %1517 = vmatpush1.bf16.msra.mxu0 0
        %1518 = vmatprep.subr.bf16.mxu0 0
        %1519 = vmatpush1.bf16.msra.mxu0 0
        %1520 = vmatprep.subr.bf16.mxu0 0
        %1521 = vmatpush1.bf16.msra.mxu0 0
        %1522 = vmatprep.subr.bf16.mxu0 0
        %1523 = vmatpush1.bf16.msra.mxu0 %v1503
        %1524 = vmatprep.subr.bf16.mxu0 0
        %1525 = vmatpush2.bf16.msra.mxu0 0
        %1526 = vmatprep.subr.bf16.mxu0 0
        %1527 = vmatpush2.bf16.msra.mxu0 0
        %1528 = vmatprep.subr.bf16.mxu0 0
        %1529 = vmatpush2.bf16.msra.mxu0 0
        %1530 = vmatprep.subr.bf16.mxu0 0
        %1531 = vmatpush2.bf16.msra.mxu0 0
        %1532 = vmatprep.subr.bf16.mxu0 0
        %1533 = vmatpush2.bf16.msra.mxu0 0
        %1534 = vmatprep.subr.bf16.mxu0 0
        %1535 = vmatpush2.bf16.msra.mxu0 0
        %1536 = vmatprep.subr.bf16.mxu0 0
        %1537 = vmatpush2.bf16.msra.mxu0 0
        %1538 = vmatprep.subr.bf16.mxu0 0
        %1539 = vmatpush2.bf16.msra.mxu0 0
        %1540 = vmatprep.mubr.bf16.mxu0 0
        %1541 = vmatmul.mubr.bf16.gmra.mxu0 %v1506
        %v1542 = vpop.f32.mrf.mxu0
        %v1543 = vadd.f32 0.0, %v1542
        %v1544 = vpop.f32.mrf.mxu0
        %v1545 = vpop.f32.mrf.mxu0
        %v1546 = vadd.f32 0.0, %v1545
        %v1547 = vpop.f32.mrf.mxu0
        %1548 = vdwg.mxu0
        %v1549 = vpack.c.bf16 %v1546, %v1543
        %v1554 = vunpack.c.l.b16 %v606
        %v1555 = vunpack.c.l.b16 %v607
        %v1556 = vunpack.c.l.b16 %v608
        %v1557 = vunpack.c.l.b16 %v609
        %v1558 = vpack.c.b16 %v1555, %v1554
        %v1559 = vpack.c.b16 %v1557, %v1556
        %v1563 = vsel %vm886, %v1549, 0
        %1565 = vmatprep.subr.bf16.mxu0 0
        %1566 = vmatpush1.bf16.msra.mxu0 0
        %1567 = vmatprep.subr.bf16.mxu0 0
        %1568 = vmatpush1.bf16.msra.mxu0 0
        %1569 = vmatprep.subr.bf16.mxu0 0
        %1570 = vmatpush1.bf16.msra.mxu0 0
        %1571 = vmatprep.subr.bf16.mxu0 0
        %1572 = vmatpush1.bf16.msra.mxu0 0
        %1573 = vmatprep.subr.bf16.mxu0 0
        %1574 = vmatpush1.bf16.msra.mxu0 0
        %1575 = vmatprep.subr.bf16.mxu0 0
        %1576 = vmatpush1.bf16.msra.mxu0 0
        %1577 = vmatprep.subr.bf16.mxu0 0
        %1578 = vmatpush1.bf16.msra.mxu0 %v1559
        %1579 = vmatprep.subr.bf16.mxu0 0
        %1580 = vmatpush1.bf16.msra.mxu0 %v1558
        %1581 = vmatprep.subr.bf16.mxu0 0
        %1582 = vmatpush2.bf16.msra.mxu0 0
        %1583 = vmatprep.subr.bf16.mxu0 0
        %1584 = vmatpush2.bf16.msra.mxu0 0
        %1585 = vmatprep.subr.bf16.mxu0 0
        %1586 = vmatpush2.bf16.msra.mxu0 0
        %1587 = vmatprep.subr.bf16.mxu0 0
        %1588 = vmatpush2.bf16.msra.mxu0 0
        %1589 = vmatprep.subr.bf16.mxu0 0
        %1590 = vmatpush2.bf16.msra.mxu0 0
        %1591 = vmatprep.subr.bf16.mxu0 0
        %1592 = vmatpush2.bf16.msra.mxu0 0
        %1593 = vmatprep.subr.bf16.mxu0 0
        %1594 = vmatpush2.bf16.msra.mxu0 0
        %1595 = vmatprep.subr.bf16.mxu0 0
        %1596 = vmatpush2.bf16.msra.mxu0 0
        %1597 = vmatprep.mubr.bf16.mxu0 0
        %1598 = vmatmul.mubr.bf16.gmra.mxu0 %v1563
        %v1599 = vpop.f32.mrf.mxu0
        %v1600 = vadd.f32 0.0, %v1599
        %v1601 = vpop.f32.mrf.mxu0
        %v1602 = vpop.f32.mrf.mxu0
        %v1603 = vadd.f32 0.0, %v1602
        %v1604 = vpop.f32.mrf.mxu0
        %1605 = vdwg.mxu0
        %v1606 = vadd.f32 %v1424, %v1600
        %v1607 = vadd.f32 %v1425, %v1603
        %v1608 = vadd.f32 %v553, %v1606
        %v1609 = vadd.f32 %v554, %v1607
        %v1610 = vld [vmem:[%s6] sm:$0x1]
        %v1612 = vlaneseq
        %v1613 = vshrl.u32 %v1612, 7
        %v1614 = vsub.s32 0, %v1613
        %v1615 = vrot.slane %v1610, %v1614
        %v1617 = vadd.f32 %v1608, %v1615
        %v1618 = vadd.f32 %v1609, %v1615
        %v1619 = vld [vmem:[%s7] sm:$0x1]
        %v1620 = vld [vmem:[%s8] sm:$0x1]
        %1621 = vadd.xlane.f32.xlu0 %v1617
        %v1622 = vpop.xlane.xlu0 %1621
        %1623 = vadd.xlane.f32.xlu0 %v1618
        %v1624 = vpop.xlane.xlu0 %1623
        %v1625 = vmul.f32 %v1622, %v616
        %v1626 = vmul.f32 %v1624, %v616
        %v1627 = vsub.f32 %v1617, %v1625
        %v1628 = vsub.f32 %v1618, %v1626
        %v1629 = vmul.f32 %v1627, %v1627
        %v1630 = vmul.f32 %v1628, %v1628
        %1631 = vadd.xlane.f32.xlu0 %v1629
        %v1632 = vpop.xlane.xlu0 %1631
        %1633 = vadd.xlane.f32.xlu0 %v1630
        %v1634 = vpop.xlane.xlu0 %1633
        %v1635 = vmul.f32 %v1632, %v616
        %v1636 = vmul.f32 %v1634, %v616
        %v1637 = vadd.f32 %v1635, 1e-05
        %v1638 = vadd.f32 %v1636, 1e-05
        %v1639 = vrsqrt.pop %v1637
        %v1640 = vrsqrt.pop %v1638
        %v1641 = vmul.f32 %v1627, %v1639
        %v1642 = vmul.f32 %v1628, %v1640
        %v1644 = vlaneseq
        %v1645 = vshrl.u32 %v1644, 7
        %v1646 = vsub.s32 0, %v1645
        %v1647 = vrot.slane %v1619, %v1646
        %v1649 = vmul.f32 %v1641, %v1647
        %v1650 = vmul.f32 %v1642, %v1647
        %v1652 = vlaneseq
        %v1653 = vshrl.u32 %v1652, 7
        %v1654 = vsub.s32 0, %v1653
        %v1655 = vrot.slane %v1620, %v1654
        %v1657 = vadd.f32 %v1649, %v1655
        %v1658 = vadd.f32 %v1650, %v1655
        %v1659 = vpack.c.bf16 %v1658, %v1657
        %v1660 = vld [vmem:[%s9] sm:$0xff]
        %v1661 = vld [vmem:[%s9 + $0x8] sm:$0xff]
        %v1662 = vld [vmem:[%s9 + $0x10] sm:$0xff]
        %v1663 = vld [vmem:[%s9 + $0x18] sm:$0xff]
        %v1664 = vld [vmem:[%s9 + $0x20] sm:$0xff]
        %v1665 = vld [vmem:[%s9 + $0x28] sm:$0xff]
        %v1666 = vld [vmem:[%s9 + $0x30] sm:$0xff]
        %v1667 = vld [vmem:[%s9 + $0x38] sm:$0xff]
        %v1668 = vld [vmem:[%s9 + $0x40] sm:$0xff]
        %v1669 = vld [vmem:[%s9 + $0x48] sm:$0xff]
        %v1670 = vld [vmem:[%s9 + $0x50] sm:$0xff]
        %v1671 = vld [vmem:[%s9 + $0x58] sm:$0xff]
        %v1672 = vld [vmem:[%s9 + $0x60] sm:$0xff]
        %v1673 = vld [vmem:[%s9 + $0x68] sm:$0xff]
        %v1674 = vld [vmem:[%s9 + $0x70] sm:$0xff]
        %v1675 = vld [vmem:[%s9 + $0x78] sm:$0xff]
        %v1676 = vld [vmem:[%s10] sm:$0x3]
        %v1678 = vlaneseq
        %v1679 = vshrl.u32 %v1678, 7
        %v1680 = vsub.s32 0, %v1679
        %v1681 = vrot.slane %v1676, %v1680
        %v1682 = vlaneseq
        %v1683 = vshrl.u32 %v1682, 7
        %v1684 = vsub.s32 1, %v1683
        %v1685 = vrot.slane %v1676, %v1684
        %v1704 = vunpack.c.l.b16 %v1660
        %v1705 = vunpack.c.h.b16 %v1660
        %v1706 = vunpack.c.l.b16 %v1661
        %v1707 = vunpack.c.h.b16 %v1661
        %v1708 = vunpack.c.l.b16 %v1662
        %v1709 = vunpack.c.h.b16 %v1662
        %v1710 = vunpack.c.l.b16 %v1663
        %v1711 = vunpack.c.h.b16 %v1663
        %v1712 = vunpack.c.l.b16 %v1664
        %v1713 = vunpack.c.h.b16 %v1664
        %v1714 = vunpack.c.l.b16 %v1665
        %v1715 = vunpack.c.h.b16 %v1665
        %v1716 = vunpack.c.l.b16 %v1666
        %v1717 = vunpack.c.h.b16 %v1666
        %v1718 = vunpack.c.l.b16 %v1667
        %v1719 = vunpack.c.h.b16 %v1667
        %v1720 = vunpack.c.l.b16 %v1668
        %v1721 = vunpack.c.h.b16 %v1668
        %v1722 = vunpack.c.l.b16 %v1669
        %v1723 = vunpack.c.h.b16 %v1669
        %v1724 = vunpack.c.l.b16 %v1670
        %v1725 = vunpack.c.h.b16 %v1670
        %v1726 = vunpack.c.l.b16 %v1671
        %v1727 = vunpack.c.h.b16 %v1671
        %v1728 = vunpack.c.l.b16 %v1672
        %v1729 = vunpack.c.h.b16 %v1672
        %v1730 = vunpack.c.l.b16 %v1673
        %v1731 = vunpack.c.h.b16 %v1673
        %v1732 = vunpack.c.l.b16 %v1674
        %v1733 = vunpack.c.h.b16 %v1674
        %v1734 = vunpack.c.l.b16 %v1675
        %v1735 = vunpack.c.h.b16 %v1675
        %v1736 = vpack.c.b16 %v1706, %v1704
        %v1737 = vpack.c.b16 %v1707, %v1705
        %v1738 = vpack.c.b16 %v1710, %v1708
        %v1739 = vpack.c.b16 %v1711, %v1709
        %v1740 = vpack.c.b16 %v1714, %v1712
        %v1741 = vpack.c.b16 %v1715, %v1713
        %v1742 = vpack.c.b16 %v1718, %v1716
        %v1743 = vpack.c.b16 %v1719, %v1717
        %v1744 = vpack.c.b16 %v1722, %v1720
        %v1745 = vpack.c.b16 %v1723, %v1721
        %v1746 = vpack.c.b16 %v1726, %v1724
        %v1747 = vpack.c.b16 %v1727, %v1725
        %v1748 = vpack.c.b16 %v1730, %v1728
        %v1749 = vpack.c.b16 %v1731, %v1729
        %v1750 = vpack.c.b16 %v1734, %v1732
        %v1751 = vpack.c.b16 %v1735, %v1733
        %1768 = vmatprep.subr.bf16.mxu0 %v1751
        %1769 = vmatpush1.bf16.msra.mxu0 %v1750
        %1770 = vmatprep.subr.bf16.mxu0 %v1749
        %1771 = vmatpush1.bf16.msra.mxu0 %v1748
        %1772 = vmatprep.subr.bf16.mxu0 %v1747
        %1773 = vmatpush1.bf16.msra.mxu0 %v1746
        %1774 = vmatprep.subr.bf16.mxu0 %v1745
        %1775 = vmatpush1.bf16.msra.mxu0 %v1744
        %1776 = vmatprep.subr.bf16.mxu0 %v1743
        %1777 = vmatpush1.bf16.msra.mxu0 %v1742
        %1778 = vmatprep.subr.bf16.mxu0 %v1741
        %1779 = vmatpush1.bf16.msra.mxu0 %v1740
        %1780 = vmatprep.subr.bf16.mxu0 %v1739
        %1781 = vmatpush1.bf16.msra.mxu0 %v1738
        %1782 = vmatprep.subr.bf16.mxu0 %v1737
        %1783 = vmatpush1.bf16.msra.mxu0 %v1736
        %1784 = vmatprep.subr.bf16.mxu0 0
        %1785 = vmatpush2.bf16.msra.mxu0 0
        %1786 = vmatprep.subr.bf16.mxu0 0
        %1787 = vmatpush2.bf16.msra.mxu0 0
        %1788 = vmatprep.subr.bf16.mxu0 0
        %1789 = vmatpush2.bf16.msra.mxu0 0
        %1790 = vmatprep.subr.bf16.mxu0 0
        %1791 = vmatpush2.bf16.msra.mxu0 0
        %1792 = vmatprep.subr.bf16.mxu0 0
        %1793 = vmatpush2.bf16.msra.mxu0 0
        %1794 = vmatprep.subr.bf16.mxu0 0
        %1795 = vmatpush2.bf16.msra.mxu0 0
        %1796 = vmatprep.subr.bf16.mxu0 0
        %1797 = vmatpush2.bf16.msra.mxu0 0
        %1798 = vmatprep.subr.bf16.mxu0 0
        %1799 = vmatpush2.bf16.msra.mxu0 0
        %1800 = vmatprep.mubr.bf16.mxu0 0
        %1801 = vmatmul.mubr.bf16.gmra.mxu0 %v1659
        %v1802 = vpop.f32.mrf.mxu0
        %v1803 = vadd.f32 %v1681, %v1802
        %v1804 = vpop.f32.mrf.mxu0
        %v1805 = vadd.f32 %v1685, %v1804
        %v1806 = vpop.f32.mrf.mxu0
        %v1807 = vadd.f32 %v1681, %v1806
        %v1808 = vpop.f32.mrf.mxu0
        %v1809 = vadd.f32 %v1685, %v1808
        %1810 = vdwg.mxu0
        %v1811 = vmul.f32 %v1803, 0.5
        %v1812 = vmul.f32 %v1805, 0.5
        %v1813 = vmul.f32 %v1807, 0.5
        %v1814 = vmul.f32 %v1809, 0.5
        %v1815 = vmul.f32 %v1803, 0.044715
        %v1816 = vmul.f32 %v1805, 0.044715
        %v1817 = vmul.f32 %v1807, 0.044715
        %v1818 = vmul.f32 %v1809, 0.044715
        %v1819 = vmul.f32 %v1815, %v1803
        %v1820 = vmul.f32 %v1816, %v1805
        %v1821 = vmul.f32 %v1817, %v1807
        %v1822 = vmul.f32 %v1818, %v1809
        %v1823 = vmul.f32 %v1819, %v1803
        %v1824 = vmul.f32 %v1820, %v1805
        %v1825 = vmul.f32 %v1821, %v1807
        %v1826 = vmul.f32 %v1822, %v1809
        %v1827 = vadd.f32 %v1803, %v1823
        %v1828 = vadd.f32 %v1805, %v1824
        %v1829 = vadd.f32 %v1807, %v1825
        %v1830 = vadd.f32 %v1809, %v1826
        %v1831 = vmul.f32 %v1827, 0.7978846
        %v1832 = vmul.f32 %v1828, 0.7978846
        %v1833 = vmul.f32 %v1829, 0.7978846
        %v1834 = vmul.f32 %v1830, 0.7978846
        %v1835 = vtanh.pop %v1831
        %v1836 = vtanh.pop %v1832
        %v1837 = vtanh.pop %v1833
        %v1838 = vtanh.pop %v1834
        %v1839 = vadd.f32 %v1835, 1.0
        %v1840 = vadd.f32 %v1836, 1.0
        %v1841 = vadd.f32 %v1837, 1.0
        %v1842 = vadd.f32 %v1838, 1.0
        %v1843 = vmul.f32 %v1811, %v1839
        %v1844 = vmul.f32 %v1812, %v1840
        %v1845 = vmul.f32 %v1813, %v1841
        %v1846 = vmul.f32 %v1814, %v1842
        %v1847 = vpack.c.bf16 %v1845, %v1843
        %v1848 = vpack.c.bf16 %v1846, %v1844
        %v1849 = vld [vmem:[#allocation4] sm:$0xf]
        %v1850 = vld [vmem:[#allocation4 + $0x4] sm:$0xf]
        %v1851 = vld [vmem:[#allocation4 + $0x8] sm:$0xf]
        %v1852 = vld [vmem:[#allocation4 + $0xc] sm:$0xf]
        %v1853 = vld [vmem:[#allocation4 + $0x10] sm:$0xf]
        %v1854 = vld [vmem:[#allocation4 + $0x14] sm:$0xf]
        %v1855 = vld [vmem:[#allocation4 + $0x18] sm:$0xf]
        %v1856 = vld [vmem:[#allocation4 + $0x1c] sm:$0xf]
        %v1857 = vld [vmem:[#allocation4 + $0x20] sm:$0xf]
        %v1858 = vld [vmem:[#allocation4 + $0x24] sm:$0xf]
        %v1859 = vld [vmem:[#allocation4 + $0x28] sm:$0xf]
        %v1860 = vld [vmem:[#allocation4 + $0x2c] sm:$0xf]
        %v1861 = vld [vmem:[#allocation4 + $0x30] sm:$0xf]
        %v1862 = vld [vmem:[#allocation4 + $0x34] sm:$0xf]
        %v1863 = vld [vmem:[#allocation4 + $0x38] sm:$0xf]
        %v1864 = vld [vmem:[#allocation4 + $0x3c] sm:$0xf]
        %v1865 = vld [vmem:[#allocation4 + $0x40] sm:$0xf]
        %v1866 = vld [vmem:[#allocation4 + $0x44] sm:$0xf]
        %v1867 = vld [vmem:[#allocation4 + $0x48] sm:$0xf]
        %v1868 = vld [vmem:[#allocation4 + $0x4c] sm:$0xf]
        %v1869 = vld [vmem:[#allocation4 + $0x50] sm:$0xf]
        %v1870 = vld [vmem:[#allocation4 + $0x54] sm:$0xf]
        %v1871 = vld [vmem:[#allocation4 + $0x58] sm:$0xf]
        %v1872 = vld [vmem:[#allocation4 + $0x5c] sm:$0xf]
        %v1873 = vld [vmem:[#allocation4 + $0x60] sm:$0xf]
        %v1874 = vld [vmem:[#allocation4 + $0x64] sm:$0xf]
        %v1875 = vld [vmem:[#allocation4 + $0x68] sm:$0xf]
        %v1876 = vld [vmem:[#allocation4 + $0x6c] sm:$0xf]
        %v1877 = vld [vmem:[#allocation4 + $0x70] sm:$0xf]
        %v1878 = vld [vmem:[#allocation4 + $0x74] sm:$0xf]
        %v1879 = vld [vmem:[#allocation4 + $0x78] sm:$0xf]
        %v1880 = vld [vmem:[#allocation4 + $0x7c] sm:$0xf]
        %v1913 = vunpack.c.l.b16 %v1849
        %v1914 = vunpack.c.l.b16 %v1850
        %v1915 = vunpack.c.l.b16 %v1851
        %v1916 = vunpack.c.l.b16 %v1852
        %v1917 = vunpack.c.l.b16 %v1853
        %v1918 = vunpack.c.l.b16 %v1854
        %v1919 = vunpack.c.l.b16 %v1855
        %v1920 = vunpack.c.l.b16 %v1856
        %v1921 = vunpack.c.l.b16 %v1857
        %v1922 = vunpack.c.l.b16 %v1858
        %v1923 = vunpack.c.l.b16 %v1859
        %v1924 = vunpack.c.l.b16 %v1860
        %v1925 = vunpack.c.l.b16 %v1861
        %v1926 = vunpack.c.l.b16 %v1862
        %v1927 = vunpack.c.l.b16 %v1863
        %v1928 = vunpack.c.l.b16 %v1864
        %v1929 = vunpack.c.l.b16 %v1865
        %v1930 = vunpack.c.l.b16 %v1866
        %v1931 = vunpack.c.l.b16 %v1867
        %v1932 = vunpack.c.l.b16 %v1868
        %v1933 = vunpack.c.l.b16 %v1869
        %v1934 = vunpack.c.l.b16 %v1870
        %v1935 = vunpack.c.l.b16 %v1871
        %v1936 = vunpack.c.l.b16 %v1872
        %v1937 = vunpack.c.l.b16 %v1873
        %v1938 = vunpack.c.l.b16 %v1874
        %v1939 = vunpack.c.l.b16 %v1875
        %v1940 = vunpack.c.l.b16 %v1876
        %v1941 = vunpack.c.l.b16 %v1877
        %v1942 = vunpack.c.l.b16 %v1878
        %v1943 = vunpack.c.l.b16 %v1879
        %v1944 = vunpack.c.l.b16 %v1880
        %v1945 = vpack.c.b16 %v1914, %v1913
        %v1946 = vpack.c.b16 %v1916, %v1915
        %v1947 = vpack.c.b16 %v1918, %v1917
        %v1948 = vpack.c.b16 %v1920, %v1919
        %v1949 = vpack.c.b16 %v1922, %v1921
        %v1950 = vpack.c.b16 %v1924, %v1923
        %v1951 = vpack.c.b16 %v1926, %v1925
        %v1952 = vpack.c.b16 %v1928, %v1927
        %v1953 = vpack.c.b16 %v1930, %v1929
        %v1954 = vpack.c.b16 %v1932, %v1931
        %v1955 = vpack.c.b16 %v1934, %v1933
        %v1956 = vpack.c.b16 %v1936, %v1935
        %v1957 = vpack.c.b16 %v1938, %v1937
        %v1958 = vpack.c.b16 %v1940, %v1939
        %v1959 = vpack.c.b16 %v1942, %v1941
        %v1960 = vpack.c.b16 %v1944, %v1943
        %1977 = vmatprep.subr.bf16.mxu0 0
        %1978 = vmatpush1.bf16.msra.mxu0 %v1952
        %1979 = vmatprep.subr.bf16.mxu0 0
        %1980 = vmatpush1.bf16.msra.mxu0 %v1951
        %1981 = vmatprep.subr.bf16.mxu0 0
        %1982 = vmatpush1.bf16.msra.mxu0 %v1950
        %1983 = vmatprep.subr.bf16.mxu0 0
        %1984 = vmatpush1.bf16.msra.mxu0 %v1949
        %1985 = vmatprep.subr.bf16.mxu0 0
        %1986 = vmatpush1.bf16.msra.mxu0 %v1948
        %1987 = vmatprep.subr.bf16.mxu0 0
        %1988 = vmatpush1.bf16.msra.mxu0 %v1947
        %1989 = vmatprep.subr.bf16.mxu0 0
        %1990 = vmatpush1.bf16.msra.mxu0 %v1946
        %1991 = vmatprep.subr.bf16.mxu0 0
        %1992 = vmatpush1.bf16.msra.mxu0 %v1945
        %1993 = vmatprep.subr.bf16.mxu0 0
        %1994 = vmatpush2.bf16.msra.mxu0 %v1960
        %1995 = vmatprep.subr.bf16.mxu0 0
        %1996 = vmatpush2.bf16.msra.mxu0 %v1959
        %1997 = vmatprep.subr.bf16.mxu0 0
        %1998 = vmatpush2.bf16.msra.mxu0 %v1958
        %1999 = vmatprep.subr.bf16.mxu0 0
        %2000 = vmatpush2.bf16.msra.mxu0 %v1957
        %2001 = vmatprep.subr.bf16.mxu0 0
        %2002 = vmatpush2.bf16.msra.mxu0 %v1956
        %2003 = vmatprep.subr.bf16.mxu0 0
        %2004 = vmatpush2.bf16.msra.mxu0 %v1955
        %2005 = vmatprep.subr.bf16.mxu0 0
        %2006 = vmatpush2.bf16.msra.mxu0 %v1954
        %2007 = vmatprep.subr.bf16.mxu0 0
        %2008 = vmatpush2.bf16.msra.mxu0 %v1953
        %2009 = vmatprep.mubr.bf16.mxu0 %v1848
        %2010 = vmatmul.mubr.bf16.gmra.mxu0 %v1847
        %v2011 = vpop.f32.mrf.mxu0
        %v2012 = vadd.f32 0.0, %v2011
        %v2013 = vpop.f32.mrf.mxu0
        %v2014 = vpop.f32.mrf.mxu0
        %v2015 = vadd.f32 0.0, %v2014
        %v2016 = vpop.f32.mrf.mxu0
        %2017 = vdwg.mxu0
        %v2018 = vadd.f32 %v1617, %v2012
        %v2019 = vadd.f32 %v1618, %v2015
        %v2020 = vld [vmem:[%s12] sm:$0x1]
        %v2022 = vlaneseq
        %v2023 = vshrl.u32 %v2022, 7
        %v2024 = vsub.s32 0, %v2023
        %v2025 = vrot.slane %v2020, %v2024
        %v2027 = vadd.f32 %v2018, %v2025
        %v2028 = vadd.f32 %v2019, %v2025
        %s2029 = scalar_lea.vmem %s3, 192
        %v2030 = vld [vmem:[%s2029] sm:$0xff]
        %v2031 = vld [vmem:[%s2029 + $0x8] sm:$0xf]
        %v2032 = vld [vmem:[%s2029 + $0xc] sm:$0xff]
        %v2033 = vld [vmem:[%s2029 + $0x14] sm:$0xf]
        %v2034 = vld [vmem:[%s2029 + $0x18] sm:$0xff]
        %v2035 = vld [vmem:[%s2029 + $0x20] sm:$0xf]
        %v2036 = vld [vmem:[%s2029 + $0x24] sm:$0xff]
        %v2037 = vld [vmem:[%s2029 + $0x2c] sm:$0xf]
        %v2038 = vld [vmem:[%s2029 + $0x30] sm:$0xff]
        %v2039 = vld [vmem:[%s2029 + $0x38] sm:$0xf]
        %v2040 = vld [vmem:[%s2029 + $0x3c] sm:$0xff]
        %v2041 = vld [vmem:[%s2029 + $0x44] sm:$0xf]
        %v2042 = vld [vmem:[%s2029 + $0x48] sm:$0xff]
        %v2043 = vld [vmem:[%s2029 + $0x50] sm:$0xf]
        %v2044 = vld [vmem:[%s2029 + $0x54] sm:$0xff]
        %v2045 = vld [vmem:[%s2029 + $0x5c] sm:$0xf]
        %v2046 = vld [vmem:[%s2029 + $0x60] sm:$0xff]
        %v2047 = vld [vmem:[%s2029 + $0x68] sm:$0xf]
        %v2048 = vld [vmem:[%s2029 + $0x6c] sm:$0xff]
        %v2049 = vld [vmem:[%s2029 + $0x74] sm:$0xf]
        %v2050 = vld [vmem:[%s2029 + $0x78] sm:$0xff]
        %v2051 = vld [vmem:[%s2029 + $0x80] sm:$0xf]
        %v2052 = vld [vmem:[%s2029 + $0x84] sm:$0xff]
        %v2053 = vld [vmem:[%s2029 + $0x8c] sm:$0xf]
        %v2054 = vld [vmem:[%s2029 + $0x90] sm:$0xff]
        %v2055 = vld [vmem:[%s2029 + $0x98] sm:$0xf]
        %v2056 = vld [vmem:[%s2029 + $0x9c] sm:$0xff]
        %v2057 = vld [vmem:[%s2029 + $0xa4] sm:$0xf]
        %v2058 = vld [vmem:[%s2029 + $0xa8] sm:$0xff]
        %v2059 = vld [vmem:[%s2029 + $0xb0] sm:$0xf]
        %v2060 = vld [vmem:[%s2029 + $0xb4] sm:$0xff]
        %v2061 = vld [vmem:[%s2029 + $0xbc] sm:$0xf]
        %s2062 = scalar_lea.vmem [#allocation2], 64
        %v2063 = vld [vmem:[%s2062] sm:$0xf]
        %v2064 = vld [vmem:[%s2062 + $0x4] sm:$0xf]
        %v2065 = vld [vmem:[%s2062 + $0x8] sm:$0xf]
        %v2066 = vld [vmem:[%s2062 + $0xc] sm:$0xf]
        %v2067 = vld [vmem:[%s2062 + $0x10] sm:$0xf]
        %v2068 = vld [vmem:[%s2062 + $0x14] sm:$0xf]
        %v2069 = vld [vmem:[%s2062 + $0x18] sm:$0xf]
        %v2070 = vld [vmem:[%s2062 + $0x1c] sm:$0xf]
        %v2071 = vld [vmem:[%s2062 + $0x20] sm:$0xf]
        %v2072 = vld [vmem:[%s2062 + $0x24] sm:$0xf]
        %v2073 = vld [vmem:[%s2062 + $0x28] sm:$0xf]
        %v2074 = vld [vmem:[%s2062 + $0x2c] sm:$0xf]
        %v2075 = vld [vmem:[%s2062 + $0x30] sm:$0xf]
        %v2076 = vld [vmem:[%s2062 + $0x34] sm:$0xf]
        %v2077 = vld [vmem:[%s2062 + $0x38] sm:$0xf]
        %v2078 = vld [vmem:[%s2062 + $0x3c] sm:$0xf]
        %s2079 = scalar_lea.vmem %s1, 1
        %v2080 = vld [vmem:[%s2079] sm:$0x1]
        %s2081 = scalar_lea.vmem %s2, 1
        %v2082 = vld [vmem:[%s2081] sm:$0x1]
        %2083 = vadd.xlane.f32.xlu0 %v2027
        %v2084 = vpop.xlane.xlu0 %2083
        %2085 = vadd.xlane.f32.xlu0 %v2028
        %v2086 = vpop.xlane.xlu0 %2085
        %v2087 = vmul.f32 %v2084, %v616
        %v2088 = vmul.f32 %v2086, %v616
        %v2089 = vsub.f32 %v2027, %v2087
        %v2090 = vsub.f32 %v2028, %v2088
        %v2091 = vmul.f32 %v2089, %v2089
        %v2092 = vmul.f32 %v2090, %v2090
        %2093 = vadd.xlane.f32.xlu0 %v2091
        %v2094 = vpop.xlane.xlu0 %2093
        %2095 = vadd.xlane.f32.xlu0 %v2092
        %v2096 = vpop.xlane.xlu0 %2095
        %v2097 = vmul.f32 %v2094, %v616
        %v2098 = vmul.f32 %v2096, %v616
        %v2099 = vadd.f32 %v2097, 1e-05
        %v2100 = vadd.f32 %v2098, 1e-05
        %v2101 = vrsqrt.pop %v2099
        %v2102 = vrsqrt.pop %v2100
        %v2103 = vmul.f32 %v2089, %v2101
        %v2104 = vmul.f32 %v2090, %v2102
        %v2106 = vlaneseq
        %v2107 = vshrl.u32 %v2106, 7
        %v2108 = vsub.s32 0, %v2107
        %v2109 = vrot.slane %v2080, %v2108
        %v2111 = vmul.f32 %v2103, %v2109
        %v2112 = vmul.f32 %v2104, %v2109
        %v2114 = vlaneseq
        %v2115 = vshrl.u32 %v2114, 7
        %v2116 = vsub.s32 0, %v2115
        %v2117 = vrot.slane %v2082, %v2116
        %v2119 = vadd.f32 %v2111, %v2117
        %v2120 = vadd.f32 %v2112, %v2117
        %v2121 = vpack.c.bf16 %v2120, %v2119
        %s2122 = scalar_lea.vmem %s4, 3
        %v2123 = vld [vmem:[%s2122] sm:$0x7]
        %v2125 = vlaneseq
        %v2126 = vshrl.u32 %v2125, 7
        %v2127 = vsub.s32 0, %v2126
        %v2128 = vrot.slane %v2123, %v2127
        %v2129 = vlaneseq
        %v2130 = vshrl.u32 %v2129, 7
        %v2131 = vsub.s32 1, %v2130
        %v2132 = vrot.slane %v2123, %v2131
        %v2133 = vlaneseq
        %v2134 = vshrl.u32 %v2133, 7
        %v2135 = vsub.s32 2, %v2134
        %v2136 = vrot.slane %v2123, %v2135
        %v2172 = vunpack.c.l.b16 %v2030
        %v2173 = vunpack.c.h.b16 %v2030
        %v2174 = vunpack.c.l.b16 %v2031
        %v2175 = vunpack.c.l.b16 %v2032
        %v2176 = vunpack.c.h.b16 %v2032
        %v2177 = vunpack.c.l.b16 %v2033
        %v2178 = vunpack.c.l.b16 %v2034
        %v2179 = vunpack.c.h.b16 %v2034
        %v2180 = vunpack.c.l.b16 %v2035
        %v2181 = vunpack.c.l.b16 %v2036
        %v2182 = vunpack.c.h.b16 %v2036
        %v2183 = vunpack.c.l.b16 %v2037
        %v2184 = vunpack.c.l.b16 %v2038
        %v2185 = vunpack.c.h.b16 %v2038
        %v2186 = vunpack.c.l.b16 %v2039
        %v2187 = vunpack.c.l.b16 %v2040
        %v2188 = vunpack.c.h.b16 %v2040
        %v2189 = vunpack.c.l.b16 %v2041
        %v2190 = vunpack.c.l.b16 %v2042
        %v2191 = vunpack.c.h.b16 %v2042
        %v2192 = vunpack.c.l.b16 %v2043
        %v2193 = vunpack.c.l.b16 %v2044
        %v2194 = vunpack.c.h.b16 %v2044
        %v2195 = vunpack.c.l.b16 %v2045
        %v2196 = vunpack.c.l.b16 %v2046
        %v2197 = vunpack.c.h.b16 %v2046
        %v2198 = vunpack.c.l.b16 %v2047
        %v2199 = vunpack.c.l.b16 %v2048
        %v2200 = vunpack.c.h.b16 %v2048
        %v2201 = vunpack.c.l.b16 %v2049
        %v2202 = vunpack.c.l.b16 %v2050
        %v2203 = vunpack.c.h.b16 %v2050
        %v2204 = vunpack.c.l.b16 %v2051
        %v2205 = vunpack.c.l.b16 %v2052
        %v2206 = vunpack.c.h.b16 %v2052
        %v2207 = vunpack.c.l.b16 %v2053
        %v2208 = vunpack.c.l.b16 %v2054
        %v2209 = vunpack.c.h.b16 %v2054
        %v2210 = vunpack.c.l.b16 %v2055
        %v2211 = vunpack.c.l.b16 %v2056
        %v2212 = vunpack.c.h.b16 %v2056
        %v2213 = vunpack.c.l.b16 %v2057
        %v2214 = vunpack.c.l.b16 %v2058
        %v2215 = vunpack.c.h.b16 %v2058
        %v2216 = vunpack.c.l.b16 %v2059
        %v2217 = vunpack.c.l.b16 %v2060
        %v2218 = vunpack.c.h.b16 %v2060
        %v2219 = vunpack.c.l.b16 %v2061
        %v2220 = vpack.c.b16 %v2175, %v2172
        %v2221 = vpack.c.b16 %v2176, %v2173
        %v2222 = vpack.c.b16 %v2177, %v2174
        %v2223 = vpack.c.b16 %v2181, %v2178
        %v2224 = vpack.c.b16 %v2182, %v2179
        %v2225 = vpack.c.b16 %v2183, %v2180
        %v2226 = vpack.c.b16 %v2187, %v2184
        %v2227 = vpack.c.b16 %v2188, %v2185
        %v2228 = vpack.c.b16 %v2189, %v2186
        %v2229 = vpack.c.b16 %v2193, %v2190
        %v2230 = vpack.c.b16 %v2194, %v2191
        %v2231 = vpack.c.b16 %v2195, %v2192
        %v2232 = vpack.c.b16 %v2199, %v2196
        %v2233 = vpack.c.b16 %v2200, %v2197
        %v2234 = vpack.c.b16 %v2201, %v2198
        %v2235 = vpack.c.b16 %v2205, %v2202
        %v2236 = vpack.c.b16 %v2206, %v2203
        %v2237 = vpack.c.b16 %v2207, %v2204
        %v2238 = vpack.c.b16 %v2211, %v2208
        %v2239 = vpack.c.b16 %v2212, %v2209
        %v2240 = vpack.c.b16 %v2213, %v2210
        %v2241 = vpack.c.b16 %v2217, %v2214
        %v2242 = vpack.c.b16 %v2218, %v2215
        %v2243 = vpack.c.b16 %v2219, %v2216
        %2268 = vmatprep.subr.bf16.mxu0 %v2242
        %2269 = vmatpush1.bf16.msra.mxu0 %v2241
        %2270 = vmatprep.subr.bf16.mxu0 %v2239
        %2271 = vmatpush1.bf16.msra.mxu0 %v2238
        %2272 = vmatprep.subr.bf16.mxu0 %v2236
        %2273 = vmatpush1.bf16.msra.mxu0 %v2235
        %2274 = vmatprep.subr.bf16.mxu0 %v2233
        %2275 = vmatpush1.bf16.msra.mxu0 %v2232
        %2276 = vmatprep.subr.bf16.mxu0 %v2230
        %2277 = vmatpush1.bf16.msra.mxu0 %v2229
        %2278 = vmatprep.subr.bf16.mxu0 %v2227
        %2279 = vmatpush1.bf16.msra.mxu0 %v2226
        %2280 = vmatprep.subr.bf16.mxu0 %v2224
        %2281 = vmatpush1.bf16.msra.mxu0 %v2223
        %2282 = vmatprep.subr.bf16.mxu0 %v2221
        %2283 = vmatpush1.bf16.msra.mxu0 %v2220
        %2284 = vmatprep.subr.bf16.mxu0 0
        %2285 = vmatpush2.bf16.msra.mxu0 0
        %2286 = vmatprep.subr.bf16.mxu0 0
        %2287 = vmatpush2.bf16.msra.mxu0 0
        %2288 = vmatprep.subr.bf16.mxu0 0
        %2289 = vmatpush2.bf16.msra.mxu0 0
        %2290 = vmatprep.subr.bf16.mxu0 0
        %2291 = vmatpush2.bf16.msra.mxu0 0
        %2292 = vmatprep.subr.bf16.mxu0 0
        %2293 = vmatpush2.bf16.msra.mxu0 0
        %2294 = vmatprep.subr.bf16.mxu0 0
        %2295 = vmatpush2.bf16.msra.mxu0 0
        %2296 = vmatprep.subr.bf16.mxu0 0
        %2297 = vmatpush2.bf16.msra.mxu0 0
        %2298 = vmatprep.subr.bf16.mxu0 0
        %2299 = vmatpush2.bf16.msra.mxu0 0
        %2300 = vmatprep.mubr.bf16.mxu0 0
        %2301 = vmatmul.mubr.bf16.gmra.mxu0 %v2121
        %v2302 = vpop.f32.mrf.mxu0
        %v2303 = vadd.f32 %v2128, %v2302
        %v2304 = vpop.f32.mrf.mxu0
        %v2305 = vadd.f32 %v2132, %v2304
        %v2306 = vpop.f32.mrf.mxu0
        %v2307 = vadd.f32 %v2128, %v2306
        %v2308 = vpop.f32.mrf.mxu0
        %v2309 = vadd.f32 %v2132, %v2308
        %2310 = vdwg.mxu0
        %2311 = vmatprep.subr.bf16.mxu0 0
        %2312 = vmatpush1.bf16.msra.mxu0 %v2243
        %2313 = vmatprep.subr.bf16.mxu0 0
        %2314 = vmatpush1.bf16.msra.mxu0 %v2240
        %2315 = vmatprep.subr.bf16.mxu0 0
        %2316 = vmatpush1.bf16.msra.mxu0 %v2237
        %2317 = vmatprep.subr.bf16.mxu0 0
        %2318 = vmatpush1.bf16.msra.mxu0 %v2234
        %2319 = vmatprep.subr.bf16.mxu0 0
        %2320 = vmatpush1.bf16.msra.mxu0 %v2231
        %2321 = vmatprep.subr.bf16.mxu0 0
        %2322 = vmatpush1.bf16.msra.mxu0 %v2228
        %2323 = vmatprep.subr.bf16.mxu0 0
        %2324 = vmatpush1.bf16.msra.mxu0 %v2225
        %2325 = vmatprep.subr.bf16.mxu0 0
        %2326 = vmatpush1.bf16.msra.mxu0 %v2222
        %2327 = vmatprep.subr.bf16.mxu0 0
        %2328 = vmatpush2.bf16.msra.mxu0 0
        %2329 = vmatprep.subr.bf16.mxu0 0
        %2330 = vmatpush2.bf16.msra.mxu0 0
        %2331 = vmatprep.subr.bf16.mxu0 0
        %2332 = vmatpush2.bf16.msra.mxu0 0
        %2333 = vmatprep.subr.bf16.mxu0 0
        %2334 = vmatpush2.bf16.msra.mxu0 0
        %2335 = vmatprep.subr.bf16.mxu0 0
        %2336 = vmatpush2.bf16.msra.mxu0 0
        %2337 = vmatprep.subr.bf16.mxu0 0
        %2338 = vmatpush2.bf16.msra.mxu0 0
        %2339 = vmatprep.subr.bf16.mxu0 0
        %2340 = vmatpush2.bf16.msra.mxu0 0
        %2341 = vmatprep.subr.bf16.mxu0 0
        %2342 = vmatpush2.bf16.msra.mxu0 0
        %2343 = vmatprep.mubr.bf16.mxu0 0
        %2344 = vmatmul.mubr.bf16.gmra.mxu0 %v2121
        %v2345 = vpop.f32.mrf.mxu0
        %v2346 = vadd.f32 %v2136, %v2345
        %v2347 = vpop.f32.mrf.mxu0
        %v2348 = vpop.f32.mrf.mxu0
        %v2349 = vadd.f32 %v2136, %v2348
        %v2350 = vpop.f32.mrf.mxu0
        %2351 = vdwg.mxu0
        %v2352 = vmul.f32 %v2303, 0.17677669
        %v2353 = vmul.f32 %v2307, 0.17677669
        %v2354 = vpack.c.bf16 %v2353, %v2352
        %v2355 = vpack.c.bf16 %v2309, %v2305
        %v2356 = vpack.c.bf16 %v2349, %v2346
        %v2358 = vsel %vm886, %v2354, 0
        %v2361 = vsel %vm886, %v2355, 0
        %2363 = vmatprep.subr.bf16.mxu0 0
        %2364 = vmatpush1.bf16.xpose.msra.mxu0 0
        %2365 = vmatprep.subr.bf16.mxu0 0
        %2366 = vmatpush1.bf16.xpose.msra.mxu0 0
        %2367 = vmatprep.subr.bf16.mxu0 0
        %2368 = vmatpush1.bf16.xpose.msra.mxu0 0
        %2369 = vmatprep.subr.bf16.mxu0 0
        %2370 = vmatpush1.bf16.xpose.msra.mxu0 0
        %2371 = vmatprep.subr.bf16.mxu0 0
        %2372 = vmatpush1.bf16.xpose.msra.mxu0 0
        %2373 = vmatprep.subr.bf16.mxu0 0
        %2374 = vmatpush1.bf16.xpose.msra.mxu0 0
        %2375 = vmatprep.subr.bf16.mxu0 0
        %2376 = vmatpush1.bf16.xpose.msra.mxu0 0
        %2377 = vmatprep.subr.bf16.mxu0 0
        %2378 = vmatpush1.bf16.xpose.msra.mxu0 %v2361
        %2379 = vmatprep.subr.bf16.mxu0 0
        %2380 = vmatpush2.bf16.xpose.msra.mxu0 0
        %2381 = vmatprep.subr.bf16.mxu0 0
        %2382 = vmatpush2.bf16.xpose.msra.mxu0 0
        %2383 = vmatprep.subr.bf16.mxu0 0
        %2384 = vmatpush2.bf16.xpose.msra.mxu0 0
        %2385 = vmatprep.subr.bf16.mxu0 0
        %2386 = vmatpush2.bf16.xpose.msra.mxu0 0
        %2387 = vmatprep.subr.bf16.mxu0 0
        %2388 = vmatpush2.bf16.xpose.msra.mxu0 0
        %2389 = vmatprep.subr.bf16.mxu0 0
        %2390 = vmatpush2.bf16.xpose.msra.mxu0 0
        %2391 = vmatprep.subr.bf16.mxu0 0
        %2392 = vmatpush2.bf16.xpose.msra.mxu0 0
        %2393 = vmatprep.subr.bf16.mxu0 0
        %2394 = vmatpush2.bf16.xpose.msra.mxu0 0
        %2395 = vmatprep.mubr.bf16.mxu0 0
        %2396 = vmatmul.mubr.bf16.gmra.mxu0 %v2358
        %v2397 = vpop.f32.mrf.mxu0
        %v2398 = vadd.f32 0.0, %v2397
        %v2399 = vpop.f32.mrf.mxu0
        %v2400 = vpop.f32.mrf.mxu0
        %v2401 = vadd.f32 0.0, %v2400
        %v2402 = vpop.f32.mrf.mxu0
        %2403 = vdwg.mxu0
        %v2404 = vsel %vm560, %v2398, -inf
        %v2405 = vsel %vm561, %v2401, -inf
        %v2406 = vsel %vm936, %v2404, -inf
        %2407 = vmax.xlane.f32.xlu0 %v2406
        %v2408 = vpop.xlane.xlu0 %2407
        %v2409 = vsel %vm936, %v2405, -inf
        %2410 = vmax.xlane.f32.xlu0 %v2409
        %v2411 = vpop.xlane.xlu0 %2410
        %v2412 = vsub.f32 %v2404, %v2408
        %v2413 = vsub.f32 %v2405, %v2411
        %v2414 = vmul.f32 %v2412, 1.442695
        %v2415 = vpow.pop %v2414
        %v2416 = vmul.f32 %v2413, 1.442695
        %v2417 = vpow.pop %v2416
        %v2418 = vsel %vm936, %v2415, 0.0
        %2419 = vadd.xlane.f32.xlu0 %v2418
        %v2420 = vpop.xlane.xlu0 %2419
        %v2421 = vsel %vm936, %v2417, 0.0
        %2422 = vadd.xlane.f32.xlu0 %v2421
        %v2423 = vpop.xlane.xlu0 %2422
        %v2424 = vrcp.pop %v2420
        %v2425 = vrcp.pop %v2423
        %v2426 = vmul.f32 %v2415, %v2424
        %v2427 = vmul.f32 %v2417, %v2425
        %v2428 = vpack.c.bf16 %v2427, %v2426
        %v2430 = vsel %vm936, %v2428, 0
        %2432 = vmatprep.subr.bf16.mxu0 0
        %2433 = vmatpush1.bf16.msra.mxu0 0
        %2434 = vmatprep.subr.bf16.mxu0 0
        %2435 = vmatpush1.bf16.msra.mxu0 0
        %2436 = vmatprep.subr.bf16.mxu0 0
        %2437 = vmatpush1.bf16.msra.mxu0 0
        %2438 = vmatprep.subr.bf16.mxu0 0
        %2439 = vmatpush1.bf16.msra.mxu0 0
        %2440 = vmatprep.subr.bf16.mxu0 0
        %2441 = vmatpush1.bf16.msra.mxu0 0
        %2442 = vmatprep.subr.bf16.mxu0 0
        %2443 = vmatpush1.bf16.msra.mxu0 0
        %2444 = vmatprep.subr.bf16.mxu0 0
        %2445 = vmatpush1.bf16.msra.mxu0 0
        %2446 = vmatprep.subr.bf16.mxu0 0
        %2447 = vmatpush1.bf16.msra.mxu0 %v2356
        %2448 = vmatprep.subr.bf16.mxu0 0
        %2449 = vmatpush2.bf16.msra.mxu0 0
        %2450 = vmatprep.subr.bf16.mxu0 0
        %2451 = vmatpush2.bf16.msra.mxu0 0
        %2452 = vmatprep.subr.bf16.mxu0 0
        %2453 = vmatpush2.bf16.msra.mxu0 0
        %2454 = vmatprep.subr.bf16.mxu0 0
        %2455 = vmatpush2.bf16.msra.mxu0 0
        %2456 = vmatprep.subr.bf16.mxu0 0
        %2457 = vmatpush2.bf16.msra.mxu0 0
        %2458 = vmatprep.subr.bf16.mxu0 0
        %2459 = vmatpush2.bf16.msra.mxu0 0
        %2460 = vmatprep.subr.bf16.mxu0 0
        %2461 = vmatpush2.bf16.msra.mxu0 0
        %2462 = vmatprep.subr.bf16.mxu0 0
        %2463 = vmatpush2.bf16.msra.mxu0 0
        %2464 = vmatprep.mubr.bf16.mxu0 0
        %2465 = vmatmul.mubr.bf16.gmra.mxu0 %v2430
        %v2466 = vpop.f32.mrf.mxu0
        %v2467 = vadd.f32 0.0, %v2466
        %v2468 = vpop.f32.mrf.mxu0
        %v2469 = vpop.f32.mrf.mxu0
        %v2470 = vadd.f32 0.0, %v2469
        %v2471 = vpop.f32.mrf.mxu0
        %2472 = vdwg.mxu0
        %v2473 = vpack.c.bf16 %v2470, %v2467
        %2475 = vrot.lane.b32.xlu0 %v2354, 96
        %v2476 = vpop.permute.xlu0 %2475
        %2478 = vrot.lane.b32.xlu0 %v2355, 96
        %v2479 = vpop.permute.xlu0 %2478
        %v2481 = vsel %vm886, %v2476, 0
        %v2484 = vsel %vm886, %v2479, 0
        %2486 = vmatprep.subr.bf16.mxu0 0
        %2487 = vmatpush1.bf16.xpose.msra.mxu0 0
        %2488 = vmatprep.subr.bf16.mxu0 0
        %2489 = vmatpush1.bf16.xpose.msra.mxu0 0
        %2490 = vmatprep.subr.bf16.mxu0 0
        %2491 = vmatpush1.bf16.xpose.msra.mxu0 0
        %2492 = vmatprep.subr.bf16.mxu0 0
        %2493 = vmatpush1.bf16.xpose.msra.mxu0 0
        %2494 = vmatprep.subr.bf16.mxu0 0
        %2495 = vmatpush1.bf16.xpose.msra.mxu0 0
        %2496 = vmatprep.subr.bf16.mxu0 0
        %2497 = vmatpush1.bf16.xpose.msra.mxu0 0
        %2498 = vmatprep.subr.bf16.mxu0 0
        %2499 = vmatpush1.bf16.xpose.msra.mxu0 0
        %2500 = vmatprep.subr.bf16.mxu0 0
        %2501 = vmatpush1.bf16.xpose.msra.mxu0 %v2484
        %2502 = vmatprep.subr.bf16.mxu0 0
        %2503 = vmatpush2.bf16.xpose.msra.mxu0 0
        %2504 = vmatprep.subr.bf16.mxu0 0
        %2505 = vmatpush2.bf16.xpose.msra.mxu0 0
        %2506 = vmatprep.subr.bf16.mxu0 0
        %2507 = vmatpush2.bf16.xpose.msra.mxu0 0
        %2508 = vmatprep.subr.bf16.mxu0 0
        %2509 = vmatpush2.bf16.xpose.msra.mxu0 0
        %2510 = vmatprep.subr.bf16.mxu0 0
        %2511 = vmatpush2.bf16.xpose.msra.mxu0 0
        %2512 = vmatprep.subr.bf16.mxu0 0
        %2513 = vmatpush2.bf16.xpose.msra.mxu0 0
        %2514 = vmatprep.subr.bf16.mxu0 0
        %2515 = vmatpush2.bf16.xpose.msra.mxu0 0
        %2516 = vmatprep.subr.bf16.mxu0 0
        %2517 = vmatpush2.bf16.xpose.msra.mxu0 0
        %2518 = vmatprep.mubr.bf16.mxu0 0
        %2519 = vmatmul.mubr.bf16.gmra.mxu0 %v2481
        %v2520 = vpop.f32.mrf.mxu0
        %v2521 = vadd.f32 0.0, %v2520
        %v2522 = vpop.f32.mrf.mxu0
        %v2523 = vpop.f32.mrf.mxu0
        %v2524 = vadd.f32 0.0, %v2523
        %v2525 = vpop.f32.mrf.mxu0
        %2526 = vdwg.mxu0
        %v2527 = vsel %vm560, %v2521, -inf
        %v2528 = vsel %vm561, %v2524, -inf
        %v2529 = vsel %vm936, %v2527, -inf
        %2530 = vmax.xlane.f32.xlu0 %v2529
        %v2531 = vpop.xlane.xlu0 %2530
        %v2532 = vsel %vm936, %v2528, -inf
        %2533 = vmax.xlane.f32.xlu0 %v2532
        %v2534 = vpop.xlane.xlu0 %2533
        %v2535 = vsub.f32 %v2527, %v2531
        %v2536 = vsub.f32 %v2528, %v2534
        %v2537 = vmul.f32 %v2535, 1.442695
        %v2538 = vpow.pop %v2537
        %v2539 = vmul.f32 %v2536, 1.442695
        %v2540 = vpow.pop %v2539
        %v2541 = vsel %vm936, %v2538, 0.0
        %2542 = vadd.xlane.f32.xlu0 %v2541
        %v2543 = vpop.xlane.xlu0 %2542
        %v2544 = vsel %vm936, %v2540, 0.0
        %2545 = vadd.xlane.f32.xlu0 %v2544
        %v2546 = vpop.xlane.xlu0 %2545
        %v2547 = vrcp.pop %v2543
        %v2548 = vrcp.pop %v2546
        %v2549 = vmul.f32 %v2538, %v2547
        %v2550 = vmul.f32 %v2540, %v2548
        %v2551 = vpack.c.bf16 %v2550, %v2549
        %2553 = vrot.lane.b32.xlu0 %v2356, 96
        %v2554 = vpop.permute.xlu0 %2553
        %v2557 = vsel %vm936, %v2551, 0
        %2559 = vmatprep.subr.bf16.mxu0 0
        %2560 = vmatpush1.bf16.msra.mxu0 0
        %2561 = vmatprep.subr.bf16.mxu0 0
        %2562 = vmatpush1.bf16.msra.mxu0 0
        %2563 = vmatprep.subr.bf16.mxu0 0
        %2564 = vmatpush1.bf16.msra.mxu0 0
        %2565 = vmatprep.subr.bf16.mxu0 0
        %2566 = vmatpush1.bf16.msra.mxu0 0
        %2567 = vmatprep.subr.bf16.mxu0 0
        %2568 = vmatpush1.bf16.msra.mxu0 0
        %2569 = vmatprep.subr.bf16.mxu0 0
        %2570 = vmatpush1.bf16.msra.mxu0 0
        %2571 = vmatprep.subr.bf16.mxu0 0
        %2572 = vmatpush1.bf16.msra.mxu0 0
        %2573 = vmatprep.subr.bf16.mxu0 0
        %2574 = vmatpush1.bf16.msra.mxu0 %v2554
        %2575 = vmatprep.subr.bf16.mxu0 0
        %2576 = vmatpush2.bf16.msra.mxu0 0
        %2577 = vmatprep.subr.bf16.mxu0 0
        %2578 = vmatpush2.bf16.msra.mxu0 0
        %2579 = vmatprep.subr.bf16.mxu0 0
        %2580 = vmatpush2.bf16.msra.mxu0 0
        %2581 = vmatprep.subr.bf16.mxu0 0
        %2582 = vmatpush2.bf16.msra.mxu0 0
        %2583 = vmatprep.subr.bf16.mxu0 0
        %2584 = vmatpush2.bf16.msra.mxu0 0
        %2585 = vmatprep.subr.bf16.mxu0 0
        %2586 = vmatpush2.bf16.msra.mxu0 0
        %2587 = vmatprep.subr.bf16.mxu0 0
        %2588 = vmatpush2.bf16.msra.mxu0 0
        %2589 = vmatprep.subr.bf16.mxu0 0
        %2590 = vmatpush2.bf16.msra.mxu0 0
        %2591 = vmatprep.mubr.bf16.mxu0 0
        %2592 = vmatmul.mubr.bf16.gmra.mxu0 %v2557
        %v2593 = vpop.f32.mrf.mxu0
        %v2594 = vadd.f32 0.0, %v2593
        %v2595 = vpop.f32.mrf.mxu0
        %v2596 = vpop.f32.mrf.mxu0
        %v2597 = vadd.f32 0.0, %v2596
        %v2598 = vpop.f32.mrf.mxu0
        %2599 = vdwg.mxu0
        %v2600 = vpack.c.bf16 %v2597, %v2594
        %v2605 = vunpack.c.l.b16 %v2067
        %v2606 = vunpack.c.l.b16 %v2068
        %v2607 = vunpack.c.l.b16 %v2069
        %v2608 = vunpack.c.l.b16 %v2070
        %v2609 = vpack.c.b16 %v2606, %v2605
        %v2610 = vpack.c.b16 %v2608, %v2607
        %v2614 = vsel %vm886, %v2600, 0
        %2616 = vmatprep.subr.bf16.mxu0 0
        %2617 = vmatpush1.bf16.msra.mxu0 0
        %2618 = vmatprep.subr.bf16.mxu0 0
        %2619 = vmatpush1.bf16.msra.mxu0 0
        %2620 = vmatprep.subr.bf16.mxu0 0
        %2621 = vmatpush1.bf16.msra.mxu0 0
        %2622 = vmatprep.subr.bf16.mxu0 0
        %2623 = vmatpush1.bf16.msra.mxu0 0
        %2624 = vmatprep.subr.bf16.mxu0 0
        %2625 = vmatpush1.bf16.msra.mxu0 0
        %2626 = vmatprep.subr.bf16.mxu0 0
        %2627 = vmatpush1.bf16.msra.mxu0 0
        %2628 = vmatprep.subr.bf16.mxu0 0
        %2629 = vmatpush1.bf16.msra.mxu0 %v2610
        %2630 = vmatprep.subr.bf16.mxu0 0
        %2631 = vmatpush1.bf16.msra.mxu0 %v2609
        %2632 = vmatprep.subr.bf16.mxu0 0
        %2633 = vmatpush2.bf16.msra.mxu0 0
        %2634 = vmatprep.subr.bf16.mxu0 0
        %2635 = vmatpush2.bf16.msra.mxu0 0
        %2636 = vmatprep.subr.bf16.mxu0 0
        %2637 = vmatpush2.bf16.msra.mxu0 0
        %2638 = vmatprep.subr.bf16.mxu0 0
        %2639 = vmatpush2.bf16.msra.mxu0 0
        %2640 = vmatprep.subr.bf16.mxu0 0
        %2641 = vmatpush2.bf16.msra.mxu0 0
        %2642 = vmatprep.subr.bf16.mxu0 0
        %2643 = vmatpush2.bf16.msra.mxu0 0
        %2644 = vmatprep.subr.bf16.mxu0 0
        %2645 = vmatpush2.bf16.msra.mxu0 0
        %2646 = vmatprep.subr.bf16.mxu0 0
        %2647 = vmatpush2.bf16.msra.mxu0 0
        %2648 = vmatprep.mubr.bf16.mxu0 0
        %2649 = vmatmul.mubr.bf16.gmra.mxu0 %v2614
        %v2650 = vpop.f32.mrf.mxu0
        %v2651 = vadd.f32 0.0, %v2650
        %v2652 = vpop.f32.mrf.mxu0
        %v2653 = vpop.f32.mrf.mxu0
        %v2654 = vadd.f32 0.0, %v2653
        %v2655 = vpop.f32.mrf.mxu0
        %2656 = vdwg.mxu0
        %v2661 = vunpack.c.l.b16 %v2063
        %v2662 = vunpack.c.l.b16 %v2064
        %v2663 = vunpack.c.l.b16 %v2065
        %v2664 = vunpack.c.l.b16 %v2066
        %v2665 = vpack.c.b16 %v2662, %v2661
        %v2666 = vpack.c.b16 %v2664, %v2663
        %v2670 = vsel %vm886, %v2473, 0
        %2672 = vmatprep.subr.bf16.mxu0 0
        %2673 = vmatpush1.bf16.msra.mxu0 0
        %2674 = vmatprep.subr.bf16.mxu0 0
        %2675 = vmatpush1.bf16.msra.mxu0 0
        %2676 = vmatprep.subr.bf16.mxu0 0
        %2677 = vmatpush1.bf16.msra.mxu0 0
        %2678 = vmatprep.subr.bf16.mxu0 0
        %2679 = vmatpush1.bf16.msra.mxu0 0
        %2680 = vmatprep.subr.bf16.mxu0 0
        %2681 = vmatpush1.bf16.msra.mxu0 0
        %2682 = vmatprep.subr.bf16.mxu0 0
        %2683 = vmatpush1.bf16.msra.mxu0 0
        %2684 = vmatprep.subr.bf16.mxu0 0
        %2685 = vmatpush1.bf16.msra.mxu0 %v2666
        %2686 = vmatprep.subr.bf16.mxu0 0
        %2687 = vmatpush1.bf16.msra.mxu0 %v2665
        %2688 = vmatprep.subr.bf16.mxu0 0
        %2689 = vmatpush2.bf16.msra.mxu0 0
        %2690 = vmatprep.subr.bf16.mxu0 0
        %2691 = vmatpush2.bf16.msra.mxu0 0
        %2692 = vmatprep.subr.bf16.mxu0 0
        %2693 = vmatpush2.bf16.msra.mxu0 0
        %2694 = vmatprep.subr.bf16.mxu0 0
        %2695 = vmatpush2.bf16.msra.mxu0 0
        %2696 = vmatprep.subr.bf16.mxu0 0
        %2697 = vmatpush2.bf16.msra.mxu0 0
        %2698 = vmatprep.subr.bf16.mxu0 0
        %2699 = vmatpush2.bf16.msra.mxu0 0
        %2700 = vmatprep.subr.bf16.mxu0 0
        %2701 = vmatpush2.bf16.msra.mxu0 0
        %2702 = vmatprep.subr.bf16.mxu0 0
        %2703 = vmatpush2.bf16.msra.mxu0 0
        %2704 = vmatprep.mubr.bf16.mxu0 0
        %2705 = vmatmul.mubr.bf16.gmra.mxu0 %v2670
        %v2706 = vpop.f32.mrf.mxu0
        %v2707 = vadd.f32 %v2651, %v2706
        %v2708 = vpop.f32.mrf.mxu0
        %v2709 = vpop.f32.mrf.mxu0
        %v2710 = vadd.f32 %v2654, %v2709
        %v2711 = vpop.f32.mrf.mxu0
        %2712 = vdwg.mxu0
        %2713 = vrot.lane.b32.xlu0 %v2354, 64
        %v2714 = vpop.permute.xlu0 %2713
        %2715 = vrot.lane.b32.xlu0 %v2355, 64
        %v2716 = vpop.permute.xlu0 %2715
        %v2718 = vsel %vm886, %v2714, 0
        %v2721 = vsel %vm886, %v2716, 0
        %2723 = vmatprep.subr.bf16.mxu0 0
        %2724 = vmatpush1.bf16.xpose.msra.mxu0 0
        %2725 = vmatprep.subr.bf16.mxu0 0
        %2726 = vmatpush1.bf16.xpose.msra.mxu0 0
        %2727 = vmatprep.subr.bf16.mxu0 0
        %2728 = vmatpush1.bf16.xpose.msra.mxu0 0
        %2729 = vmatprep.subr.bf16.mxu0 0
        %2730 = vmatpush1.bf16.xpose.msra.mxu0 0
        %2731 = vmatprep.subr.bf16.mxu0 0
        %2732 = vmatpush1.bf16.xpose.msra.mxu0 0
        %2733 = vmatprep.subr.bf16.mxu0 0
        %2734 = vmatpush1.bf16.xpose.msra.mxu0 0
        %2735 = vmatprep.subr.bf16.mxu0 0
        %2736 = vmatpush1.bf16.xpose.msra.mxu0 0
        %2737 = vmatprep.subr.bf16.mxu0 0
        %2738 = vmatpush1.bf16.xpose.msra.mxu0 %v2721
        %2739 = vmatprep.subr.bf16.mxu0 0
        %2740 = vmatpush2.bf16.xpose.msra.mxu0 0
        %2741 = vmatprep.subr.bf16.mxu0 0
        %2742 = vmatpush2.bf16.xpose.msra.mxu0 0
        %2743 = vmatprep.subr.bf16.mxu0 0
        %2744 = vmatpush2.bf16.xpose.msra.mxu0 0
        %2745 = vmatprep.subr.bf16.mxu0 0
        %2746 = vmatpush2.bf16.xpose.msra.mxu0 0
        %2747 = vmatprep.subr.bf16.mxu0 0
        %2748 = vmatpush2.bf16.xpose.msra.mxu0 0
        %2749 = vmatprep.subr.bf16.mxu0 0
        %2750 = vmatpush2.bf16.xpose.msra.mxu0 0
        %2751 = vmatprep.subr.bf16.mxu0 0
        %2752 = vmatpush2.bf16.xpose.msra.mxu0 0
        %2753 = vmatprep.subr.bf16.mxu0 0
        %2754 = vmatpush2.bf16.xpose.msra.mxu0 0
        %2755 = vmatprep.mubr.bf16.mxu0 0
        %2756 = vmatmul.mubr.bf16.gmra.mxu0 %v2718
        %v2757 = vpop.f32.mrf.mxu0
        %v2758 = vadd.f32 0.0, %v2757
        %v2759 = vpop.f32.mrf.mxu0
        %v2760 = vpop.f32.mrf.mxu0
        %v2761 = vadd.f32 0.0, %v2760
        %v2762 = vpop.f32.mrf.mxu0
        %2763 = vdwg.mxu0
        %v2764 = vsel %vm560, %v2758, -inf
        %v2765 = vsel %vm561, %v2761, -inf
        %v2766 = vsel %vm936, %v2764, -inf
        %2767 = vmax.xlane.f32.xlu0 %v2766
        %v2768 = vpop.xlane.xlu0 %2767
        %v2769 = vsel %vm936, %v2765, -inf
        %2770 = vmax.xlane.f32.xlu0 %v2769
        %v2771 = vpop.xlane.xlu0 %2770
        %v2772 = vsub.f32 %v2764, %v2768
        %v2773 = vsub.f32 %v2765, %v2771
        %v2774 = vmul.f32 %v2772, 1.442695
        %v2775 = vpow.pop %v2774
        %v2776 = vmul.f32 %v2773, 1.442695
        %v2777 = vpow.pop %v2776
        %v2778 = vsel %vm936, %v2775, 0.0
        %2779 = vadd.xlane.f32.xlu0 %v2778
        %v2780 = vpop.xlane.xlu0 %2779
        %v2781 = vsel %vm936, %v2777, 0.0
        %2782 = vadd.xlane.f32.xlu0 %v2781
        %v2783 = vpop.xlane.xlu0 %2782
        %v2784 = vrcp.pop %v2780
        %v2785 = vrcp.pop %v2783
        %v2786 = vmul.f32 %v2775, %v2784
        %v2787 = vmul.f32 %v2777, %v2785
        %v2788 = vpack.c.bf16 %v2787, %v2786
        %2789 = vrot.lane.b32.xlu0 %v2356, 64
        %v2790 = vpop.permute.xlu0 %2789
        %v2793 = vsel %vm936, %v2788, 0
        %2795 = vmatprep.subr.bf16.mxu0 0
        %2796 = vmatpush1.bf16.msra.mxu0 0
        %2797 = vmatprep.subr.bf16.mxu0 0
        %2798 = vmatpush1.bf16.msra.mxu0 0
        %2799 = vmatprep.subr.bf16.mxu0 0
        %2800 = vmatpush1.bf16.msra.mxu0 0
        %2801 = vmatprep.subr.bf16.mxu0 0
        %2802 = vmatpush1.bf16.msra.mxu0 0
        %2803 = vmatprep.subr.bf16.mxu0 0
        %2804 = vmatpush1.bf16.msra.mxu0 0
        %2805 = vmatprep.subr.bf16.mxu0 0
        %2806 = vmatpush1.bf16.msra.mxu0 0
        %2807 = vmatprep.subr.bf16.mxu0 0
        %2808 = vmatpush1.bf16.msra.mxu0 0
        %2809 = vmatprep.subr.bf16.mxu0 0
        %2810 = vmatpush1.bf16.msra.mxu0 %v2790
        %2811 = vmatprep.subr.bf16.mxu0 0
        %2812 = vmatpush2.bf16.msra.mxu0 0
        %2813 = vmatprep.subr.bf16.mxu0 0
        %2814 = vmatpush2.bf16.msra.mxu0 0
        %2815 = vmatprep.subr.bf16.mxu0 0
        %2816 = vmatpush2.bf16.msra.mxu0 0
        %2817 = vmatprep.subr.bf16.mxu0 0
        %2818 = vmatpush2.bf16.msra.mxu0 0
        %2819 = vmatprep.subr.bf16.mxu0 0
        %2820 = vmatpush2.bf16.msra.mxu0 0
        %2821 = vmatprep.subr.bf16.mxu0 0
        %2822 = vmatpush2.bf16.msra.mxu0 0
        %2823 = vmatprep.subr.bf16.mxu0 0
        %2824 = vmatpush2.bf16.msra.mxu0 0
        %2825 = vmatprep.subr.bf16.mxu0 0
        %2826 = vmatpush2.bf16.msra.mxu0 0
        %2827 = vmatprep.mubr.bf16.mxu0 0
        %2828 = vmatmul.mubr.bf16.gmra.mxu0 %v2793
        %v2829 = vpop.f32.mrf.mxu0
        %v2830 = vadd.f32 0.0, %v2829
        %v2831 = vpop.f32.mrf.mxu0
        %v2832 = vpop.f32.mrf.mxu0
        %v2833 = vadd.f32 0.0, %v2832
        %v2834 = vpop.f32.mrf.mxu0
        %2835 = vdwg.mxu0
        %v2836 = vpack.c.bf16 %v2833, %v2830
        %v2841 = vunpack.c.l.b16 %v2071
        %v2842 = vunpack.c.l.b16 %v2072
        %v2843 = vunpack.c.l.b16 %v2073
        %v2844 = vunpack.c.l.b16 %v2074
        %v2845 = vpack.c.b16 %v2842, %v2841
        %v2846 = vpack.c.b16 %v2844, %v2843
        %v2850 = vsel %vm886, %v2836, 0
        %2852 = vmatprep.subr.bf16.mxu0 0
        %2853 = vmatpush1.bf16.msra.mxu0 0
        %2854 = vmatprep.subr.bf16.mxu0 0
        %2855 = vmatpush1.bf16.msra.mxu0 0
        %2856 = vmatprep.subr.bf16.mxu0 0
        %2857 = vmatpush1.bf16.msra.mxu0 0
        %2858 = vmatprep.subr.bf16.mxu0 0
        %2859 = vmatpush1.bf16.msra.mxu0 0
        %2860 = vmatprep.subr.bf16.mxu0 0
        %2861 = vmatpush1.bf16.msra.mxu0 0
        %2862 = vmatprep.subr.bf16.mxu0 0
        %2863 = vmatpush1.bf16.msra.mxu0 0
        %2864 = vmatprep.subr.bf16.mxu0 0
        %2865 = vmatpush1.bf16.msra.mxu0 %v2846
        %2866 = vmatprep.subr.bf16.mxu0 0
        %2867 = vmatpush1.bf16.msra.mxu0 %v2845
        %2868 = vmatprep.subr.bf16.mxu0 0
        %2869 = vmatpush2.bf16.msra.mxu0 0
        %2870 = vmatprep.subr.bf16.mxu0 0
        %2871 = vmatpush2.bf16.msra.mxu0 0
        %2872 = vmatprep.subr.bf16.mxu0 0
        %2873 = vmatpush2.bf16.msra.mxu0 0
        %2874 = vmatprep.subr.bf16.mxu0 0
        %2875 = vmatpush2.bf16.msra.mxu0 0
        %2876 = vmatprep.subr.bf16.mxu0 0
        %2877 = vmatpush2.bf16.msra.mxu0 0
        %2878 = vmatprep.subr.bf16.mxu0 0
        %2879 = vmatpush2.bf16.msra.mxu0 0
        %2880 = vmatprep.subr.bf16.mxu0 0
        %2881 = vmatpush2.bf16.msra.mxu0 0
        %2882 = vmatprep.subr.bf16.mxu0 0
        %2883 = vmatpush2.bf16.msra.mxu0 0
        %2884 = vmatprep.mubr.bf16.mxu0 0
        %2885 = vmatmul.mubr.bf16.gmra.mxu0 %v2850
        %v2886 = vpop.f32.mrf.mxu0
        %v2887 = vadd.f32 0.0, %v2886
        %v2888 = vpop.f32.mrf.mxu0
        %v2889 = vpop.f32.mrf.mxu0
        %v2890 = vadd.f32 0.0, %v2889
        %v2891 = vpop.f32.mrf.mxu0
        %2892 = vdwg.mxu0
        %v2893 = vadd.f32 %v2707, %v2887
        %v2894 = vadd.f32 %v2710, %v2890
        %2895 = vrot.lane.b32.xlu0 %v2354, 32
        %v2896 = vpop.permute.xlu0 %2895
        %2897 = vrot.lane.b32.xlu0 %v2355, 32
        %v2898 = vpop.permute.xlu0 %2897
        %v2900 = vsel %vm886, %v2896, 0
        %v2903 = vsel %vm886, %v2898, 0
        %2905 = vmatprep.subr.bf16.mxu0 0
        %2906 = vmatpush1.bf16.xpose.msra.mxu0 0
        %2907 = vmatprep.subr.bf16.mxu0 0
        %2908 = vmatpush1.bf16.xpose.msra.mxu0 0
        %2909 = vmatprep.subr.bf16.mxu0 0
        %2910 = vmatpush1.bf16.xpose.msra.mxu0 0
        %2911 = vmatprep.subr.bf16.mxu0 0
        %2912 = vmatpush1.bf16.xpose.msra.mxu0 0
        %2913 = vmatprep.subr.bf16.mxu0 0
        %2914 = vmatpush1.bf16.xpose.msra.mxu0 0
        %2915 = vmatprep.subr.bf16.mxu0 0
        %2916 = vmatpush1.bf16.xpose.msra.mxu0 0
        %2917 = vmatprep.subr.bf16.mxu0 0
        %2918 = vmatpush1.bf16.xpose.msra.mxu0 0
        %2919 = vmatprep.subr.bf16.mxu0 0
        %2920 = vmatpush1.bf16.xpose.msra.mxu0 %v2903
        %2921 = vmatprep.subr.bf16.mxu0 0
        %2922 = vmatpush2.bf16.xpose.msra.mxu0 0
        %2923 = vmatprep.subr.bf16.mxu0 0
        %2924 = vmatpush2.bf16.xpose.msra.mxu0 0
        %2925 = vmatprep.subr.bf16.mxu0 0
        %2926 = vmatpush2.bf16.xpose.msra.mxu0 0
        %2927 = vmatprep.subr.bf16.mxu0 0
        %2928 = vmatpush2.bf16.xpose.msra.mxu0 0
        %2929 = vmatprep.subr.bf16.mxu0 0
        %2930 = vmatpush2.bf16.xpose.msra.mxu0 0
        %2931 = vmatprep.subr.bf16.mxu0 0
        %2932 = vmatpush2.bf16.xpose.msra.mxu0 0
        %2933 = vmatprep.subr.bf16.mxu0 0
        %2934 = vmatpush2.bf16.xpose.msra.mxu0 0
        %2935 = vmatprep.subr.bf16.mxu0 0
        %2936 = vmatpush2.bf16.xpose.msra.mxu0 0
        %2937 = vmatprep.mubr.bf16.mxu0 0
        %2938 = vmatmul.mubr.bf16.gmra.mxu0 %v2900
        %v2939 = vpop.f32.mrf.mxu0
        %v2940 = vadd.f32 0.0, %v2939
        %v2941 = vpop.f32.mrf.mxu0
        %v2942 = vpop.f32.mrf.mxu0
        %v2943 = vadd.f32 0.0, %v2942
        %v2944 = vpop.f32.mrf.mxu0
        %2945 = vdwg.mxu0
        %v2946 = vsel %vm560, %v2940, -inf
        %v2947 = vsel %vm561, %v2943, -inf
        %v2948 = vsel %vm936, %v2946, -inf
        %2949 = vmax.xlane.f32.xlu0 %v2948
        %v2950 = vpop.xlane.xlu0 %2949
        %v2951 = vsel %vm936, %v2947, -inf
        %2952 = vmax.xlane.f32.xlu0 %v2951
        %v2953 = vpop.xlane.xlu0 %2952
        %v2954 = vsub.f32 %v2946, %v2950
        %v2955 = vsub.f32 %v2947, %v2953
        %v2956 = vmul.f32 %v2954, 1.442695
        %v2957 = vpow.pop %v2956
        %v2958 = vmul.f32 %v2955, 1.442695
        %v2959 = vpow.pop %v2958
        %v2960 = vsel %vm936, %v2957, 0.0
        %2961 = vadd.xlane.f32.xlu0 %v2960
        %v2962 = vpop.xlane.xlu0 %2961
        %v2963 = vsel %vm936, %v2959, 0.0
        %2964 = vadd.xlane.f32.xlu0 %v2963
        %v2965 = vpop.xlane.xlu0 %2964
        %v2966 = vrcp.pop %v2962
        %v2967 = vrcp.pop %v2965
        %v2968 = vmul.f32 %v2957, %v2966
        %v2969 = vmul.f32 %v2959, %v2967
        %v2970 = vpack.c.bf16 %v2969, %v2968
        %2971 = vrot.lane.b32.xlu0 %v2356, 32
        %v2972 = vpop.permute.xlu0 %2971
        %v2975 = vsel %vm936, %v2970, 0
        %2977 = vmatprep.subr.bf16.mxu0 0
        %2978 = vmatpush1.bf16.msra.mxu0 0
        %2979 = vmatprep.subr.bf16.mxu0 0
        %2980 = vmatpush1.bf16.msra.mxu0 0
        %2981 = vmatprep.subr.bf16.mxu0 0
        %2982 = vmatpush1.bf16.msra.mxu0 0
        %2983 = vmatprep.subr.bf16.mxu0 0
        %2984 = vmatpush1.bf16.msra.mxu0 0
        %2985 = vmatprep.subr.bf16.mxu0 0
        %2986 = vmatpush1.bf16.msra.mxu0 0
        %2987 = vmatprep.subr.bf16.mxu0 0
        %2988 = vmatpush1.bf16.msra.mxu0 0
        %2989 = vmatprep.subr.bf16.mxu0 0
        %2990 = vmatpush1.bf16.msra.mxu0 0
        %2991 = vmatprep.subr.bf16.mxu0 0
        %2992 = vmatpush1.bf16.msra.mxu0 %v2972
        %2993 = vmatprep.subr.bf16.mxu0 0
        %2994 = vmatpush2.bf16.msra.mxu0 0
        %2995 = vmatprep.subr.bf16.mxu0 0
        %2996 = vmatpush2.bf16.msra.mxu0 0
        %2997 = vmatprep.subr.bf16.mxu0 0
        %2998 = vmatpush2.bf16.msra.mxu0 0
        %2999 = vmatprep.subr.bf16.mxu0 0
        %3000 = vmatpush2.bf16.msra.mxu0 0
        %3001 = vmatprep.subr.bf16.mxu0 0
        %3002 = vmatpush2.bf16.msra.mxu0 0
        %3003 = vmatprep.subr.bf16.mxu0 0
        %3004 = vmatpush2.bf16.msra.mxu0 0
        %3005 = vmatprep.subr.bf16.mxu0 0
        %3006 = vmatpush2.bf16.msra.mxu0 0
        %3007 = vmatprep.subr.bf16.mxu0 0
        %3008 = vmatpush2.bf16.msra.mxu0 0
        %3009 = vmatprep.mubr.bf16.mxu0 0
        %3010 = vmatmul.mubr.bf16.gmra.mxu0 %v2975
        %v3011 = vpop.f32.mrf.mxu0
        %v3012 = vadd.f32 0.0, %v3011
        %v3013 = vpop.f32.mrf.mxu0
        %v3014 = vpop.f32.mrf.mxu0
        %v3015 = vadd.f32 0.0, %v3014
        %v3016 = vpop.f32.mrf.mxu0
        %3017 = vdwg.mxu0
        %v3018 = vpack.c.bf16 %v3015, %v3012
        %v3023 = vunpack.c.l.b16 %v2075
        %v3024 = vunpack.c.l.b16 %v2076
        %v3025 = vunpack.c.l.b16 %v2077
        %v3026 = vunpack.c.l.b16 %v2078
        %v3027 = vpack.c.b16 %v3024, %v3023
        %v3028 = vpack.c.b16 %v3026, %v3025
        %v3032 = vsel %vm886, %v3018, 0
        %3034 = vmatprep.subr.bf16.mxu0 0
        %3035 = vmatpush1.bf16.msra.mxu0 0
        %3036 = vmatprep.subr.bf16.mxu0 0
        %3037 = vmatpush1.bf16.msra.mxu0 0
        %3038 = vmatprep.subr.bf16.mxu0 0
        %3039 = vmatpush1.bf16.msra.mxu0 0
        %3040 = vmatprep.subr.bf16.mxu0 0
        %3041 = vmatpush1.bf16.msra.mxu0 0
        %3042 = vmatprep.subr.bf16.mxu0 0
        %3043 = vmatpush1.bf16.msra.mxu0 0
        %3044 = vmatprep.subr.bf16.mxu0 0
        %3045 = vmatpush1.bf16.msra.mxu0 0
        %3046 = vmatprep.subr.bf16.mxu0 0
        %3047 = vmatpush1.bf16.msra.mxu0 %v3028
        %3048 = vmatprep.subr.bf16.mxu0 0
        %3049 = vmatpush1.bf16.msra.mxu0 %v3027
        %3050 = vmatprep.subr.bf16.mxu0 0
        %3051 = vmatpush2.bf16.msra.mxu0 0
        %3052 = vmatprep.subr.bf16.mxu0 0
        %3053 = vmatpush2.bf16.msra.mxu0 0
        %3054 = vmatprep.subr.bf16.mxu0 0
        %3055 = vmatpush2.bf16.msra.mxu0 0
        %3056 = vmatprep.subr.bf16.mxu0 0
        %3057 = vmatpush2.bf16.msra.mxu0 0
        %3058 = vmatprep.subr.bf16.mxu0 0
        %3059 = vmatpush2.bf16.msra.mxu0 0
        %3060 = vmatprep.subr.bf16.mxu0 0
        %3061 = vmatpush2.bf16.msra.mxu0 0
        %3062 = vmatprep.subr.bf16.mxu0 0
        %3063 = vmatpush2.bf16.msra.mxu0 0
        %3064 = vmatprep.subr.bf16.mxu0 0
        %3065 = vmatpush2.bf16.msra.mxu0 0
        %3066 = vmatprep.mubr.bf16.mxu0 0
        %3067 = vmatmul.mubr.bf16.gmra.mxu0 %v3032
        %v3068 = vpop.f32.mrf.mxu0
        %v3069 = vadd.f32 0.0, %v3068
        %v3070 = vpop.f32.mrf.mxu0
        %v3071 = vpop.f32.mrf.mxu0
        %v3072 = vadd.f32 0.0, %v3071
        %v3073 = vpop.f32.mrf.mxu0
        %3074 = vdwg.mxu0
        %v3075 = vadd.f32 %v2893, %v3069
        %v3076 = vadd.f32 %v2894, %v3072
        %v3077 = vadd.f32 %v2027, %v3075
        %v3078 = vadd.f32 %v2028, %v3076
        %s3079 = scalar_lea.vmem %s6, 1
        %v3080 = vld [vmem:[%s3079] sm:$0x1]
        %v3082 = vlaneseq
        %v3083 = vshrl.u32 %v3082, 7
        %v3084 = vsub.s32 0, %v3083
        %v3085 = vrot.slane %v3080, %v3084
        %v3087 = vadd.f32 %v3077, %v3085
        %v3088 = vadd.f32 %v3078, %v3085
        %s3089 = scalar_lea.vmem %s7, 1
        %v3090 = vld [vmem:[%s3089] sm:$0x1]
        %s3091 = scalar_lea.vmem %s8, 1
        %v3092 = vld [vmem:[%s3091] sm:$0x1]
        %3093 = vadd.xlane.f32.xlu0 %v3087
        %v3094 = vpop.xlane.xlu0 %3093
        %3095 = vadd.xlane.f32.xlu0 %v3088
        %v3096 = vpop.xlane.xlu0 %3095
        %v3097 = vmul.f32 %v3094, %v616
        %v3098 = vmul.f32 %v3096, %v616
        %v3099 = vsub.f32 %v3087, %v3097
        %v3100 = vsub.f32 %v3088, %v3098
        %v3101 = vmul.f32 %v3099, %v3099
        %v3102 = vmul.f32 %v3100, %v3100
        %3103 = vadd.xlane.f32.xlu0 %v3101
        %v3104 = vpop.xlane.xlu0 %3103
        %3105 = vadd.xlane.f32.xlu0 %v3102
        %v3106 = vpop.xlane.xlu0 %3105
        %v3107 = vmul.f32 %v3104, %v616
        %v3108 = vmul.f32 %v3106, %v616
        %v3109 = vadd.f32 %v3107, 1e-05
        %v3110 = vadd.f32 %v3108, 1e-05
        %v3111 = vrsqrt.pop %v3109
        %v3112 = vrsqrt.pop %v3110
        %v3113 = vmul.f32 %v3099, %v3111
        %v3114 = vmul.f32 %v3100, %v3112
        %v3116 = vlaneseq
        %v3117 = vshrl.u32 %v3116, 7
        %v3118 = vsub.s32 0, %v3117
        %v3119 = vrot.slane %v3090, %v3118
        %v3121 = vmul.f32 %v3113, %v3119
        %v3122 = vmul.f32 %v3114, %v3119
        %v3124 = vlaneseq
        %v3125 = vshrl.u32 %v3124, 7
        %v3126 = vsub.s32 0, %v3125
        %v3127 = vrot.slane %v3092, %v3126
        %v3129 = vadd.f32 %v3121, %v3127
        %v3130 = vadd.f32 %v3122, %v3127
        %v3131 = vpack.c.bf16 %v3130, %v3129
        %s3132 = scalar_lea.vmem %s9, 128
        %v3133 = vld [vmem:[%s3132] sm:$0xff]
        %v3134 = vld [vmem:[%s3132 + $0x8] sm:$0xff]
        %v3135 = vld [vmem:[%s3132 + $0x10] sm:$0xff]
        %v3136 = vld [vmem:[%s3132 + $0x18] sm:$0xff]
        %v3137 = vld [vmem:[%s3132 + $0x20] sm:$0xff]
        %v3138 = vld [vmem:[%s3132 + $0x28] sm:$0xff]
        %v3139 = vld [vmem:[%s3132 + $0x30] sm:$0xff]
        %v3140 = vld [vmem:[%s3132 + $0x38] sm:$0xff]
        %v3141 = vld [vmem:[%s3132 + $0x40] sm:$0xff]
        %v3142 = vld [vmem:[%s3132 + $0x48] sm:$0xff]
        %v3143 = vld [vmem:[%s3132 + $0x50] sm:$0xff]
        %v3144 = vld [vmem:[%s3132 + $0x58] sm:$0xff]
        %v3145 = vld [vmem:[%s3132 + $0x60] sm:$0xff]
        %v3146 = vld [vmem:[%s3132 + $0x68] sm:$0xff]
        %v3147 = vld [vmem:[%s3132 + $0x70] sm:$0xff]
        %v3148 = vld [vmem:[%s3132 + $0x78] sm:$0xff]
        %s3149 = scalar_lea.vmem %s10, 2
        %v3150 = vld [vmem:[%s3149] sm:$0x3]
        %v3152 = vlaneseq
        %v3153 = vshrl.u32 %v3152, 7
        %v3154 = vsub.s32 0, %v3153
        %v3155 = vrot.slane %v3150, %v3154
        %v3156 = vlaneseq
        %v3157 = vshrl.u32 %v3156, 7
        %v3158 = vsub.s32 1, %v3157
        %v3159 = vrot.slane %v3150, %v3158
        %v3178 = vunpack.c.l.b16 %v3133
        %v3179 = vunpack.c.h.b16 %v3133
        %v3180 = vunpack.c.l.b16 %v3134
        %v3181 = vunpack.c.h.b16 %v3134
        %v3182 = vunpack.c.l.b16 %v3135
        %v3183 = vunpack.c.h.b16 %v3135
        %v3184 = vunpack.c.l.b16 %v3136
        %v3185 = vunpack.c.h.b16 %v3136
        %v3186 = vunpack.c.l.b16 %v3137
        %v3187 = vunpack.c.h.b16 %v3137
        %v3188 = vunpack.c.l.b16 %v3138
        %v3189 = vunpack.c.h.b16 %v3138
        %v3190 = vunpack.c.l.b16 %v3139
        %v3191 = vunpack.c.h.b16 %v3139
        %v3192 = vunpack.c.l.b16 %v3140
        %v3193 = vunpack.c.h.b16 %v3140
        %v3194 = vunpack.c.l.b16 %v3141
        %v3195 = vunpack.c.h.b16 %v3141
        %v3196 = vunpack.c.l.b16 %v3142
        %v3197 = vunpack.c.h.b16 %v3142
        %v3198 = vunpack.c.l.b16 %v3143
        %v3199 = vunpack.c.h.b16 %v3143
        %v3200 = vunpack.c.l.b16 %v3144
        %v3201 = vunpack.c.h.b16 %v3144
        %v3202 = vunpack.c.l.b16 %v3145
        %v3203 = vunpack.c.h.b16 %v3145
        %v3204 = vunpack.c.l.b16 %v3146
        %v3205 = vunpack.c.h.b16 %v3146
        %v3206 = vunpack.c.l.b16 %v3147
        %v3207 = vunpack.c.h.b16 %v3147
        %v3208 = vunpack.c.l.b16 %v3148
        %v3209 = vunpack.c.h.b16 %v3148
        %v3210 = vpack.c.b16 %v3180, %v3178
        %v3211 = vpack.c.b16 %v3181, %v3179
        %v3212 = vpack.c.b16 %v3184, %v3182
        %v3213 = vpack.c.b16 %v3185, %v3183
        %v3214 = vpack.c.b16 %v3188, %v3186
        %v3215 = vpack.c.b16 %v3189, %v3187
        %v3216 = vpack.c.b16 %v3192, %v3190
        %v3217 = vpack.c.b16 %v3193, %v3191
        %v3218 = vpack.c.b16 %v3196, %v3194
        %v3219 = vpack.c.b16 %v3197, %v3195
        %v3220 = vpack.c.b16 %v3200, %v3198
        %v3221 = vpack.c.b16 %v3201, %v3199
        %v3222 = vpack.c.b16 %v3204, %v3202
        %v3223 = vpack.c.b16 %v3205, %v3203
        %v3224 = vpack.c.b16 %v3208, %v3206
        %v3225 = vpack.c.b16 %v3209, %v3207
        %3242 = vmatprep.subr.bf16.mxu0 %v3225
        %3243 = vmatpush1.bf16.msra.mxu0 %v3224
        %3244 = vmatprep.subr.bf16.mxu0 %v3223
        %3245 = vmatpush1.bf16.msra.mxu0 %v3222
        %3246 = vmatprep.subr.bf16.mxu0 %v3221
        %3247 = vmatpush1.bf16.msra.mxu0 %v3220
        %3248 = vmatprep.subr.bf16.mxu0 %v3219
        %3249 = vmatpush1.bf16.msra.mxu0 %v3218
        %3250 = vmatprep.subr.bf16.mxu0 %v3217
        %3251 = vmatpush1.bf16.msra.mxu0 %v3216
        %3252 = vmatprep.subr.bf16.mxu0 %v3215
        %3253 = vmatpush1.bf16.msra.mxu0 %v3214
        %3254 = vmatprep.subr.bf16.mxu0 %v3213
        %3255 = vmatpush1.bf16.msra.mxu0 %v3212
        %3256 = vmatprep.subr.bf16.mxu0 %v3211
        %3257 = vmatpush1.bf16.msra.mxu0 %v3210
        %3258 = vmatprep.subr.bf16.mxu0 0
        %3259 = vmatpush2.bf16.msra.mxu0 0
        %3260 = vmatprep.subr.bf16.mxu0 0
        %3261 = vmatpush2.bf16.msra.mxu0 0
        %3262 = vmatprep.subr.bf16.mxu0 0
        %3263 = vmatpush2.bf16.msra.mxu0 0
        %3264 = vmatprep.subr.bf16.mxu0 0
        %3265 = vmatpush2.bf16.msra.mxu0 0
        %3266 = vmatprep.subr.bf16.mxu0 0
        %3267 = vmatpush2.bf16.msra.mxu0 0
        %3268 = vmatprep.subr.bf16.mxu0 0
        %3269 = vmatpush2.bf16.msra.mxu0 0
        %3270 = vmatprep.subr.bf16.mxu0 0
        %3271 = vmatpush2.bf16.msra.mxu0 0
        %3272 = vmatprep.subr.bf16.mxu0 0
        %3273 = vmatpush2.bf16.msra.mxu0 0
        %3274 = vmatprep.mubr.bf16.mxu0 0
        %3275 = vmatmul.mubr.bf16.gmra.mxu0 %v3131
        %v3276 = vpop.f32.mrf.mxu0
        %v3277 = vadd.f32 %v3155, %v3276
        %v3278 = vpop.f32.mrf.mxu0
        %v3279 = vadd.f32 %v3159, %v3278
        %v3280 = vpop.f32.mrf.mxu0
        %v3281 = vadd.f32 %v3155, %v3280
        %v3282 = vpop.f32.mrf.mxu0
        %v3283 = vadd.f32 %v3159, %v3282
        %3284 = vdwg.mxu0
        %v3285 = vmul.f32 %v3277, 0.5
        %v3286 = vmul.f32 %v3279, 0.5
        %v3287 = vmul.f32 %v3281, 0.5
        %v3288 = vmul.f32 %v3283, 0.5
        %v3289 = vmul.f32 %v3277, 0.044715
        %v3290 = vmul.f32 %v3279, 0.044715
        %v3291 = vmul.f32 %v3281, 0.044715
        %v3292 = vmul.f32 %v3283, 0.044715
        %v3293 = vmul.f32 %v3289, %v3277
        %v3294 = vmul.f32 %v3290, %v3279
        %v3295 = vmul.f32 %v3291, %v3281
        %v3296 = vmul.f32 %v3292, %v3283
        %v3297 = vmul.f32 %v3293, %v3277
        %v3298 = vmul.f32 %v3294, %v3279
        %v3299 = vmul.f32 %v3295, %v3281
        %v3300 = vmul.f32 %v3296, %v3283
        %v3301 = vadd.f32 %v3277, %v3297
        %v3302 = vadd.f32 %v3279, %v3298
        %v3303 = vadd.f32 %v3281, %v3299
        %v3304 = vadd.f32 %v3283, %v3300
        %v3305 = vmul.f32 %v3301, 0.7978846
        %v3306 = vmul.f32 %v3302, 0.7978846
        %v3307 = vmul.f32 %v3303, 0.7978846
        %v3308 = vmul.f32 %v3304, 0.7978846
        %v3309 = vtanh.pop %v3305
        %v3310 = vtanh.pop %v3306
        %v3311 = vtanh.pop %v3307
        %v3312 = vtanh.pop %v3308
        %v3313 = vadd.f32 %v3309, 1.0
        %v3314 = vadd.f32 %v3310, 1.0
        %v3315 = vadd.f32 %v3311, 1.0
        %v3316 = vadd.f32 %v3312, 1.0
        %v3317 = vmul.f32 %v3285, %v3313
        %v3318 = vmul.f32 %v3286, %v3314
        %v3319 = vmul.f32 %v3287, %v3315
        %v3320 = vmul.f32 %v3288, %v3316
        %v3321 = vpack.c.bf16 %v3319, %v3317
        %v3322 = vpack.c.bf16 %v3320, %v3318
        %s3323 = scalar_lea.vmem [#allocation4], 128
        %v3324 = vld [vmem:[%s3323] sm:$0xf]
        %v3325 = vld [vmem:[%s3323 + $0x4] sm:$0xf]
        %v3326 = vld [vmem:[%s3323 + $0x8] sm:$0xf]
        %v3327 = vld [vmem:[%s3323 + $0xc] sm:$0xf]
        %v3328 = vld [vmem:[%s3323 + $0x10] sm:$0xf]
        %v3329 = vld [vmem:[%s3323 + $0x14] sm:$0xf]
        %v3330 = vld [vmem:[%s3323 + $0x18] sm:$0xf]
        %v3331 = vld [vmem:[%s3323 + $0x1c] sm:$0xf]
        %v3332 = vld [vmem:[%s3323 + $0x20] sm:$0xf]
        %v3333 = vld [vmem:[%s3323 + $0x24] sm:$0xf]
        %v3334 = vld [vmem:[%s3323 + $0x28] sm:$0xf]
        %v3335 = vld [vmem:[%s3323 + $0x2c] sm:$0xf]
        %v3336 = vld [vmem:[%s3323 + $0x30] sm:$0xf]
        %v3337 = vld [vmem:[%s3323 + $0x34] sm:$0xf]
        %v3338 = vld [vmem:[%s3323 + $0x38] sm:$0xf]
        %v3339 = vld [vmem:[%s3323 + $0x3c] sm:$0xf]
        %v3340 = vld [vmem:[%s3323 + $0x40] sm:$0xf]
        %v3341 = vld [vmem:[%s3323 + $0x44] sm:$0xf]
        %v3342 = vld [vmem:[%s3323 + $0x48] sm:$0xf]
        %v3343 = vld [vmem:[%s3323 + $0x4c] sm:$0xf]
        %v3344 = vld [vmem:[%s3323 + $0x50] sm:$0xf]
        %v3345 = vld [vmem:[%s3323 + $0x54] sm:$0xf]
        %v3346 = vld [vmem:[%s3323 + $0x58] sm:$0xf]
        %v3347 = vld [vmem:[%s3323 + $0x5c] sm:$0xf]
        %v3348 = vld [vmem:[%s3323 + $0x60] sm:$0xf]
        %v3349 = vld [vmem:[%s3323 + $0x64] sm:$0xf]
        %v3350 = vld [vmem:[%s3323 + $0x68] sm:$0xf]
        %v3351 = vld [vmem:[%s3323 + $0x6c] sm:$0xf]
        %v3352 = vld [vmem:[%s3323 + $0x70] sm:$0xf]
        %v3353 = vld [vmem:[%s3323 + $0x74] sm:$0xf]
        %v3354 = vld [vmem:[%s3323 + $0x78] sm:$0xf]
        %v3355 = vld [vmem:[%s3323 + $0x7c] sm:$0xf]
        %v3388 = vunpack.c.l.b16 %v3324
        %v3389 = vunpack.c.l.b16 %v3325
        %v3390 = vunpack.c.l.b16 %v3326
        %v3391 = vunpack.c.l.b16 %v3327
        %v3392 = vunpack.c.l.b16 %v3328
        %v3393 = vunpack.c.l.b16 %v3329
        %v3394 = vunpack.c.l.b16 %v3330
        %v3395 = vunpack.c.l.b16 %v3331
        %v3396 = vunpack.c.l.b16 %v3332
        %v3397 = vunpack.c.l.b16 %v3333
        %v3398 = vunpack.c.l.b16 %v3334
        %v3399 = vunpack.c.l.b16 %v3335
        %v3400 = vunpack.c.l.b16 %v3336
        %v3401 = vunpack.c.l.b16 %v3337
        %v3402 = vunpack.c.l.b16 %v3338
        %v3403 = vunpack.c.l.b16 %v3339
        %v3404 = vunpack.c.l.b16 %v3340
        %v3405 = vunpack.c.l.b16 %v3341
        %v3406 = vunpack.c.l.b16 %v3342
        %v3407 = vunpack.c.l.b16 %v3343
        %v3408 = vunpack.c.l.b16 %v3344
        %v3409 = vunpack.c.l.b16 %v3345
        %v3410 = vunpack.c.l.b16 %v3346
        %v3411 = vunpack.c.l.b16 %v3347
        %v3412 = vunpack.c.l.b16 %v3348
        %v3413 = vunpack.c.l.b16 %v3349
        %v3414 = vunpack.c.l.b16 %v3350
        %v3415 = vunpack.c.l.b16 %v3351
        %v3416 = vunpack.c.l.b16 %v3352
        %v3417 = vunpack.c.l.b16 %v3353
        %v3418 = vunpack.c.l.b16 %v3354
        %v3419 = vunpack.c.l.b16 %v3355
        %v3420 = vpack.c.b16 %v3389, %v3388
        %v3421 = vpack.c.b16 %v3391, %v3390
        %v3422 = vpack.c.b16 %v3393, %v3392
        %v3423 = vpack.c.b16 %v3395, %v3394
        %v3424 = vpack.c.b16 %v3397, %v3396
        %v3425 = vpack.c.b16 %v3399, %v3398
        %v3426 = vpack.c.b16 %v3401, %v3400
        %v3427 = vpack.c.b16 %v3403, %v3402
        %v3428 = vpack.c.b16 %v3405, %v3404
        %v3429 = vpack.c.b16 %v3407, %v3406
        %v3430 = vpack.c.b16 %v3409, %v3408
        %v3431 = vpack.c.b16 %v3411, %v3410
        %v3432 = vpack.c.b16 %v3413, %v3412
        %v3433 = vpack.c.b16 %v3415, %v3414
        %v3434 = vpack.c.b16 %v3417, %v3416
        %v3435 = vpack.c.b16 %v3419, %v3418
        %3452 = vmatprep.subr.bf16.mxu0 0
        %3453 = vmatpush1.bf16.msra.mxu0 %v3427
        %3454 = vmatprep.subr.bf16.mxu0 0
        %3455 = vmatpush1.bf16.msra.mxu0 %v3426
        %3456 = vmatprep.subr.bf16.mxu0 0
        %3457 = vmatpush1.bf16.msra.mxu0 %v3425
        %3458 = vmatprep.subr.bf16.mxu0 0
        %3459 = vmatpush1.bf16.msra.mxu0 %v3424
        %3460 = vmatprep.subr.bf16.mxu0 0
        %3461 = vmatpush1.bf16.msra.mxu0 %v3423
        %3462 = vmatprep.subr.bf16.mxu0 0
        %3463 = vmatpush1.bf16.msra.mxu0 %v3422
        %3464 = vmatprep.subr.bf16.mxu0 0
        %3465 = vmatpush1.bf16.msra.mxu0 %v3421
        %3466 = vmatprep.subr.bf16.mxu0 0
        %3467 = vmatpush1.bf16.msra.mxu0 %v3420
        %3468 = vmatprep.subr.bf16.mxu0 0
        %3469 = vmatpush2.bf16.msra.mxu0 %v3435
        %3470 = vmatprep.subr.bf16.mxu0 0
        %3471 = vmatpush2.bf16.msra.mxu0 %v3434
        %3472 = vmatprep.subr.bf16.mxu0 0
        %3473 = vmatpush2.bf16.msra.mxu0 %v3433
        %3474 = vmatprep.subr.bf16.mxu0 0
        %3475 = vmatpush2.bf16.msra.mxu0 %v3432
        %3476 = vmatprep.subr.bf16.mxu0 0
        %3477 = vmatpush2.bf16.msra.mxu0 %v3431
        %3478 = vmatprep.subr.bf16.mxu0 0
        %3479 = vmatpush2.bf16.msra.mxu0 %v3430
        %3480 = vmatprep.subr.bf16.mxu0 0
        %3481 = vmatpush2.bf16.msra.mxu0 %v3429
        %3482 = vmatprep.subr.bf16.mxu0 0
        %3483 = vmatpush2.bf16.msra.mxu0 %v3428
        %3484 = vmatprep.mubr.bf16.mxu0 %v3322
        %3485 = vmatmul.mubr.bf16.gmra.mxu0 %v3321
        %v3486 = vpop.f32.mrf.mxu0
        %v3487 = vadd.f32 0.0, %v3486
        %v3488 = vpop.f32.mrf.mxu0
        %v3489 = vpop.f32.mrf.mxu0
        %v3490 = vadd.f32 0.0, %v3489
        %v3491 = vpop.f32.mrf.mxu0
        %3492 = vdwg.mxu0
        %v3493 = vadd.f32 %v3087, %v3487
        %v3494 = vadd.f32 %v3088, %v3490
        %s3495 = scalar_lea.vmem %s12, 1
        %v3496 = vld [vmem:[%s3495] sm:$0x1]
        %v3498 = vlaneseq
        %v3499 = vshrl.u32 %v3498, 7
        %v3500 = vsub.s32 0, %v3499
        %v3501 = vrot.slane %v3496, %v3500
        %v3503 = vadd.f32 %v3493, %v3501
        %v3504 = vadd.f32 %v3494, %v3501
        %v3505 = vld [vmem:[%s13] sm:$0x1]
        %v3506 = vld [vmem:[%s14] sm:$0x1]
        %3507 = vadd.xlane.f32.xlu0 %v3503
        %v3508 = vpop.xlane.xlu0 %3507
        %3509 = vadd.xlane.f32.xlu0 %v3504
        %v3510 = vpop.xlane.xlu0 %3509
        %v3511 = vmul.f32 %v3508, %v616
        %v3512 = vmul.f32 %v3510, %v616
        %v3513 = vsub.f32 %v3503, %v3511
        %v3514 = vsub.f32 %v3504, %v3512
        %v3515 = vmul.f32 %v3513, %v3513
        %v3516 = vmul.f32 %v3514, %v3514
        %3517 = vadd.xlane.f32.xlu0 %v3515
        %v3518 = vpop.xlane.xlu0 %3517
        %3519 = vadd.xlane.f32.xlu0 %v3516
        %v3520 = vpop.xlane.xlu0 %3519
        %v3521 = vmul.f32 %v3518, %v616
        %v3522 = vmul.f32 %v3520, %v616
        %v3523 = vadd.f32 %v3521, 1e-05
        %v3524 = vadd.f32 %v3522, 1e-05
        %v3525 = vrsqrt.pop %v3523
        %v3526 = vrsqrt.pop %v3524
        %v3527 = vmul.f32 %v3513, %v3525
        %v3528 = vmul.f32 %v3514, %v3526
        %v3530 = vlaneseq
        %v3531 = vshrl.u32 %v3530, 7
        %v3532 = vsub.s32 0, %v3531
        %v3533 = vrot.slane %v3505, %v3532
        %v3535 = vmul.f32 %v3527, %v3533
        %v3536 = vmul.f32 %v3528, %v3533
        %v3538 = vlaneseq
        %v3539 = vshrl.u32 %v3538, 7
        %v3540 = vsub.s32 0, %v3539
        %v3541 = vrot.slane %v3506, %v3540
        %v3543 = vadd.f32 %v3535, %v3541
        %v3544 = vadd.f32 %v3536, %v3541
        %v3545 = vpack.c.bf16 %v3544, %v3543
        %v3546 = vld [vmem:[%s15] sm:$0xf]
        %v3547 = vld [vmem:[%s15 + $0x4] sm:$0xf]
        %v3548 = vld [vmem:[%s15 + $0x8] sm:$0xf]
        %v3549 = vld [vmem:[%s15 + $0xc] sm:$0xf]
        %v3550 = vld [vmem:[%s15 + $0x10] sm:$0xf]
        %v3551 = vld [vmem:[%s15 + $0x14] sm:$0xf]
        %v3552 = vld [vmem:[%s15 + $0x18] sm:$0xf]
        %v3553 = vld [vmem:[%s15 + $0x1c] sm:$0xf]
        %v3554 = vld [vmem:[%s15 + $0x20] sm:$0xf]
        %v3555 = vld [vmem:[%s15 + $0x24] sm:$0xf]
        %v3556 = vld [vmem:[%s15 + $0x28] sm:$0xf]
        %v3557 = vld [vmem:[%s15 + $0x2c] sm:$0xf]
        %v3558 = vld [vmem:[%s15 + $0x30] sm:$0xf]
        %v3559 = vld [vmem:[%s15 + $0x34] sm:$0xf]
        %v3560 = vld [vmem:[%s15 + $0x38] sm:$0xf]
        %v3561 = vld [vmem:[%s15 + $0x3c] sm:$0xf]
        %v3562 = vld [vmem:[%s15 + $0x40] sm:$0xf]
        %v3563 = vld [vmem:[%s15 + $0x44] sm:$0xf]
        %v3564 = vld [vmem:[%s15 + $0x48] sm:$0xf]
        %v3565 = vld [vmem:[%s15 + $0x4c] sm:$0xf]
        %v3566 = vld [vmem:[%s15 + $0x50] sm:$0xf]
        %v3567 = vld [vmem:[%s15 + $0x54] sm:$0xf]
        %v3568 = vld [vmem:[%s15 + $0x58] sm:$0xf]
        %v3569 = vld [vmem:[%s15 + $0x5c] sm:$0xf]
        %v3570 = vld [vmem:[%s15 + $0x60] sm:$0xf]
        %v3571 = vld [vmem:[%s15 + $0x64] sm:$0xf]
        %v3572 = vld [vmem:[%s15 + $0x68] sm:$0xf]
        %v3573 = vld [vmem:[%s15 + $0x6c] sm:$0xf]
        %v3574 = vld [vmem:[%s15 + $0x70] sm:$0xf]
        %v3575 = vld [vmem:[%s15 + $0x74] sm:$0xf]
        %v3576 = vld [vmem:[%s15 + $0x78] sm:$0xf]
        %v3577 = vld [vmem:[%s15 + $0x7c] sm:$0xf]
        %v3578 = vld [vmem:[%s15 + $0x80] sm:$0xf]
        %v3579 = vld [vmem:[%s15 + $0x84] sm:$0xf]
        %v3580 = vld [vmem:[%s15 + $0x88] sm:$0xf]
        %v3581 = vld [vmem:[%s15 + $0x8c] sm:$0xf]
        %v3582 = vld [vmem:[%s15 + $0x90] sm:$0xf]
        %v3583 = vld [vmem:[%s15 + $0x94] sm:$0xf]
        %v3584 = vld [vmem:[%s15 + $0x98] sm:$0xf]
        %v3585 = vld [vmem:[%s15 + $0x9c] sm:$0xf]
        %v3586 = vld [vmem:[%s15 + $0xa0] sm:$0xf]
        %v3587 = vld [vmem:[%s15 + $0xa4] sm:$0xf]
        %v3588 = vld [vmem:[%s15 + $0xa8] sm:$0xf]
        %v3589 = vld [vmem:[%s15 + $0xac] sm:$0xf]
        %v3590 = vld [vmem:[%s15 + $0xb0] sm:$0xf]
        %v3591 = vld [vmem:[%s15 + $0xb4] sm:$0xf]
        %v3592 = vld [vmem:[%s15 + $0xb8] sm:$0xf]
        %v3593 = vld [vmem:[%s15 + $0xbc] sm:$0xf]
        %v3594 = vld [vmem:[%s15 + $0xc0] sm:$0xf]
        %v3595 = vld [vmem:[%s15 + $0xc4] sm:$0xf]
        %v3596 = vld [vmem:[%s15 + $0xc8] sm:$0xf]
        %v3597 = vld [vmem:[%s15 + $0xcc] sm:$0xf]
        %v3598 = vld [vmem:[%s15 + $0xd0] sm:$0xf]
        %v3599 = vld [vmem:[%s15 + $0xd4] sm:$0xf]
        %v3600 = vld [vmem:[%s15 + $0xd8] sm:$0xf]
        %v3601 = vld [vmem:[%s15 + $0xdc] sm:$0xf]
        %v3602 = vld [vmem:[%s15 + $0xe0] sm:$0xf]
        %v3603 = vld [vmem:[%s15 + $0xe4] sm:$0xf]
        %v3604 = vld [vmem:[%s15 + $0xe8] sm:$0xf]
        %v3605 = vld [vmem:[%s15 + $0xec] sm:$0xf]
        %v3606 = vld [vmem:[%s15 + $0xf0] sm:$0xf]
        %v3607 = vld [vmem:[%s15 + $0xf4] sm:$0xf]
        %v3608 = vld [vmem:[%s15 + $0xf8] sm:$0xf]
        %v3609 = vld [vmem:[%s15 + $0xfc] sm:$0xf]
        %v3674 = vunpack.c.l.b16 %v3546
        %v3675 = vunpack.c.l.b16 %v3547
        %v3676 = vunpack.c.l.b16 %v3548
        %v3677 = vunpack.c.l.b16 %v3549
        %v3678 = vunpack.c.l.b16 %v3550
        %v3679 = vunpack.c.l.b16 %v3551
        %v3680 = vunpack.c.l.b16 %v3552
        %v3681 = vunpack.c.l.b16 %v3553
        %v3682 = vunpack.c.l.b16 %v3554
        %v3683 = vunpack.c.l.b16 %v3555
        %v3684 = vunpack.c.l.b16 %v3556
        %v3685 = vunpack.c.l.b16 %v3557
        %v3686 = vunpack.c.l.b16 %v3558
        %v3687 = vunpack.c.l.b16 %v3559
        %v3688 = vunpack.c.l.b16 %v3560
        %v3689 = vunpack.c.l.b16 %v3561
        %v3690 = vunpack.c.l.b16 %v3562
        %v3691 = vunpack.c.l.b16 %v3563
        %v3692 = vunpack.c.l.b16 %v3564
        %v3693 = vunpack.c.l.b16 %v3565
        %v3694 = vunpack.c.l.b16 %v3566
        %v3695 = vunpack.c.l.b16 %v3567
        %v3696 = vunpack.c.l.b16 %v3568
        %v3697 = vunpack.c.l.b16 %v3569
        %v3698 = vunpack.c.l.b16 %v3570
        %v3699 = vunpack.c.l.b16 %v3571
        %v3700 = vunpack.c.l.b16 %v3572
        %v3701 = vunpack.c.l.b16 %v3573
        %v3702 = vunpack.c.l.b16 %v3574
        %v3703 = vunpack.c.l.b16 %v3575
        %v3704 = vunpack.c.l.b16 %v3576
        %v3705 = vunpack.c.l.b16 %v3577
        %v3706 = vunpack.c.l.b16 %v3578
        %v3707 = vunpack.c.l.b16 %v3579
        %v3708 = vunpack.c.l.b16 %v3580
        %v3709 = vunpack.c.l.b16 %v3581
        %v3710 = vunpack.c.l.b16 %v3582
        %v3711 = vunpack.c.l.b16 %v3583
        %v3712 = vunpack.c.l.b16 %v3584
        %v3713 = vunpack.c.l.b16 %v3585
        %v3714 = vunpack.c.l.b16 %v3586
        %v3715 = vunpack.c.l.b16 %v3587
        %v3716 = vunpack.c.l.b16 %v3588
        %v3717 = vunpack.c.l.b16 %v3589
        %v3718 = vunpack.c.l.b16 %v3590
        %v3719 = vunpack.c.l.b16 %v3591
        %v3720 = vunpack.c.l.b16 %v3592
        %v3721 = vunpack.c.l.b16 %v3593
        %v3722 = vunpack.c.l.b16 %v3594
        %v3723 = vunpack.c.l.b16 %v3595
        %v3724 = vunpack.c.l.b16 %v3596
        %v3725 = vunpack.c.l.b16 %v3597
        %v3726 = vunpack.c.l.b16 %v3598
        %v3727 = vunpack.c.l.b16 %v3599
        %v3728 = vunpack.c.l.b16 %v3600
        %v3729 = vunpack.c.l.b16 %v3601
        %v3730 = vunpack.c.l.b16 %v3602
        %v3731 = vunpack.c.l.b16 %v3603
        %v3732 = vunpack.c.l.b16 %v3604
        %v3733 = vunpack.c.l.b16 %v3605
        %v3734 = vunpack.c.l.b16 %v3606
        %v3735 = vunpack.c.l.b16 %v3607
        %v3736 = vunpack.c.l.b16 %v3608
        %v3737 = vunpack.c.l.b16 %v3609
        %v3738 = vpack.c.b16 %v3675, %v3674
        %v3739 = vpack.c.b16 %v3677, %v3676
        %v3740 = vpack.c.b16 %v3679, %v3678
        %v3741 = vpack.c.b16 %v3681, %v3680
        %v3742 = vpack.c.b16 %v3683, %v3682
        %v3743 = vpack.c.b16 %v3685, %v3684
        %v3744 = vpack.c.b16 %v3687, %v3686
        %v3745 = vpack.c.b16 %v3689, %v3688
        %v3746 = vpack.c.b16 %v3691, %v3690
        %v3747 = vpack.c.b16 %v3693, %v3692
        %v3748 = vpack.c.b16 %v3695, %v3694
        %v3749 = vpack.c.b16 %v3697, %v3696
        %v3750 = vpack.c.b16 %v3699, %v3698
        %v3751 = vpack.c.b16 %v3701, %v3700
        %v3752 = vpack.c.b16 %v3703, %v3702
        %v3753 = vpack.c.b16 %v3705, %v3704
        %v3754 = vpack.c.b16 %v3707, %v3706
        %v3755 = vpack.c.b16 %v3709, %v3708
        %v3756 = vpack.c.b16 %v3711, %v3710
        %v3757 = vpack.c.b16 %v3713, %v3712
        %v3758 = vpack.c.b16 %v3715, %v3714
        %v3759 = vpack.c.b16 %v3717, %v3716
        %v3760 = vpack.c.b16 %v3719, %v3718
        %v3761 = vpack.c.b16 %v3721, %v3720
        %v3762 = vpack.c.b16 %v3723, %v3722
        %v3763 = vpack.c.b16 %v3725, %v3724
        %v3764 = vpack.c.b16 %v3727, %v3726
        %v3765 = vpack.c.b16 %v3729, %v3728
        %v3766 = vpack.c.b16 %v3731, %v3730
        %v3767 = vpack.c.b16 %v3733, %v3732
        %v3768 = vpack.c.b16 %v3735, %v3734
        %v3769 = vpack.c.b16 %v3737, %v3736
        %3802 = vmatprep.subr.bf16.mxu0 0
        %3803 = vmatpush1.bf16.xpose.msra.mxu0 %v3745
        %3804 = vmatprep.subr.bf16.mxu0 0
        %3805 = vmatpush1.bf16.xpose.msra.mxu0 %v3744
        %3806 = vmatprep.subr.bf16.mxu0 0
        %3807 = vmatpush1.bf16.xpose.msra.mxu0 %v3743
        %3808 = vmatprep.subr.bf16.mxu0 0
        %3809 = vmatpush1.bf16.xpose.msra.mxu0 %v3742
        %3810 = vmatprep.subr.bf16.mxu0 0
        %3811 = vmatpush1.bf16.xpose.msra.mxu0 %v3741
        %3812 = vmatprep.subr.bf16.mxu0 0
        %3813 = vmatpush1.bf16.xpose.msra.mxu0 %v3740
        %3814 = vmatprep.subr.bf16.mxu0 0
        %3815 = vmatpush1.bf16.xpose.msra.mxu0 %v3739
        %3816 = vmatprep.subr.bf16.mxu0 0
        %3817 = vmatpush1.bf16.xpose.msra.mxu0 %v3738
        %3818 = vmatprep.subr.bf16.mxu0 0
        %3819 = vmatpush2.bf16.xpose.msra.mxu0 %v3753
        %3820 = vmatprep.subr.bf16.mxu0 0
        %3821 = vmatpush2.bf16.xpose.msra.mxu0 %v3752
        %3822 = vmatprep.subr.bf16.mxu0 0
        %3823 = vmatpush2.bf16.xpose.msra.mxu0 %v3751
        %3824 = vmatprep.subr.bf16.mxu0 0
        %3825 = vmatpush2.bf16.xpose.msra.mxu0 %v3750
        %3826 = vmatprep.subr.bf16.mxu0 0
        %3827 = vmatpush2.bf16.xpose.msra.mxu0 %v3749
        %3828 = vmatprep.subr.bf16.mxu0 0
        %3829 = vmatpush2.bf16.xpose.msra.mxu0 %v3748
        %3830 = vmatprep.subr.bf16.mxu0 0
        %3831 = vmatpush2.bf16.xpose.msra.mxu0 %v3747
        %3832 = vmatprep.subr.bf16.mxu0 0
        %3833 = vmatpush2.bf16.xpose.msra.mxu0 %v3746
        %3834 = vmatprep.mubr.bf16.mxu0 0
        %3835 = vmatmul.mubr.bf16.gmra.mxu0 %v3545
        %v3836 = vpop.f32.mrf.mxu0
        %v3837 = vadd.f32 0.0, %v3836
        %v3838 = vpop.f32.mrf.mxu0
        %v3839 = vadd.f32 0.0, %v3838
        %v3840 = vpop.f32.mrf.mxu0
        %v3841 = vadd.f32 0.0, %v3840
        %v3842 = vpop.f32.mrf.mxu0
        %v3843 = vadd.f32 0.0, %v3842
        %3844 = vdwg.mxu0
        %3845 = vmatprep.subr.bf16.mxu0 0
        %3846 = vmatpush1.bf16.xpose.msra.mxu0 %v3761
        %3847 = vmatprep.subr.bf16.mxu0 0
        %3848 = vmatpush1.bf16.xpose.msra.mxu0 %v3760
        %3849 = vmatprep.subr.bf16.mxu0 0
        %3850 = vmatpush1.bf16.xpose.msra.mxu0 %v3759
        %3851 = vmatprep.subr.bf16.mxu0 0
        %3852 = vmatpush1.bf16.xpose.msra.mxu0 %v3758
        %3853 = vmatprep.subr.bf16.mxu0 0
        %3854 = vmatpush1.bf16.xpose.msra.mxu0 %v3757
        %3855 = vmatprep.subr.bf16.mxu0 0
        %3856 = vmatpush1.bf16.xpose.msra.mxu0 %v3756
        %3857 = vmatprep.subr.bf16.mxu0 0
        %3858 = vmatpush1.bf16.xpose.msra.mxu0 %v3755
        %3859 = vmatprep.subr.bf16.mxu0 0
        %3860 = vmatpush1.bf16.xpose.msra.mxu0 %v3754
        %3861 = vmatprep.subr.bf16.mxu0 0
        %3862 = vmatpush2.bf16.xpose.msra.mxu0 %v3769
        %3863 = vmatprep.subr.bf16.mxu0 0
        %3864 = vmatpush2.bf16.xpose.msra.mxu0 %v3768
        %3865 = vmatprep.subr.bf16.mxu0 0
        %3866 = vmatpush2.bf16.xpose.msra.mxu0 %v3767
        %3867 = vmatprep.subr.bf16.mxu0 0
        %3868 = vmatpush2.bf16.xpose.msra.mxu0 %v3766
        %3869 = vmatprep.subr.bf16.mxu0 0
        %3870 = vmatpush2.bf16.xpose.msra.mxu0 %v3765
        %3871 = vmatprep.subr.bf16.mxu0 0
        %3872 = vmatpush2.bf16.xpose.msra.mxu0 %v3764
        %3873 = vmatprep.subr.bf16.mxu0 0
        %3874 = vmatpush2.bf16.xpose.msra.mxu0 %v3763
        %3875 = vmatprep.subr.bf16.mxu0 0
        %3876 = vmatpush2.bf16.xpose.msra.mxu0 %v3762
        %3877 = vmatprep.mubr.bf16.mxu0 0
        %3878 = vmatmul.mubr.bf16.gmra.mxu0 %v3545
        %v3879 = vpop.f32.mrf.mxu0
        %v3880 = vadd.f32 0.0, %v3879
        %v3881 = vpop.f32.mrf.mxu0
        %v3882 = vadd.f32 0.0, %v3881
        %v3883 = vpop.f32.mrf.mxu0
        %v3884 = vadd.f32 0.0, %v3883
        %v3885 = vpop.f32.mrf.mxu0
        %v3886 = vadd.f32 0.0, %v3885
        %3887 = vdwg.mxu0
        %3888 = vst [vmem:[%s551] sm:$0xff] %v3837
        %3889 = vst [vmem:[%s551 + $0x8] sm:$0xff] %v3839
        %3890 = vst [vmem:[%s551 + $0x10] sm:$0xff] %v3880
        %3891 = vst [vmem:[%s551 + $0x18] sm:$0xff] %v3882
        %3892 = vst [vmem:[%s551 + $0x20] sm:$0xff] %v3841
        %3893 = vst [vmem:[%s551 + $0x28] sm:$0xff] %v3843
        %3894 = vst [vmem:[%s551 + $0x30] sm:$0xff] %v3884
        %3895 = vst [vmem:[%s551 + $0x38] sm:$0xff] %v3886
        %p3896 = scmp.lt.s32.totalorder %s29, 1
        %s3897 = scalar_select %p3896, %s29, 1
        %s3898 = smul.addr %s3897, 8
        %s3899 = smul.addr %s3898, 8
        %s3900 = scalar_lea.vmem %s16, %s3899
        // Predicated region
        $region93: #{transformer_forward.1} parent=83 // pred_check
          %p3901 = pneg %p388
        $region94: #{transformer_forward.1} parent=83 // pred_check_branch
          %3903 = sbr.rel (%p3901) target = $region96
        $region95: #{transformer_forward.1} parent=83 // pred_region
          _
        $region96: #{transformer_forward.1} parent=83 // pred_fallthru
          _
      $region84: #{transformer_forward.1} parent=5 // pred_fallthru
        _
      %p3904 = scmp.le.s32.totalorder 2, %s24
      // Predicated region
      $region97: #{transformer_forward.1} parent=5 // pred_check
        %p3905 = pneg %p3904
      $region98: #{transformer_forward.1} parent=5 // pred_check_branch
        %3907 = sbr.rel (%p3905) target = $region100
      $region99: #{transformer_forward.1} parent=5 // pred_region
        %s3908 = ssub.s32 %s24, 2
        // Predicated region
        $region101: #{transformer_forward.1} parent=99 // pred_check
          %p3909 = pneg %p394
        $region102: #{transformer_forward.1} parent=99 // pred_check_branch
          %3911 = sbr.rel (%p3909) target = $region104
        $region103: #{transformer_forward.1} parent=99 // pred_region
          %p3912 = scmp.lt.s32.totalorder %s30, 1
          %s3913 = scalar_select %p3912, %s30, 1
          %s3914 = smul.addr %s3913, 8
          %s3915 = smul.addr %s3914, 8
          %s3916 = scalar_lea.vmem %s16, %s3915
        $region104: #{transformer_forward.1} parent=99 // pred_fallthru
          _
      $region100: #{transformer_forward.1} parent=5 // pred_fallthru
        _
    $region6: #{transformer_forward.1} parent=1 // loop_footer
      %s28 = sadd.s32 1, %s24
    $region7: #{transformer_forward.1} parent=1 // loop_footer_branch
      %23 = sbr.rel target = $region3
    $region8: #{transformer_forward.1} parent=1 // loop_exit
      _
    %3917 = vsyncpa [#allocation3], 1
    %s3918 = scalar_lea.sflag [#allocation3], 1
    %3919 = vsyncpa %s3918, 1
    %3920 = vsyncpa [#allocation5], 1

</llo_original>
